<compile_context>
chip_gen: v7x
topology: tpu7x:2x2x1
jax: 0.10.0
libtpu: 0.0.40
codegen_flags: <defaults>
</compile_context>

<pallas_src>
import functools

import jax
import jax.numpy as jnp
from jax.experimental import pallas as pl
from jax.experimental.pallas import tpu as pltpu


def _round_up(x, m):
    return (x + m - 1) // m * m


def _prelu(x, alpha):
    return jnp.where(x > 0, x, alpha * x)


def _decoder_kernel(
    # SMEM scalars: [prelu1, prelu2, prelu3, res1_prelu, res2_prelu, attn_gamma, 0, 0]
    alphas_ref,
    # (TILE_B, D_in_pad): concat([z_exp, z_ko, z_noise, e_p, e_b], zero-pad)
    x_ref,
    # trunk weights (VMEM resident across the whole grid)
    w1_ref, b1_ref, w2_ref, b2_ref, w3_ref, b3_ref,
    r1w1_ref, r1b1_ref, r1w2_ref, r1b2_ref,
    r2w1_ref, r2b1_ref, r2w2_ref, r2b2_ref,
    wqkv_ref, bqkv_ref,
    # fused output head, tiled along the (gene|perturbed|batch) output axis
    wout_ref, bout_ref,
    # fused output tile (TILE_B, TILE_N)
    out_ref,
    # trunk activation scratch, persists across head tiles
    h_scr,
):
    def dot(a, w_ref):
        w = w_ref[...]
        return jnp.dot(a.astype(w.dtype), w, preferred_element_type=jnp.float32)

    a1 = alphas_ref[0]
    a2 = alphas_ref[1]
    a3 = alphas_ref[2]
    ar1 = alphas_ref[3]
    ar2 = alphas_ref[4]
    gamma = alphas_ref[5]

    # Trunk computed once per batch tile (head-tile index 0), cached in VMEM.
    @pl.when(pl.program_id(1) == 0)
    def _trunk():
        h = _prelu(dot(x_ref[...], w1_ref) + b1_ref[...], a1)   # fc1 + prelu1
        h = _prelu(dot(h, w2_ref) + b2_ref[...], a2)            # fc2 + prelu2
        h = _prelu(dot(h, w3_ref) + b3_ref[...], a3)            # fc3 + prelu3

        # TODO(synk): ResidualBlock is not defined in the reference source;
        # assumed: y = PReLU(fc2(PReLU(fc1(x))) + x) with one PReLU per block.
        t = _prelu(dot(h, r1w1_ref) + r1b1_ref[...], ar1)
        t = dot(t, r1w2_ref) + r1b2_ref[...]
        h = _prelu(t + h, ar1)

        t = _prelu(dot(h, r2w1_ref) + r2b1_ref[...], ar2)
        t = dot(t, r2w2_ref) + r2b2_ref[...]
        h = _prelu(t + h, ar2)

        # TODO(synk): SelfAttention is not defined in the reference source;
        # assumed feature-wise attention: h + gamma * (softmax(q*k/sqrt(D)) * v).
        d = h.shape[-1]
        qkv = dot(h, wqkv_ref) + bqkv_ref[...]
        q = qkv[:, :d]
        k = qkv[:, d:2 * d]
        v = qkv[:, 2 * d:3 * d]
        scores = q * k * (1.0 / jnp.sqrt(jnp.float32(d)))
        scores = scores - jnp.max(scores, axis=-1, keepdims=True)
        e = jnp.exp(scores)
        attn = e * pl.reciprocal(jnp.sum(e, axis=-1, keepdims=True), approx=True)
        h_scr[...] = h + gamma * (attn * v)

    # Fused, lane-dense output head: tanh(h @ [W_exp|W_p|W_b] + [b_exp|b_p|b_b]).
    # (tanh on all three heads matches use_batch_norm=False defaults.)
    h = h_scr[...]
    out_ref[...] = jnp.tanh(dot(h, wout_ref) + bout_ref[...])


def _init_linear(key, in_dim, out_dim):
    """PyTorch-style Linear init, weight returned already transposed (in, out)."""
    kw, kb = jax.random.split(key)
    bound = 1.0 / float(in_dim) ** 0.5
    w = jax.random.uniform(kw, (in_dim, out_dim), jnp.float32, -bound, bound)
    b = jax.random.uniform(kb, (1, out_dim), jnp.float32, -bound, bound)
    return w, b


def make_decoder_params(key, gene_size, num_perturbed_gene, num_batch,
                        embedding_dim=32, latent_dim=128,
                        weight_dtype=jnp.bfloat16):
    """Decoder parameters in kernel-friendly (pre-transposed / fused / padded) layout."""
    ks = jax.random.split(key, 16)
    wdt = weight_dtype
    p = {}

    # Condition-embedding Linears (evaluated in the wrapper; tiny, kept f32).
    p["emb_p"] = _init_linear(ks[0], num_perturbed_gene, embedding_dim)
    p["emb_b"] = _init_linear(ks[1], num_batch, embedding_dim)

    d_in = 3 * latent_dim + 2 * embedding_dim
    d_in_pad = _round_up(d_in, 128)
    w1, b1 = _init_linear(ks[2], d_in, 1024)
    if d_in_pad > d_in:
        w1 = jnp.pad(w1, ((0, d_in_pad - d_in), (0, 0)))
    p["fc1"] = (w1.astype(wdt), b1)

    def lin(k, i, o):
        w, b = _init_linear(k, i, o)
        return w.astype(wdt), b

    p["fc2"] = lin(ks[3], 1024, 512)
    p["fc3"] = lin(ks[4], 512, 256)
    p["res1_fc1"] = lin(ks[5], 256, 256)
    p["res1_fc2"] = lin(ks[6], 256, 256)
    p["res2_fc1"] = lin(ks[7], 256, 256)
    p["res2_fc2"] = lin(ks[8], 256, 256)

    # Fused Q|K|V projection -> one (256, 768) matmul.
    wq, bq = _init_linear(ks[9], 256, 256)
    wk, bk = _init_linear(ks[10], 256, 256)
    wv, bv = _init_linear(ks[11], 256, 256)
    p["qkv"] = (jnp.concatenate([wq, wk, wv], axis=1).astype(wdt),
                jnp.concatenate([bq, bk, bv], axis=1))

    # Fused output heads x_hat|p_hat|b_hat, zero-padded to a lane-dense width
    # that is a multiple of the head tile size.
    we, be = _init_linear(ks[12], 256, gene_size)
    wp, bp = _init_linear(ks[13], 256, num_perturbed_gene)
    wb, bb = _init_linear(ks[14], 256, num_batch)
    n_out = gene_size + num_perturbed_gene + num_batch
    tile_n = _round_up(n_out, 128) if n_out <= 512 else 512
    n_out_pad = _round_up(n_out, tile_n)
    w_out = jnp.concatenate([we, wp, wb], axis=1)
    b_out = jnp.concatenate([be, bp, bb], axis=1)
    if n_out_pad > n_out:
        w_out = jnp.pad(w_out, ((0, 0), (0, n_out_pad - n_out)))
        b_out = jnp.pad(b_out, ((0, 0), (0, n_out_pad - n_out)))
    p["head"] = (w_out.astype(wdt), b_out)

    # Scalar params: 3 top-level PReLUs (init 0.25), 2 res-block PReLUs,
    # attention gamma (1.0 so the attention path is exercised), padding.
    p["alphas"] = jnp.array([0.25, 0.25, 0.25, 0.25, 0.25, 1.0, 0.0, 0.0],
                            jnp.float32)
    return p


@functools.partial(jax.jit, static_argnames=("gene_size",))
def decoder_forward(params, z_exp, z_ko, z_noise, p_onehot, b_onehot, *, gene_size):
    B = z_exp.shape[0]
    num_p = params["emb_p"][0].shape[0]
    num_b = params["emb_b"][0].shape[0]

    # Condition embeddings: K=num_p / K=num_b one-hot matmuls are MXU-hostile,
    # so they run in XLA and are folded into the concatenated fc1 input.
    w_ep, b_ep = params["emb_p"]
    w_eb, b_eb = params["emb_b"]
    e_p = p_onehot @ w_ep + b_ep
    e_b = b_onehot @ w_eb + b_eb

    x = jnp.concatenate([z_exp, z_ko, z_noise, e_p, e_b], axis=1)
    d_in_pad = params["fc1"][0].shape[0]
    if x.shape[1] < d_in_pad:
        x = jnp.pad(x, ((0, 0), (0, d_in_pad - x.shape[1])))

    # Batch tiling: 128-row tiles (sublane multiple of 8); small batches use a
    # single full-batch tile.
    tile_b = min(128, _round_up(B, 8))
    b_pad = _round_up(B, tile_b)
    if b_pad > B:
        x = jnp.pad(x, ((0, b_pad - B), (0, 0)))

    w_out, b_out = params["head"]
    n_out_pad = w_out.shape[1]
    tile_n = min(512, n_out_pad)          # n_out_pad is a multiple of tile_n
    hidden = w_out.shape[0]               # 256

    grid = (b_pad // tile_b, n_out_pad // tile_n)

    trunk = [*params["fc1"], *params["fc2"], *params["fc3"],
             *params["res1_fc1"], *params["res1_fc2"],
             *params["res2_fc1"], *params["res2_fc2"],
             *params["qkv"]]

    smem_spec = pl.BlockSpec(memory_space=pltpu.MemorySpace.SMEM)
    resident = lambda a: pl.BlockSpec(a.shape, lambda i, j: (0, 0))

    in_specs = (
        [smem_spec,
         pl.BlockSpec((tile_b, d_in_pad), lambda i, j: (i, 0))]
        + [resident(a) for a in trunk]
        + [pl.BlockSpec((hidden, tile_n), lambda i, j: (0, j)),
           pl.BlockSpec((1, tile_n), lambda i, j: (0, j))]
    )
    out_specs = pl.BlockSpec((tile_b, tile_n), lambda i, j: (i, j))

    out = pl.pallas_call(
        _decoder_kernel,
        out_shape=jax.ShapeDtypeStruct((b_pad, n_out_pad), jnp.float32),
        grid=grid,
        in_specs=in_specs,
        out_specs=out_specs,
        scratch_shapes=[pltpu.VMEM((tile_b, hidden), jnp.float32)],
        compiler_params=pltpu.CompilerParams(
            # Batch tiles are independent (megacore on v7x); the head-tile axis
            # carries the trunk scratch, so it must stay "arbitrary".
            dimension_semantics=("parallel", "arbitrary"),
            # Stay well under v7x's 64 MiB physical VMEM per core.
            vmem_limit_bytes=48 * 1024 * 1024,
        ),
    )(params["alphas"], x, *trunk, w_out, b_out)

    out = out[:B]
    x_hat = out[:, :gene_size]
    p_hat = out[:, gene_size:gene_size + num_p]
    b_hat = out[:, gene_size + num_p:gene_size + num_p + num_b]
    return x_hat, p_hat, b_hat


if __name__ == "__main__":
    # Small, module-consistent shapes.
    B = 8
    gene_size = 64
    num_perturbed_gene = 16
    num_batch = 8
    latent_dim = 32
    embedding_dim = 16

    key = jax.random.PRNGKey(0)
    k_par, k_ze, k_zk, k_zn, k_pi, k_bi = jax.random.split(key, 6)

    params = make_decoder_params(
        k_par, gene_size, num_perturbed_gene, num_batch,
        embedding_dim=embedding_dim, latent_dim=latent_dim)

    z_exp = jax.random.normal(k_ze, (B, latent_dim), jnp.float32)
    z_ko = jax.random.normal(k_zk, (B, latent_dim), jnp.float32)
    z_noise = jax.random.normal(k_zn, (B, latent_dim), jnp.float32)
    # use_embedding=False -> conditions enter as one-hot float vectors.
    p_idx = jax.random.randint(k_pi, (B,), 0, num_perturbed_gene)
    b_idx = jax.random.randint(k_bi, (B,), 0, num_batch)
    p_onehot = jax.nn.one_hot(p_idx, num_perturbed_gene, dtype=jnp.float32)
    b_onehot = jax.nn.one_hot(b_idx, num_batch, dtype=jnp.float32)

    x_hat, p_hat, b_hat = decoder_forward(
        params, z_exp, z_ko, z_noise, p_onehot, b_onehot, gene_size=gene_size)
    jax.block_until_ready((x_hat, p_hat, b_hat))

    assert x_hat.shape == (B, gene_size)
    assert p_hat.shape == (B, num_perturbed_gene)
    assert b_hat.shape == (B, num_batch)
    assert bool(jnp.all(jnp.isfinite(x_hat)))
    assert bool(jnp.all(jnp.isfinite(p_hat)))
    assert bool(jnp.all(jnp.isfinite(b_hat)))
    print("KERNEL_OK")
</pallas_src>

<mosaic_0001>
module attributes {stable_mosaic.version = 11 : i64} {
  func.func @_decoder_kernel(%arg0: i32, %arg1: i32, %arg2: memref<8xf32, #tpu.memory_space<smem>>, %arg3: memref<8x128xf32, #tpu.memory_space<vmem>>, %arg4: memref<128x1024xbf16, #tpu.memory_space<vmem>>, %arg5: memref<1x1024xf32, #tpu.memory_space<vmem>>, %arg6: memref<1024x512xbf16, #tpu.memory_space<vmem>>, %arg7: memref<1x512xf32, #tpu.memory_space<vmem>>, %arg8: memref<512x256xbf16, #tpu.memory_space<vmem>>, %arg9: memref<1x256xf32, #tpu.memory_space<vmem>>, %arg10: memref<256x256xbf16, #tpu.memory_space<vmem>>, %arg11: memref<1x256xf32, #tpu.memory_space<vmem>>, %arg12: memref<256x256xbf16, #tpu.memory_space<vmem>>, %arg13: memref<1x256xf32, #tpu.memory_space<vmem>>, %arg14: memref<256x256xbf16, #tpu.memory_space<vmem>>, %arg15: memref<1x256xf32, #tpu.memory_space<vmem>>, %arg16: memref<256x256xbf16, #tpu.memory_space<vmem>>, %arg17: memref<1x256xf32, #tpu.memory_space<vmem>>, %arg18: memref<256x768xbf16, #tpu.memory_space<vmem>>, %arg19: memref<1x768xf32, #tpu.memory_space<vmem>>, %arg20: memref<256x128xbf16, #tpu.memory_space<vmem>>, %arg21: memref<1x128xf32, #tpu.memory_space<vmem>>, %arg22: memref<8x128xf32, #tpu.memory_space<vmem>>, %arg23: memref<8x256xf32, #tpu.memory_space<vmem>>) attributes {dimension_semantics = [#tpu.dimension_semantics<parallel>, #tpu.dimension_semantics<arbitrary>], iteration_bounds = array<i64: 1, 1>, scalar_prefetch = 0 : i64, scratch_operands = 1 : i64, tpu.core_type = #tpu.core_type<tc>, window_params = [{transform_indices = @transform_0, window_bounds = array<i64: 8>}, {transform_indices = @transform_1, window_bounds = array<i64: 8, 128>}, {pipeline_mode = #tpu.pipeline_mode<synchronous>, transform_indices = @transform_2, window_bounds = array<i64: 128, 1024>}, {pipeline_mode = #tpu.pipeline_mode<synchronous>, transform_indices = @transform_3, window_bounds = array<i64: 1, 1024>}, {pipeline_mode = #tpu.pipeline_mode<synchronous>, transform_indices = @transform_4, window_bounds = array<i64: 1024, 512>}, {pipeline_mode = #tpu.pipeline_mode<synchronous>, transform_indices = @transform_5, window_bounds = array<i64: 1, 512>}, {pipeline_mode = #tpu.pipeline_mode<synchronous>, transform_indices = @transform_6, window_bounds = array<i64: 512, 256>}, {pipeline_mode = #tpu.pipeline_mode<synchronous>, transform_indices = @transform_7, window_bounds = array<i64: 1, 256>}, {pipeline_mode = #tpu.pipeline_mode<synchronous>, transform_indices = @transform_8, window_bounds = array<i64: 256, 256>}, {pipeline_mode = #tpu.pipeline_mode<synchronous>, transform_indices = @transform_9, window_bounds = array<i64: 1, 256>}, {pipeline_mode = #tpu.pipeline_mode<synchronous>, transform_indices = @transform_10, window_bounds = array<i64: 256, 256>}, {pipeline_mode = #tpu.pipeline_mode<synchronous>, transform_indices = @transform_11, window_bounds = array<i64: 1, 256>}, {pipeline_mode = #tpu.pipeline_mode<synchronous>, transform_indices = @transform_12, window_bounds = array<i64: 256, 256>}, {pipeline_mode = #tpu.pipeline_mode<synchronous>, transform_indices = @transform_13, window_bounds = array<i64: 1, 256>}, {pipeline_mode = #tpu.pipeline_mode<synchronous>, transform_indices = @transform_14, window_bounds = array<i64: 256, 256>}, {pipeline_mode = #tpu.pipeline_mode<synchronous>, transform_indices = @transform_15, window_bounds = array<i64: 1, 256>}, {pipeline_mode = #tpu.pipeline_mode<synchronous>, transform_indices = @transform_16, window_bounds = array<i64: 256, 768>}, {pipeline_mode = #tpu.pipeline_mode<synchronous>, transform_indices = @transform_17, window_bounds = array<i64: 1, 768>}, {transform_indices = @transform_18, window_bounds = array<i64: 256, 128>}, {transform_indices = @transform_19, window_bounds = array<i64: 1, 128>}, {transform_indices = @transform_20, window_bounds = array<i64: 8, 128>}]} {
    %c0 = arith.constant 0 : index
    %0 = memref.load %arg2[%c0] : memref<8xf32, #tpu.memory_space<smem>>
    %c1 = arith.constant 1 : index
    %1 = memref.load %arg2[%c1] : memref<8xf32, #tpu.memory_space<smem>>
    %c2 = arith.constant 2 : index
    %2 = memref.load %arg2[%c2] : memref<8xf32, #tpu.memory_space<smem>>
    %c3 = arith.constant 3 : index
    %3 = memref.load %arg2[%c3] : memref<8xf32, #tpu.memory_space<smem>>
    %c4 = arith.constant 4 : index
    %4 = memref.load %arg2[%c4] : memref<8xf32, #tpu.memory_space<smem>>
    %c5 = arith.constant 5 : index
    %5 = memref.load %arg2[%c5] : memref<8xf32, #tpu.memory_space<smem>>
    %c0_i32 = arith.constant 0 : i32
    %6 = arith.cmpi eq, %arg1, %c0_i32 : i32
    %7 = arith.extui %6 : i1 to i32
    %c0_i32_0 = arith.constant 0 : i32
    %8 = arith.cmpi ne, %7, %c0_i32_0 : i32
    scf.if %8 {
      %c0_9 = arith.constant 0 : index
      %c0_10 = arith.constant 0 : index
      %18 = vector.load %arg3[%c0_9, %c0_10] : memref<8x128xf32, #tpu.memory_space<vmem>>, vector<8x128xf32>
      %c0_11 = arith.constant 0 : index
      %c0_12 = arith.constant 0 : index
      %19 = vector.load %arg4[%c0_11, %c0_12] : memref<128x1024xbf16, #tpu.memory_space<vmem>>, vector<128x1024xbf16>
      %20 = arith.truncf %18 : vector<8x128xf32> to vector<8x128xbf16>
      %cst_13 = arith.constant dense<0.000000e+00> : vector<8x1024xf32>
      %21 = tpu.matmul %20, %19, %cst_13 {dimension_numbers = #tpu.dot_dimension_numbers<[1], [0], [0], [1], [0, 0, 1, 1], [], []>} : vector<8x128xbf16>, vector<128x1024xbf16>, vector<8x1024xf32> -> vector<8x1024xf32>
      %c0_14 = arith.constant 0 : index
      %c0_15 = arith.constant 0 : index
      %22 = vector.load %arg5[%c0_14, %c0_15] : memref<1x1024xf32, #tpu.memory_space<vmem>>, vector<1x1024xf32>
      %23 = vector.broadcast %22 : vector<1x1024xf32> to vector<8x1024xf32>
      %24 = arith.addf %21, %23 : vector<8x1024xf32>
      %cst_16 = arith.constant 0.000000e+00 : f32
      %25 = vector.broadcast %cst_16 : f32 to vector<8x1024xf32>
      %26 = arith.cmpf ogt, %24, %25 : vector<8x1024xf32>
      %27 = vector.broadcast %0 : f32 to vector<8x1024xf32>
      %28 = arith.mulf %27, %24 : vector<8x1024xf32>
      %29 = arith.select %26, %24, %28 : vector<8x1024xi1>, vector<8x1024xf32>
      %c0_17 = arith.constant 0 : index
      %c0_18 = arith.constant 0 : index
      %30 = vector.load %arg6[%c0_17, %c0_18] : memref<1024x512xbf16, #tpu.memory_space<vmem>>, vector<1024x512xbf16>
      %31 = arith.truncf %29 : vector<8x1024xf32> to vector<8x1024xbf16>
      %cst_19 = arith.constant dense<0.000000e+00> : vector<8x512xf32>
      %32 = tpu.matmul %31, %30, %cst_19 {dimension_numbers = #tpu.dot_dimension_numbers<[1], [0], [0], [1], [0, 0, 1, 1], [], []>} : vector<8x1024xbf16>, vector<1024x512xbf16>, vector<8x512xf32> -> vector<8x512xf32>
      %c0_20 = arith.constant 0 : index
      %c0_21 = arith.constant 0 : index
      %33 = vector.load %arg7[%c0_20, %c0_21] : memref<1x512xf32, #tpu.memory_space<vmem>>, vector<1x512xf32>
      %34 = vector.broadcast %33 : vector<1x512xf32> to vector<8x512xf32>
      %35 = arith.addf %32, %34 : vector<8x512xf32>
      %cst_22 = arith.constant 0.000000e+00 : f32
      %36 = vector.broadcast %cst_22 : f32 to vector<8x512xf32>
      %37 = arith.cmpf ogt, %35, %36 : vector<8x512xf32>
      %38 = vector.broadcast %1 : f32 to vector<8x512xf32>
      %39 = arith.mulf %38, %35 : vector<8x512xf32>
      %40 = arith.select %37, %35, %39 : vector<8x512xi1>, vector<8x512xf32>
      %c0_23 = arith.constant 0 : index
      %c0_24 = arith.constant 0 : index
      %41 = vector.load %arg8[%c0_23, %c0_24] : memref<512x256xbf16, #tpu.memory_space<vmem>>, vector<512x256xbf16>
      %42 = arith.truncf %40 : vector<8x512xf32> to vector<8x512xbf16>
      %cst_25 = arith.constant dense<0.000000e+00> : vector<8x256xf32>
      %43 = tpu.matmul %42, %41, %cst_25 {dimension_numbers = #tpu.dot_dimension_numbers<[1], [0], [0], [1], [0, 0, 1, 1], [], []>} : vector<8x512xbf16>, vector<512x256xbf16>, vector<8x256xf32> -> vector<8x256xf32>
      %c0_26 = arith.constant 0 : index
      %c0_27 = arith.constant 0 : index
      %44 = vector.load %arg9[%c0_26, %c0_27] : memref<1x256xf32, #tpu.memory_space<vmem>>, vector<1x256xf32>
      %45 = vector.broadcast %44 : vector<1x256xf32> to vector<8x256xf32>
      %46 = arith.addf %43, %45 : vector<8x256xf32>
      %cst_28 = arith.constant 0.000000e+00 : f32
      %47 = vector.broadcast %cst_28 : f32 to vector<8x256xf32>
      %48 = arith.cmpf ogt, %46, %47 : vector<8x256xf32>
      %49 = vector.broadcast %2 : f32 to vector<8x256xf32>
      %50 = arith.mulf %49, %46 : vector<8x256xf32>
      %51 = arith.select %48, %46, %50 : vector<8x256xi1>, vector<8x256xf32>
      %c0_29 = arith.constant 0 : index
      %c0_30 = arith.constant 0 : index
      %52 = vector.load %arg10[%c0_29, %c0_30] : memref<256x256xbf16, #tpu.memory_space<vmem>>, vector<256x256xbf16>
      %53 = arith.truncf %51 : vector<8x256xf32> to vector<8x256xbf16>
      %cst_31 = arith.constant dense<0.000000e+00> : vector<8x256xf32>
      %54 = tpu.matmul %53, %52, %cst_31 {dimension_numbers = #tpu.dot_dimension_numbers<[1], [0], [0], [1], [0, 0, 1, 1], [], []>} : vector<8x256xbf16>, vector<256x256xbf16>, vector<8x256xf32> -> vector<8x256xf32>
      %c0_32 = arith.constant 0 : index
      %c0_33 = arith.constant 0 : index
      %55 = vector.load %arg11[%c0_32, %c0_33] : memref<1x256xf32, #tpu.memory_space<vmem>>, vector<1x256xf32>
      %56 = vector.broadcast %55 : vector<1x256xf32> to vector<8x256xf32>
      %57 = arith.addf %54, %56 : vector<8x256xf32>
      %cst_34 = arith.constant 0.000000e+00 : f32
      %58 = vector.broadcast %cst_34 : f32 to vector<8x256xf32>
      %59 = arith.cmpf ogt, %57, %58 : vector<8x256xf32>
      %60 = vector.broadcast %3 : f32 to vector<8x256xf32>
      %61 = arith.mulf %60, %57 : vector<8x256xf32>
      %62 = arith.select %59, %57, %61 : vector<8x256xi1>, vector<8x256xf32>
      %c0_35 = arith.constant 0 : index
      %c0_36 = arith.constant 0 : index
      %63 = vector.load %arg12[%c0_35, %c0_36] : memref<256x256xbf16, #tpu.memory_space<vmem>>, vector<256x256xbf16>
      %64 = arith.truncf %62 : vector<8x256xf32> to vector<8x256xbf16>
      %cst_37 = arith.constant dense<0.000000e+00> : vector<8x256xf32>
      %65 = tpu.matmul %64, %63, %cst_37 {dimension_numbers = #tpu.dot_dimension_numbers<[1], [0], [0], [1], [0, 0, 1, 1], [], []>} : vector<8x256xbf16>, vector<256x256xbf16>, vector<8x256xf32> -> vector<8x256xf32>
      %c0_38 = arith.constant 0 : index
      %c0_39 = arith.constant 0 : index
      %66 = vector.load %arg13[%c0_38, %c0_39] : memref<1x256xf32, #tpu.memory_space<vmem>>, vector<1x256xf32>
      %67 = vector.broadcast %66 : vector<1x256xf32> to vector<8x256xf32>
      %68 = arith.addf %65, %67 : vector<8x256xf32>
      %69 = arith.addf %68, %51 : vector<8x256xf32>
      %cst_40 = arith.constant 0.000000e+00 : f32
      %70 = vector.broadcast %cst_40 : f32 to vector<8x256xf32>
      %71 = arith.cmpf ogt, %69, %70 : vector<8x256xf32>
      %72 = vector.broadcast %3 : f32 to vector<8x256xf32>
      %73 = arith.mulf %72, %69 : vector<8x256xf32>
      %74 = arith.select %71, %69, %73 : vector<8x256xi1>, vector<8x256xf32>
      %c0_41 = arith.constant 0 : index
      %c0_42 = arith.constant 0 : index
      %75 = vector.load %arg14[%c0_41, %c0_42] : memref<256x256xbf16, #tpu.memory_space<vmem>>, vector<256x256xbf16>
      %76 = arith.truncf %74 : vector<8x256xf32> to vector<8x256xbf16>
      %cst_43 = arith.constant dense<0.000000e+00> : vector<8x256xf32>
      %77 = tpu.matmul %76, %75, %cst_43 {dimension_numbers = #tpu.dot_dimension_numbers<[1], [0], [0], [1], [0, 0, 1, 1], [], []>} : vector<8x256xbf16>, vector<256x256xbf16>, vector<8x256xf32> -> vector<8x256xf32>
      %c0_44 = arith.constant 0 : index
      %c0_45 = arith.constant 0 : index
      %78 = vector.load %arg15[%c0_44, %c0_45] : memref<1x256xf32, #tpu.memory_space<vmem>>, vector<1x256xf32>
      %79 = vector.broadcast %78 : vector<1x256xf32> to vector<8x256xf32>
      %80 = arith.addf %77, %79 : vector<8x256xf32>
      %cst_46 = arith.constant 0.000000e+00 : f32
      %81 = vector.broadcast %cst_46 : f32 to vector<8x256xf32>
      %82 = arith.cmpf ogt, %80, %81 : vector<8x256xf32>
      %83 = vector.broadcast %4 : f32 to vector<8x256xf32>
      %84 = arith.mulf %83, %80 : vector<8x256xf32>
      %85 = arith.select %82, %80, %84 : vector<8x256xi1>, vector<8x256xf32>
      %c0_47 = arith.constant 0 : index
      %c0_48 = arith.constant 0 : index
      %86 = vector.load %arg16[%c0_47, %c0_48] : memref<256x256xbf16, #tpu.memory_space<vmem>>, vector<256x256xbf16>
      %87 = arith.truncf %85 : vector<8x256xf32> to vector<8x256xbf16>
      %cst_49 = arith.constant dense<0.000000e+00> : vector<8x256xf32>
      %88 = tpu.matmul %87, %86, %cst_49 {dimension_numbers = #tpu.dot_dimension_numbers<[1], [0], [0], [1], [0, 0, 1, 1], [], []>} : vector<8x256xbf16>, vector<256x256xbf16>, vector<8x256xf32> -> vector<8x256xf32>
      %c0_50 = arith.constant 0 : index
      %c0_51 = arith.constant 0 : index
      %89 = vector.load %arg17[%c0_50, %c0_51] : memref<1x256xf32, #tpu.memory_space<vmem>>, vector<1x256xf32>
      %90 = vector.broadcast %89 : vector<1x256xf32> to vector<8x256xf32>
      %91 = arith.addf %88, %90 : vector<8x256xf32>
      %92 = arith.addf %91, %74 : vector<8x256xf32>
      %cst_52 = arith.constant 0.000000e+00 : f32
      %93 = vector.broadcast %cst_52 : f32 to vector<8x256xf32>
      %94 = arith.cmpf ogt, %92, %93 : vector<8x256xf32>
      %95 = vector.broadcast %4 : f32 to vector<8x256xf32>
      %96 = arith.mulf %95, %92 : vector<8x256xf32>
      %97 = arith.select %94, %92, %96 : vector<8x256xi1>, vector<8x256xf32>
      %c0_53 = arith.constant 0 : index
      %c0_54 = arith.constant 0 : index
      %98 = vector.load %arg18[%c0_53, %c0_54] : memref<256x768xbf16, #tpu.memory_space<vmem>>, vector<256x768xbf16>
      %99 = arith.truncf %97 : vector<8x256xf32> to vector<8x256xbf16>
      %cst_55 = arith.constant dense<0.000000e+00> : vector<8x768xf32>
      %100 = tpu.matmul %99, %98, %cst_55 {dimension_numbers = #tpu.dot_dimension_numbers<[1], [0], [0], [1], [0, 0, 1, 1], [], []>} : vector<8x256xbf16>, vector<256x768xbf16>, vector<8x768xf32> -> vector<8x768xf32>
      %c0_56 = arith.constant 0 : index
      %c0_57 = arith.constant 0 : index
      %101 = vector.load %arg19[%c0_56, %c0_57] : memref<1x768xf32, #tpu.memory_space<vmem>>, vector<1x768xf32>
      %102 = vector.broadcast %101 : vector<1x768xf32> to vector<8x768xf32>
      %103 = arith.addf %100, %102 : vector<8x768xf32>
      %104 = vector.extract_strided_slice %103 {offsets = [0, 0], sizes = [8, 256], strides = [1, 1]} : vector<8x768xf32> to vector<8x256xf32>
      %105 = vector.extract_strided_slice %103 {offsets = [0, 256], sizes = [8, 256], strides = [1, 1]} : vector<8x768xf32> to vector<8x256xf32>
      %106 = vector.extract_strided_slice %103 {offsets = [0, 512], sizes = [8, 256], strides = [1, 1]} : vector<8x768xf32> to vector<8x256xf32>
      %107 = arith.mulf %104, %105 : vector<8x256xf32>
      %cst_58 = arith.constant 2.560000e+02 : f32
      %108 = math.sqrt %cst_58 : f32
      %cst_59 = arith.constant 1.000000e+00 : f32
      %109 = arith.divf %cst_59, %108 : f32
      %110 = vector.broadcast %109 : f32 to vector<8x256xf32>
      %111 = arith.mulf %107, %110 : vector<8x256xf32>
      %cst_60 = arith.constant dense<0xFF800000> : vector<8xf32>
      %112 = vector.multi_reduction <maximumf>, %111, %cst_60 [1] : vector<8x256xf32> to vector<8xf32>
      %113 = vector.shape_cast %112 : vector<8xf32> to vector<8x1xf32>
      %114 = vector.broadcast %113 : vector<8x1xf32> to vector<8x256xf32>
      %115 = arith.subf %111, %114 : vector<8x256xf32>
      %116 = math.exp %115 : vector<8x256xf32>
      %cst_61 = arith.constant dense<0.000000e+00> : vector<8xf32>
      %117 = vector.multi_reduction <add>, %116, %cst_61 [1] : vector<8x256xf32> to vector<8xf32>
      %118 = vector.shape_cast %117 : vector<8xf32> to vector<8x1xf32>
      %119 = tpu.reciprocal %118 {approx = true} : vector<8x1xf32> -> vector<8x1xf32>
      %120 = vector.broadcast %119 : vector<8x1xf32> to vector<8x256xf32>
      %121 = arith.mulf %116, %120 : vector<8x256xf32>
      %122 = arith.mulf %121, %106 : vector<8x256xf32>
      %123 = vector.broadcast %5 : f32 to vector<8x256xf32>
      %124 = arith.mulf %123, %122 : vector<8x256xf32>
      %125 = arith.addf %97, %124 : vector<8x256xf32>
      %c0_62 = arith.constant 0 : index
      %c0_63 = arith.constant 0 : index
      %126 = vector.load %arg23[%c0_62, %c0_63] : memref<8x256xf32, #tpu.memory_space<vmem>>, vector<8x256xf32>
      tpu.vector_store %arg23[%c0_62, %c0_63], %125 {strides = array<i32>} : memref<8x256xf32, #tpu.memory_space<vmem>>, vector<8x256xf32>,
    } else {
    }
    %c0_1 = arith.constant 0 : index
    %c0_2 = arith.constant 0 : index
    %9 = vector.load %arg23[%c0_1, %c0_2] : memref<8x256xf32, #tpu.memory_space<vmem>>, vector<8x256xf32>
    %c0_3 = arith.constant 0 : index
    %c0_4 = arith.constant 0 : index
    %10 = vector.load %arg20[%c0_3, %c0_4] : memref<256x128xbf16, #tpu.memory_space<vmem>>, vector<256x128xbf16>
    %11 = arith.truncf %9 : vector<8x256xf32> to vector<8x256xbf16>
    %cst = arith.constant dense<0.000000e+00> : vector<8x128xf32>
    %12 = tpu.matmul %11, %10, %cst {dimension_numbers = #tpu.dot_dimension_numbers<[1], [0], [0], [1], [0, 0, 1, 1], [], []>} : vector<8x256xbf16>, vector<256x128xbf16>, vector<8x128xf32> -> vector<8x128xf32>
    %c0_5 = arith.constant 0 : index
    %c0_6 = arith.constant 0 : index
    %13 = vector.load %arg21[%c0_5, %c0_6] : memref<1x128xf32, #tpu.memory_space<vmem>>, vector<1x128xf32>
    %14 = vector.broadcast %13 : vector<1x128xf32> to vector<8x128xf32>
    %15 = arith.addf %12, %14 : vector<8x128xf32>
    %16 = math.tanh %15 : vector<8x128xf32>
    %c0_7 = arith.constant 0 : index
    %c0_8 = arith.constant 0 : index
    %17 = vector.load %arg22[%c0_7, %c0_8] : memref<8x128xf32, #tpu.memory_space<vmem>>, vector<8x128xf32>
    tpu.vector_store %arg22[%c0_7, %c0_8], %16 {strides = array<i32>} : memref<8x128xf32, #tpu.memory_space<vmem>>, vector<8x128xf32>,
    return
  }
  func.func @transform_0(%arg0: i32, %arg1: i32) -> i32 {
    %c0_i32 = arith.constant 0 : i32
    %c0_i32_0 = arith.constant 0 : i32
    return %c0_i32 : i32
  }
  func.func @transform_1(%arg0: i32, %arg1: i32) -> (i32, i32) {
    %c0_i32 = arith.constant 0 : i32
    %c0_i32_0 = arith.constant 0 : i32
    return %arg0, %c0_i32 : i32, i32
  }
  func.func @transform_2(%arg0: i32, %arg1: i32) -> (i32, i32) {
    %c0_i32 = arith.constant 0 : i32
    %c0_i32_0 = arith.constant 0 : i32
    %c0_i32_1 = arith.constant 0 : i32
    return %c0_i32, %c0_i32_0 : i32, i32
  }
  func.func @transform_3(%arg0: i32, %arg1: i32) -> (i32, i32) {
    %c0_i32 = arith.constant 0 : i32
    %c0_i32_0 = arith.constant 0 : i32
    %c0_i32_1 = arith.constant 0 : i32
    return %c0_i32, %c0_i32_0 : i32, i32
  }
  func.func @transform_4(%arg0: i32, %arg1: i32) -> (i32, i32) {
    %c0_i32 = arith.constant 0 : i32
    %c0_i32_0 = arith.constant 0 : i32
    %c0_i32_1 = arith.constant 0 : i32
    return %c0_i32, %c0_i32_0 : i32, i32
  }
  func.func @transform_5(%arg0: i32, %arg1: i32) -> (i32, i32) {
    %c0_i32 = arith.constant 0 : i32
    %c0_i32_0 = arith.constant 0 : i32
    %c0_i32_1 = arith.constant 0 : i32
    return %c0_i32, %c0_i32_0 : i32, i32
  }
  func.func @transform_6(%arg0: i32, %arg1: i32) -> (i32, i32) {
    %c0_i32 = arith.constant 0 : i32
    %c0_i32_0 = arith.constant 0 : i32
    %c0_i32_1 = arith.constant 0 : i32
    return %c0_i32, %c0_i32_0 : i32, i32
  }
  func.func @transform_7(%arg0: i32, %arg1: i32) -> (i32, i32) {
    %c0_i32 = arith.constant 0 : i32
    %c0_i32_0 = arith.constant 0 : i32
    %c0_i32_1 = arith.constant 0 : i32
    return %c0_i32, %c0_i32_0 : i32, i32
  }
  func.func @transform_8(%arg0: i32, %arg1: i32) -> (i32, i32) {
    %c0_i32 = arith.constant 0 : i32
    %c0_i32_0 = arith.constant 0 : i32
    %c0_i32_1 = arith.constant 0 : i32
    return %c0_i32, %c0_i32_0 : i32, i32
  }
  func.func @transform_9(%arg0: i32, %arg1: i32) -> (i32, i32) {
    %c0_i32 = arith.constant 0 : i32
    %c0_i32_0 = arith.constant 0 : i32
    %c0_i32_1 = arith.constant 0 : i32
    return %c0_i32, %c0_i32_0 : i32, i32
  }
  func.func @transform_10(%arg0: i32, %arg1: i32) -> (i32, i32) {
    %c0_i32 = arith.constant 0 : i32
    %c0_i32_0 = arith.constant 0 : i32
    %c0_i32_1 = arith.constant 0 : i32
    return %c0_i32, %c0_i32_0 : i32, i32
  }
  func.func @transform_11(%arg0: i32, %arg1: i32) -> (i32, i32) {
    %c0_i32 = arith.constant 0 : i32
    %c0_i32_0 = arith.constant 0 : i32
    %c0_i32_1 = arith.constant 0 : i32
    return %c0_i32, %c0_i32_0 : i32, i32
  }
  func.func @transform_12(%arg0: i32, %arg1: i32) -> (i32, i32) {
    %c0_i32 = arith.constant 0 : i32
    %c0_i32_0 = arith.constant 0 : i32
    %c0_i32_1 = arith.constant 0 : i32
    return %c0_i32, %c0_i32_0 : i32, i32
  }
  func.func @transform_13(%arg0: i32, %arg1: i32) -> (i32, i32) {
    %c0_i32 = arith.constant 0 : i32
    %c0_i32_0 = arith.constant 0 : i32
    %c0_i32_1 = arith.constant 0 : i32
    return %c0_i32, %c0_i32_0 : i32, i32
  }
  func.func @transform_14(%arg0: i32, %arg1: i32) -> (i32, i32) {
    %c0_i32 = arith.constant 0 : i32
    %c0_i32_0 = arith.constant 0 : i32
    %c0_i32_1 = arith.constant 0 : i32
    return %c0_i32, %c0_i32_0 : i32, i32
  }
  func.func @transform_15(%arg0: i32, %arg1: i32) -> (i32, i32) {
    %c0_i32 = arith.constant 0 : i32
    %c0_i32_0 = arith.constant 0 : i32
    %c0_i32_1 = arith.constant 0 : i32
    return %c0_i32, %c0_i32_0 : i32, i32
  }
  func.func @transform_16(%arg0: i32, %arg1: i32) -> (i32, i32) {
    %c0_i32 = arith.constant 0 : i32
    %c0_i32_0 = arith.constant 0 : i32
    %c0_i32_1 = arith.constant 0 : i32
    return %c0_i32, %c0_i32_0 : i32, i32
  }
  func.func @transform_17(%arg0: i32, %arg1: i32) -> (i32, i32) {
    %c0_i32 = arith.constant 0 : i32
    %c0_i32_0 = arith.constant 0 : i32
    %c0_i32_1 = arith.constant 0 : i32
    return %c0_i32, %c0_i32_0 : i32, i32
  }
  func.func @transform_18(%arg0: i32, %arg1: i32) -> (i32, i32) {
    %c0_i32 = arith.constant 0 : i32
    %c0_i32_0 = arith.constant 0 : i32
    return %c0_i32, %arg1 : i32, i32
  }
  func.func @transform_19(%arg0: i32, %arg1: i32) -> (i32, i32) {
    %c0_i32 = arith.constant 0 : i32
    %c0_i32_0 = arith.constant 0 : i32
    return %c0_i32, %arg1 : i32, i32
  }
  func.func @transform_20(%arg0: i32, %arg1: i32) -> (i32, i32) {
    %c0_i32 = arith.constant 0 : i32
    return %arg0, %arg1 : i32, i32
  }
}

</mosaic_0001>

<llo_original>
// kernel: decoder_forward.1
$region0: #{decoder_forward.1}
  #allocation0 [shape = 'u32[]', space=smem, size = 0x4, offset = 0x4, fixed_abs, tag = 'smem constant byte address 0x4 - core index']
  #allocation1 [shape = 'u32[144,128]{1,0:T(1,128)}', space=vmem, size = 0x12000, scoped, tag = 'internal scratch']
  #allocation2 [shape = 'f32[8,256]{1,0:T(8,128)}', space=vmem, size = 0x2000, scoped, tag = 'scratch operand']
  %s0 = inlined_call_operand.vmem [shape: f32[8], index: 0, kind: input, shape index: {}]
  %s1 = inlined_call_operand.vmem [shape: f32[8,128], index: 1, kind: input, shape index: {}]
  %s2 = inlined_call_operand.hbm [shape: bf16[128,1024], index: 2, kind: input, shape index: {}]
  %s3 = inlined_call_operand.vmem [shape: f32[1,1024], index: 3, kind: input, shape index: {}]
  %s4 = inlined_call_operand.hbm [shape: bf16[1024,512], index: 4, kind: input, shape index: {}]
  %s5 = inlined_call_operand.hbm [shape: f32[1,512], index: 5, kind: input, shape index: {}]
  %s6 = inlined_call_operand.hbm [shape: bf16[512,256], index: 6, kind: input, shape index: {}]
  %s7 = inlined_call_operand.hbm [shape: f32[1,256], index: 7, kind: input, shape index: {}]
  %s8 = inlined_call_operand.hbm [shape: bf16[256,256], index: 8, kind: input, shape index: {}]
  %s9 = inlined_call_operand.hbm [shape: f32[1,256], index: 9, kind: input, shape index: {}]
  %s10 = inlined_call_operand.hbm [shape: bf16[256,256], index: 10, kind: input, shape index: {}]
  %s11 = inlined_call_operand.vmem [shape: f32[1,256], index: 11, kind: input, shape index: {}]
  %s12 = inlined_call_operand.hbm [shape: bf16[256,256], index: 12, kind: input, shape index: {}]
  %s13 = inlined_call_operand.vmem [shape: f32[1,256], index: 13, kind: input, shape index: {}]
  %s14 = inlined_call_operand.hbm [shape: bf16[256,256], index: 14, kind: input, shape index: {}]
  %s15 = inlined_call_operand.vmem [shape: f32[1,256], index: 15, kind: input, shape index: {}]
  %s16 = inlined_call_operand.hbm [shape: bf16[256,768], index: 16, kind: input, shape index: {}]
  %s17 = inlined_call_operand.hbm [shape: f32[1,768], index: 17, kind: input, shape index: {}]
  %s18 = inlined_call_operand.vmem [shape: bf16[256,128], index: 18, kind: input, shape index: {}]
  %s19 = inlined_call_operand.hbm [shape: f32[1,128], index: 19, kind: input, shape index: {}]
  %s20 = inlined_call_operand.vmem [shape: f32[8,128], index: 20, kind: output, shape index: {}]
  %s21 = sld [smem:[#allocation0]]
  $region150: #{decoder_forward.1} parent=0
    _
  %s23 = ssub.s32 1, %s21
  %s24 = scalar_select 0, %s23, %s21
  $region1: #{decoder_forward.1} parent=0
    #allocation3 [shape = 'u8[512]{0}', space=smem, size = 0x200, scoped, tag = 'input window, operand 0, single buffered']
    #allocation4 [shape = 's32[1]{0}', space=sflag, size = 0x4, scoped, tag = 'scoped memory for decoder_forward.1']
    #allocation5 [shape = 's32[1]{0}', space=sflag, size = 0x4, scoped, tag = 'scoped memory for decoder_forward.1']
    #allocation6 [shape = 'u8[262144]{0}', space=vmem, size = 0x40000, scoped, tag = 'input window, operand 2, single buffered']
    #allocation7 [shape = 'u8[1048576]{0}', space=vmem, size = 0x100000, scoped, tag = 'input window, operand 4, single buffered']
    #allocation8 [shape = 's32[1]{0}', space=sflag, size = 0x4, scoped, tag = 'scoped memory for decoder_forward.1']
    #allocation9 [shape = 'u8[2048]{0}', space=vmem, size = 0x800, scoped, tag = 'input window, operand 5, single buffered']
    #allocation10 [shape = 'u8[262144]{0}', space=vmem, size = 0x40000, scoped, tag = 'input window, operand 6, single buffered']
    #allocation11 [shape = 's32[1]{0}', space=sflag, size = 0x4, scoped, tag = 'scoped memory for decoder_forward.1']
    #allocation12 [shape = 'u8[1024]{0}', space=vmem, size = 0x400, scoped, tag = 'input window, operand 7, single buffered']
    #allocation13 [shape = 'u8[131072]{0}', space=vmem, size = 0x20000, scoped, tag = 'input window, operand 8, single buffered']
    #allocation14 [shape = 's32[1]{0}', space=sflag, size = 0x4, scoped, tag = 'scoped memory for decoder_forward.1']
    #allocation15 [shape = 'u8[1024]{0}', space=vmem, size = 0x400, scoped, tag = 'input window, operand 9, single buffered']
    #allocation16 [shape = 'u8[131072]{0}', space=vmem, size = 0x20000, scoped, tag = 'input window, operand 10, single buffered']
    #allocation17 [shape = 's32[1]{0}', space=sflag, size = 0x4, scoped, tag = 'scoped memory for decoder_forward.1']
    #allocation18 [shape = 'u8[131072]{0}', space=vmem, size = 0x20000, scoped, tag = 'input window, operand 12, single buffered']
    #allocation19 [shape = 'u8[131072]{0}', space=vmem, size = 0x20000, scoped, tag = 'input window, operand 14, single buffered']
    #allocation20 [shape = 's32[1]{0}', space=sflag, size = 0x4, scoped, tag = 'scoped memory for decoder_forward.1']
    #allocation21 [shape = 'u8[393216]{0}', space=vmem, size = 0x60000, scoped, tag = 'input window, operand 16, single buffered']
    #allocation22 [shape = 'u8[3072]{0}', space=vmem, size = 0xc00, scoped, tag = 'input window, operand 17, single buffered']
    #allocation23 [shape = 's32[1]{0}', space=sflag, size = 0x4, scoped, tag = 'scoped memory for decoder_forward.1']
    #allocation24 [shape = 'u8[512]{0}', space=vmem, size = 0x400, scoped, tag = 'input window, operand 19, single buffered']
    %25 = vsyncpa [#allocation5], 0
    %26 = vsyncpa [#allocation4], 0
    %27 = vsyncpa [#allocation8], 0
    %28 = vsyncpa [#allocation11], 0
    %29 = vsyncpa [#allocation14], 0
    %30 = vsyncpa [#allocation17], 0
    %31 = vsyncpa [#allocation20], 0
    %32 = vsyncpa [#allocation23], 0
    // Predicated region
    $region2: #{decoder_forward.1} parent=1 // pred_check
      _
    $region3: #{decoder_forward.1} parent=1 // pred_check_branch
      %34 = sbr.rel (0) target = $region5
    $region4: #{decoder_forward.1} parent=1 // pred_region
      %s36 = ssub.s32 16, 16
      %37 = vsyncadd [#allocation5], %s36
      %s39 = sshll.u32 %s0, 4
      %s40 = int_to_ptr.vmem [resolvable:$true] %s39
      %42 = dma.vmem_to_smem %s40, 16, [#allocation3], [#allocation5]
    $region5: #{decoder_forward.1} parent=1 // pred_fallthru
      _
    // Predicated region
    $region6: #{decoder_forward.1} parent=1 // pred_check
      _
    $region7: #{decoder_forward.1} parent=1 // pred_check_branch
      %44 = sbr.rel (0) target = $region9
    $region8: #{decoder_forward.1} parent=1 // pred_region
      _
    $region9: #{decoder_forward.1} parent=1 // pred_fallthru
      _
    // Predicated region
    $region10: #{decoder_forward.1} parent=1 // pred_check
      _
    $region11: #{decoder_forward.1} parent=1 // pred_check_branch
      %46 = sbr.rel (0) target = $region13
    $region12: #{decoder_forward.1} parent=1 // pred_region
      %s48 = ssub.s32 8192, 8192
      %49 = vsyncadd [#allocation4], %s48
      %s50 = sshll.u32 [#allocation6], 4
      %s51 = int_to_ptr.vmem [resolvable:$true] %s50
      %56 = dma.hbm_to_vmem [thread:$0]  %s2, 8192, %s51, [#allocation4], 512, 512, 32
    $region13: #{decoder_forward.1} parent=1 // pred_fallthru
      _
    // Predicated region
    $region14: #{decoder_forward.1} parent=1 // pred_check
      _
    $region15: #{decoder_forward.1} parent=1 // pred_check_branch
      %58 = sbr.rel (0) target = $region17
    $region16: #{decoder_forward.1} parent=1 // pred_region
      _
    $region17: #{decoder_forward.1} parent=1 // pred_fallthru
      _
    // Predicated region
    $region18: #{decoder_forward.1} parent=1 // pred_check
      _
    $region19: #{decoder_forward.1} parent=1 // pred_check_branch
      %60 = sbr.rel (0) target = $region21
    $region20: #{decoder_forward.1} parent=1 // pred_region
      %s62 = ssub.s32 32768, 32768
      %63 = vsyncadd [#allocation8], %s62
      %s64 = sshll.u32 [#allocation7], 4
      %s65 = int_to_ptr.vmem [resolvable:$true] %s64
      %70 = dma.hbm_to_vmem [thread:$0]  %s4, 32768, %s65, [#allocation8], 256, 256, 16
    $region21: #{decoder_forward.1} parent=1 // pred_fallthru
      _
    // Predicated region
    $region22: #{decoder_forward.1} parent=1 // pred_check
      _
    $region23: #{decoder_forward.1} parent=1 // pred_check_branch
      %72 = sbr.rel (0) target = $region25
    $region24: #{decoder_forward.1} parent=1 // pred_region
      %s74 = ssub.s32 64, 64
      %75 = vsyncadd [#allocation8], %s74
      %s77 = sshll.u32 [#allocation9], 4
      %s78 = int_to_ptr.vmem [resolvable:$true] %s77
      %80 = dma.hbm_to_vmem [thread:$0]  %s5, 64, %s78, [#allocation8]
    $region25: #{decoder_forward.1} parent=1 // pred_fallthru
      _
    // Predicated region
    $region26: #{decoder_forward.1} parent=1 // pred_check
      _
    $region27: #{decoder_forward.1} parent=1 // pred_check_branch
      %82 = sbr.rel (0) target = $region29
    $region28: #{decoder_forward.1} parent=1 // pred_region
      %s84 = ssub.s32 8192, 8192
      %85 = vsyncadd [#allocation11], %s84
      %s86 = sshll.u32 [#allocation10], 4
      %s87 = int_to_ptr.vmem [resolvable:$true] %s86
      %92 = dma.hbm_to_vmem [thread:$0]  %s6, 8192, %s87, [#allocation11], 128, 128, 8
    $region29: #{decoder_forward.1} parent=1 // pred_fallthru
      _
    // Predicated region
    $region30: #{decoder_forward.1} parent=1 // pred_check
      _
    $region31: #{decoder_forward.1} parent=1 // pred_check_branch
      %94 = sbr.rel (0) target = $region33
    $region32: #{decoder_forward.1} parent=1 // pred_region
      %s96 = ssub.s32 32, 32
      %97 = vsyncadd [#allocation11], %s96
      %s99 = sshll.u32 [#allocation12], 4
      %s100 = int_to_ptr.vmem [resolvable:$true] %s99
      %102 = dma.hbm_to_vmem [thread:$0]  %s7, 32, %s100, [#allocation11]
    $region33: #{decoder_forward.1} parent=1 // pred_fallthru
      _
    // Predicated region
    $region34: #{decoder_forward.1} parent=1 // pred_check
      _
    $region35: #{decoder_forward.1} parent=1 // pred_check_branch
      %104 = sbr.rel (0) target = $region37
    $region36: #{decoder_forward.1} parent=1 // pred_region
      %s106 = ssub.s32 4096, 4096
      %107 = vsyncadd [#allocation14], %s106
      %s108 = sshll.u32 [#allocation13], 4
      %s109 = int_to_ptr.vmem [resolvable:$true] %s108
      %114 = dma.hbm_to_vmem [thread:$0]  %s8, 4096, %s109, [#allocation14], 128, 128, 8
    $region37: #{decoder_forward.1} parent=1 // pred_fallthru
      _
    // Predicated region
    $region38: #{decoder_forward.1} parent=1 // pred_check
      _
    $region39: #{decoder_forward.1} parent=1 // pred_check_branch
      %116 = sbr.rel (0) target = $region41
    $region40: #{decoder_forward.1} parent=1 // pred_region
      %s118 = ssub.s32 32, 32
      %119 = vsyncadd [#allocation14], %s118
      %s121 = sshll.u32 [#allocation15], 4
      %s122 = int_to_ptr.vmem [resolvable:$true] %s121
      %124 = dma.hbm_to_vmem [thread:$0]  %s9, 32, %s122, [#allocation14]
    $region41: #{decoder_forward.1} parent=1 // pred_fallthru
      _
    // Predicated region
    $region42: #{decoder_forward.1} parent=1 // pred_check
      _
    $region43: #{decoder_forward.1} parent=1 // pred_check_branch
      %126 = sbr.rel (0) target = $region45
    $region44: #{decoder_forward.1} parent=1 // pred_region
      %s128 = ssub.s32 4096, 4096
      %129 = vsyncadd [#allocation17], %s128
      %s130 = sshll.u32 [#allocation16], 4
      %s131 = int_to_ptr.vmem [resolvable:$true] %s130
      %136 = dma.hbm_to_vmem [thread:$0]  %s10, 4096, %s131, [#allocation17], 128, 128, 8
    $region45: #{decoder_forward.1} parent=1 // pred_fallthru
      _
    // Predicated region
    $region46: #{decoder_forward.1} parent=1 // pred_check
      _
    $region47: #{decoder_forward.1} parent=1 // pred_check_branch
      %138 = sbr.rel (0) target = $region49
    $region48: #{decoder_forward.1} parent=1 // pred_region
      _
    $region49: #{decoder_forward.1} parent=1 // pred_fallthru
      _
    // Predicated region
    $region50: #{decoder_forward.1} parent=1 // pred_check
      _
    $region51: #{decoder_forward.1} parent=1 // pred_check_branch
      %140 = sbr.rel (0) target = $region53
    $region52: #{decoder_forward.1} parent=1 // pred_region
      %s142 = ssub.s32 4096, 4096
      %143 = vsyncadd [#allocation17], %s142
      %s144 = sshll.u32 [#allocation18], 4
      %s145 = int_to_ptr.vmem [resolvable:$true] %s144
      %150 = dma.hbm_to_vmem [thread:$0]  %s12, 4096, %s145, [#allocation17], 128, 128, 8
    $region53: #{decoder_forward.1} parent=1 // pred_fallthru
      _
    // Predicated region
    $region54: #{decoder_forward.1} parent=1 // pred_check
      _
    $region55: #{decoder_forward.1} parent=1 // pred_check_branch
      %152 = sbr.rel (0) target = $region57
    $region56: #{decoder_forward.1} parent=1 // pred_region
      _
    $region57: #{decoder_forward.1} parent=1 // pred_fallthru
      _
    // Predicated region
    $region58: #{decoder_forward.1} parent=1 // pred_check
      _
    $region59: #{decoder_forward.1} parent=1 // pred_check_branch
      %154 = sbr.rel (0) target = $region61
    $region60: #{decoder_forward.1} parent=1 // pred_region
      %s156 = ssub.s32 4096, 4096
      %157 = vsyncadd [#allocation20], %s156
      %s158 = sshll.u32 [#allocation19], 4
      %s159 = int_to_ptr.vmem [resolvable:$true] %s158
      %164 = dma.hbm_to_vmem [thread:$0]  %s14, 4096, %s159, [#allocation20], 128, 128, 8
    $region61: #{decoder_forward.1} parent=1 // pred_fallthru
      _
    // Predicated region
    $region62: #{decoder_forward.1} parent=1 // pred_check
      _
    $region63: #{decoder_forward.1} parent=1 // pred_check_branch
      %166 = sbr.rel (0) target = $region65
    $region64: #{decoder_forward.1} parent=1 // pred_region
      _
    $region65: #{decoder_forward.1} parent=1 // pred_fallthru
      _
    // Predicated region
    $region66: #{decoder_forward.1} parent=1 // pred_check
      _
    $region67: #{decoder_forward.1} parent=1 // pred_check_branch
      %168 = sbr.rel (0) target = $region69
    $region68: #{decoder_forward.1} parent=1 // pred_region
      %s170 = ssub.s32 12288, 12288
      %171 = vsyncadd [#allocation20], %s170
      %s172 = sshll.u32 [#allocation21], 4
      %s173 = int_to_ptr.vmem [resolvable:$true] %s172
      %178 = dma.hbm_to_vmem [thread:$0]  %s16, 12288, %s173, [#allocation20], 384, 384, 24
    $region69: #{decoder_forward.1} parent=1 // pred_fallthru
      _
    // Predicated region
    $region70: #{decoder_forward.1} parent=1 // pred_check
      _
    $region71: #{decoder_forward.1} parent=1 // pred_check_branch
      %180 = sbr.rel (0) target = $region73
    $region72: #{decoder_forward.1} parent=1 // pred_region
      %s182 = ssub.s32 96, 96
      %183 = vsyncadd [#allocation23], %s182
      %s185 = sshll.u32 [#allocation22], 4
      %s186 = int_to_ptr.vmem [resolvable:$true] %s185
      %188 = dma.hbm_to_vmem [thread:$0]  %s17, 96, %s186, [#allocation23]
    $region73: #{decoder_forward.1} parent=1 // pred_fallthru
      _
    // Predicated region
    $region74: #{decoder_forward.1} parent=1 // pred_check
      _
    $region75: #{decoder_forward.1} parent=1 // pred_check_branch
      %190 = sbr.rel (0) target = $region77
    $region76: #{decoder_forward.1} parent=1 // pred_region
      _
    $region77: #{decoder_forward.1} parent=1 // pred_fallthru
      _
    // Predicated region
    $region78: #{decoder_forward.1} parent=1 // pred_check
      _
    $region79: #{decoder_forward.1} parent=1 // pred_check_branch
      %192 = sbr.rel (0) target = $region81
    $region80: #{decoder_forward.1} parent=1 // pred_region
      %s194 = ssub.s32 16, 16
      %195 = vsyncadd [#allocation23], %s194
      %s197 = sshll.u32 [#allocation24], 4
      %s198 = int_to_ptr.vmem [resolvable:$true] %s197
      %200 = dma.hbm_to_vmem [thread:$0]  %s19, 16, %s198, [#allocation23]
    $region81: #{decoder_forward.1} parent=1 // pred_fallthru
      _
    // Predicated region
    $region82: #{decoder_forward.1} parent=1 // pred_check
      _
    $region83: #{decoder_forward.1} parent=1 // pred_check_branch
      %202 = sbr.rel (0) target = $region85
    $region84: #{decoder_forward.1} parent=1 // pred_region
      %203 = dma.done [#allocation5], 16
    $region85: #{decoder_forward.1} parent=1 // pred_fallthru
      _
    // Predicated region
    $region86: #{decoder_forward.1} parent=1 // pred_check
      _
    $region87: #{decoder_forward.1} parent=1 // pred_check_branch
      %205 = sbr.rel (0) target = $region89
    $region88: #{decoder_forward.1} parent=1 // pred_region
      %206 = dma.done [#allocation4], 8192
    $region89: #{decoder_forward.1} parent=1 // pred_fallthru
      _
    // Predicated region
    $region90: #{decoder_forward.1} parent=1 // pred_check
      _
    $region91: #{decoder_forward.1} parent=1 // pred_check_branch
      %208 = sbr.rel (0) target = $region93
    $region92: #{decoder_forward.1} parent=1 // pred_region
      %209 = dma.done [#allocation8], 32768
    $region93: #{decoder_forward.1} parent=1 // pred_fallthru
      _
    // Predicated region
    $region94: #{decoder_forward.1} parent=1 // pred_check
      _
    $region95: #{decoder_forward.1} parent=1 // pred_check_branch
      %211 = sbr.rel (0) target = $region97
    $region96: #{decoder_forward.1} parent=1 // pred_region
      %212 = dma.done [#allocation8], 64
    $region97: #{decoder_forward.1} parent=1 // pred_fallthru
      _
    // Predicated region
    $region98: #{decoder_forward.1} parent=1 // pred_check
      _
    $region99: #{decoder_forward.1} parent=1 // pred_check_branch
      %214 = sbr.rel (0) target = $region101
    $region100: #{decoder_forward.1} parent=1 // pred_region
      %215 = dma.done [#allocation11], 8192
    $region101: #{decoder_forward.1} parent=1 // pred_fallthru
      _
    // Predicated region
    $region102: #{decoder_forward.1} parent=1 // pred_check
      _
    $region103: #{decoder_forward.1} parent=1 // pred_check_branch
      %217 = sbr.rel (0) target = $region105
    $region104: #{decoder_forward.1} parent=1 // pred_region
      %218 = dma.done [#allocation11], 32
    $region105: #{decoder_forward.1} parent=1 // pred_fallthru
      _
    // Predicated region
    $region106: #{decoder_forward.1} parent=1 // pred_check
      _
    $region107: #{decoder_forward.1} parent=1 // pred_check_branch
      %220 = sbr.rel (0) target = $region109
    $region108: #{decoder_forward.1} parent=1 // pred_region
      %221 = dma.done [#allocation14], 4096
    $region109: #{decoder_forward.1} parent=1 // pred_fallthru
      _
    // Predicated region
    $region110: #{decoder_forward.1} parent=1 // pred_check
      _
    $region111: #{decoder_forward.1} parent=1 // pred_check_branch
      %223 = sbr.rel (0) target = $region113
    $region112: #{decoder_forward.1} parent=1 // pred_region
      %224 = dma.done [#allocation14], 32
    $region113: #{decoder_forward.1} parent=1 // pred_fallthru
      _
    // Predicated region
    $region114: #{decoder_forward.1} parent=1 // pred_check
      _
    $region115: #{decoder_forward.1} parent=1 // pred_check_branch
      %226 = sbr.rel (0) target = $region117
    $region116: #{decoder_forward.1} parent=1 // pred_region
      %227 = dma.done [#allocation17], 4096
    $region117: #{decoder_forward.1} parent=1 // pred_fallthru
      _
    // Predicated region
    $region118: #{decoder_forward.1} parent=1 // pred_check
      _
    $region119: #{decoder_forward.1} parent=1 // pred_check_branch
      %229 = sbr.rel (0) target = $region121
    $region120: #{decoder_forward.1} parent=1 // pred_region
      %230 = dma.done [#allocation17], 4096
    $region121: #{decoder_forward.1} parent=1 // pred_fallthru
      _
    // Predicated region
    $region122: #{decoder_forward.1} parent=1 // pred_check
      _
    $region123: #{decoder_forward.1} parent=1 // pred_check_branch
      %232 = sbr.rel (0) target = $region125
    $region124: #{decoder_forward.1} parent=1 // pred_region
      %233 = dma.done [#allocation20], 4096
    $region125: #{decoder_forward.1} parent=1 // pred_fallthru
      _
    // Predicated region
    $region126: #{decoder_forward.1} parent=1 // pred_check
      _
    $region127: #{decoder_forward.1} parent=1 // pred_check_branch
      %235 = sbr.rel (0) target = $region129
    $region128: #{decoder_forward.1} parent=1 // pred_region
      %236 = dma.done [#allocation20], 12288
    $region129: #{decoder_forward.1} parent=1 // pred_fallthru
      _
    // Predicated region
    $region130: #{decoder_forward.1} parent=1 // pred_check
      _
    $region131: #{decoder_forward.1} parent=1 // pred_check_branch
      %238 = sbr.rel (0) target = $region133
    $region132: #{decoder_forward.1} parent=1 // pred_region
      %239 = dma.done [#allocation23], 96
    $region133: #{decoder_forward.1} parent=1 // pred_fallthru
      _
    // Predicated region
    $region134: #{decoder_forward.1} parent=1 // pred_check
      _
    $region135: #{decoder_forward.1} parent=1 // pred_check_branch
      %241 = sbr.rel (0) target = $region137
    $region136: #{decoder_forward.1} parent=1 // pred_region
      %242 = dma.done [#allocation23], 16
    $region137: #{decoder_forward.1} parent=1 // pred_fallthru
      _
    %243 = sfence
    %s245 = sld [smem:[#allocation3]]
    %s246 = sld [smem:[#allocation3 + $0x1]]
    %s247 = sld [smem:[#allocation3 + $0x2]]
    %s248 = sld [smem:[#allocation3 + $0x3]]
    %s249 = sld [smem:[#allocation3 + $0x4]]
    %s250 = sld [smem:[#allocation3 + $0x5]]
    %p251 = scmp.eq.s32.totalorder 0, 0
    // Predicated region
    $region138: #{decoder_forward.1} parent=1 // pred_check
      %p252 = pneg %p251
    $region139: #{decoder_forward.1} parent=1 // pred_check_branch
      %254 = sbr.rel (%p252) target = $region141
    $region140: #{decoder_forward.1} parent=1 // pred_region
      %v255 = vld [vmem:[%s1] sm:$0xff]
      %v256 = vld [vmem:[#allocation6] sm:$0xff]
      %v257 = vld [vmem:[#allocation6 + $0x8] sm:$0xff]
      %v258 = vld [vmem:[#allocation6 + $0x10] sm:$0xff]
      %v259 = vld [vmem:[#allocation6 + $0x18] sm:$0xff]
      %v260 = vld [vmem:[#allocation6 + $0x20] sm:$0xff]
      %v261 = vld [vmem:[#allocation6 + $0x28] sm:$0xff]
      %v262 = vld [vmem:[#allocation6 + $0x30] sm:$0xff]
      %v263 = vld [vmem:[#allocation6 + $0x38] sm:$0xff]
      %v264 = vld [vmem:[#allocation6 + $0x40] sm:$0xff]
      %v265 = vld [vmem:[#allocation6 + $0x48] sm:$0xff]
      %v266 = vld [vmem:[#allocation6 + $0x50] sm:$0xff]
      %v267 = vld [vmem:[#allocation6 + $0x58] sm:$0xff]
      %v268 = vld [vmem:[#allocation6 + $0x60] sm:$0xff]
      %v269 = vld [vmem:[#allocation6 + $0x68] sm:$0xff]
      %v270 = vld [vmem:[#allocation6 + $0x70] sm:$0xff]
      %v271 = vld [vmem:[#allocation6 + $0x78] sm:$0xff]
      %v272 = vld [vmem:[#allocation6 + $0x80] sm:$0xff]
      %v273 = vld [vmem:[#allocation6 + $0x88] sm:$0xff]
      %v274 = vld [vmem:[#allocation6 + $0x90] sm:$0xff]
      %v275 = vld [vmem:[#allocation6 + $0x98] sm:$0xff]
      %v276 = vld [vmem:[#allocation6 + $0xa0] sm:$0xff]
      %v277 = vld [vmem:[#allocation6 + $0xa8] sm:$0xff]
      %v278 = vld [vmem:[#allocation6 + $0xb0] sm:$0xff]
      %v279 = vld [vmem:[#allocation6 + $0xb8] sm:$0xff]
      %v280 = vld [vmem:[#allocation6 + $0xc0] sm:$0xff]
      %v281 = vld [vmem:[#allocation6 + $0xc8] sm:$0xff]
      %v282 = vld [vmem:[#allocation6 + $0xd0] sm:$0xff]
      %v283 = vld [vmem:[#allocation6 + $0xd8] sm:$0xff]
      %v284 = vld [vmem:[#allocation6 + $0xe0] sm:$0xff]
      %v285 = vld [vmem:[#allocation6 + $0xe8] sm:$0xff]
      %v286 = vld [vmem:[#allocation6 + $0xf0] sm:$0xff]
      %v287 = vld [vmem:[#allocation6 + $0xf8] sm:$0xff]
      %v288 = vld [vmem:[#allocation6 + $0x100] sm:$0xff]
      %v289 = vld [vmem:[#allocation6 + $0x108] sm:$0xff]
      %v290 = vld [vmem:[#allocation6 + $0x110] sm:$0xff]
      %v291 = vld [vmem:[#allocation6 + $0x118] sm:$0xff]
      %v292 = vld [vmem:[#allocation6 + $0x120] sm:$0xff]
      %v293 = vld [vmem:[#allocation6 + $0x128] sm:$0xff]
      %v294 = vld [vmem:[#allocation6 + $0x130] sm:$0xff]
      %v295 = vld [vmem:[#allocation6 + $0x138] sm:$0xff]
      %v296 = vld [vmem:[#allocation6 + $0x140] sm:$0xff]
      %v297 = vld [vmem:[#allocation6 + $0x148] sm:$0xff]
      %v298 = vld [vmem:[#allocation6 + $0x150] sm:$0xff]
      %v299 = vld [vmem:[#allocation6 + $0x158] sm:$0xff]
      %v300 = vld [vmem:[#allocation6 + $0x160] sm:$0xff]
      %v301 = vld [vmem:[#allocation6 + $0x168] sm:$0xff]
      %v302 = vld [vmem:[#allocation6 + $0x170] sm:$0xff]
      %v303 = vld [vmem:[#allocation6 + $0x178] sm:$0xff]
      %v304 = vld [vmem:[#allocation6 + $0x180] sm:$0xff]
      %v305 = vld [vmem:[#allocation6 + $0x188] sm:$0xff]
      %v306 = vld [vmem:[#allocation6 + $0x190] sm:$0xff]
      %v307 = vld [vmem:[#allocation6 + $0x198] sm:$0xff]
      %v308 = vld [vmem:[#allocation6 + $0x1a0] sm:$0xff]
      %v309 = vld [vmem:[#allocation6 + $0x1a8] sm:$0xff]
      %v310 = vld [vmem:[#allocation6 + $0x1b0] sm:$0xff]
      %v311 = vld [vmem:[#allocation6 + $0x1b8] sm:$0xff]
      %v312 = vld [vmem:[#allocation6 + $0x1c0] sm:$0xff]
      %v313 = vld [vmem:[#allocation6 + $0x1c8] sm:$0xff]
      %v314 = vld [vmem:[#allocation6 + $0x1d0] sm:$0xff]
      %v315 = vld [vmem:[#allocation6 + $0x1d8] sm:$0xff]
      %v316 = vld [vmem:[#allocation6 + $0x1e0] sm:$0xff]
      %v317 = vld [vmem:[#allocation6 + $0x1e8] sm:$0xff]
      %v318 = vld [vmem:[#allocation6 + $0x1f0] sm:$0xff]
      %v319 = vld [vmem:[#allocation6 + $0x1f8] sm:$0xff]
      %v320 = vpack.c.bf16 %v255, %v255
      %v321 = vld [vmem:[%s3] sm:$0xff]
      %v323 = vlaneseq
      %v324 = vshrl.u32 %v323, 7
      %v325 = vsub.s32 0, %v324
      %v326 = vrot.slane %v321, %v325
      %v327 = vlaneseq
      %v328 = vshrl.u32 %v327, 7
      %v329 = vsub.s32 1, %v328
      %v330 = vrot.slane %v321, %v329
      %v331 = vlaneseq
      %v332 = vshrl.u32 %v331, 7
      %v333 = vsub.s32 2, %v332
      %v334 = vrot.slane %v321, %v333
      %v335 = vlaneseq
      %v336 = vshrl.u32 %v335, 7
      %v337 = vsub.s32 3, %v336
      %v338 = vrot.slane %v321, %v337
      %v339 = vlaneseq
      %v340 = vshrl.u32 %v339, 7
      %v341 = vsub.s32 4, %v340
      %v342 = vrot.slane %v321, %v341
      %v343 = vlaneseq
      %v344 = vshrl.u32 %v343, 7
      %v345 = vsub.s32 5, %v344
      %v346 = vrot.slane %v321, %v345
      %v347 = vlaneseq
      %v348 = vshrl.u32 %v347, 7
      %v349 = vsub.s32 6, %v348
      %v350 = vrot.slane %v321, %v349
      %v351 = vlaneseq
      %v352 = vshrl.u32 %v351, 7
      %v353 = vsub.s32 7, %v352
      %v354 = vrot.slane %v321, %v353
      %v427 = vunpack.c.l.b16 %v256
      %v428 = vunpack.c.h.b16 %v256
      %v429 = vunpack.c.l.b16 %v257
      %v430 = vunpack.c.h.b16 %v257
      %v431 = vunpack.c.l.b16 %v258
      %v432 = vunpack.c.h.b16 %v258
      %v433 = vunpack.c.l.b16 %v259
      %v434 = vunpack.c.h.b16 %v259
      %v435 = vunpack.c.l.b16 %v260
      %v436 = vunpack.c.h.b16 %v260
      %v437 = vunpack.c.l.b16 %v261
      %v438 = vunpack.c.h.b16 %v261
      %v439 = vunpack.c.l.b16 %v262
      %v440 = vunpack.c.h.b16 %v262
      %v441 = vunpack.c.l.b16 %v263
      %v442 = vunpack.c.h.b16 %v263
      %v443 = vunpack.c.l.b16 %v264
      %v444 = vunpack.c.h.b16 %v264
      %v445 = vunpack.c.l.b16 %v265
      %v446 = vunpack.c.h.b16 %v265
      %v447 = vunpack.c.l.b16 %v266
      %v448 = vunpack.c.h.b16 %v266
      %v449 = vunpack.c.l.b16 %v267
      %v450 = vunpack.c.h.b16 %v267
      %v451 = vunpack.c.l.b16 %v268
      %v452 = vunpack.c.h.b16 %v268
      %v453 = vunpack.c.l.b16 %v269
      %v454 = vunpack.c.h.b16 %v269
      %v455 = vunpack.c.l.b16 %v270
      %v456 = vunpack.c.h.b16 %v270
      %v457 = vunpack.c.l.b16 %v271
      %v458 = vunpack.c.h.b16 %v271
      %v459 = vunpack.c.l.b16 %v272
      %v460 = vunpack.c.h.b16 %v272
      %v461 = vunpack.c.l.b16 %v273
      %v462 = vunpack.c.h.b16 %v273
      %v463 = vunpack.c.l.b16 %v274
      %v464 = vunpack.c.h.b16 %v274
      %v465 = vunpack.c.l.b16 %v275
      %v466 = vunpack.c.h.b16 %v275
      %v467 = vunpack.c.l.b16 %v276
      %v468 = vunpack.c.h.b16 %v276
      %v469 = vunpack.c.l.b16 %v277
      %v470 = vunpack.c.h.b16 %v277
      %v471 = vunpack.c.l.b16 %v278
      %v472 = vunpack.c.h.b16 %v278
      %v473 = vunpack.c.l.b16 %v279
      %v474 = vunpack.c.h.b16 %v279
      %v475 = vunpack.c.l.b16 %v280
      %v476 = vunpack.c.h.b16 %v280
      %v477 = vunpack.c.l.b16 %v281
      %v478 = vunpack.c.h.b16 %v281
      %v479 = vunpack.c.l.b16 %v282
      %v480 = vunpack.c.h.b16 %v282
      %v481 = vunpack.c.l.b16 %v283
      %v482 = vunpack.c.h.b16 %v283
      %v483 = vunpack.c.l.b16 %v284
      %v484 = vunpack.c.h.b16 %v284
      %v485 = vunpack.c.l.b16 %v285
      %v486 = vunpack.c.h.b16 %v285
      %v487 = vunpack.c.l.b16 %v286
      %v488 = vunpack.c.h.b16 %v286
      %v489 = vunpack.c.l.b16 %v287
      %v490 = vunpack.c.h.b16 %v287
      %v491 = vunpack.c.l.b16 %v288
      %v492 = vunpack.c.h.b16 %v288
      %v493 = vunpack.c.l.b16 %v289
      %v494 = vunpack.c.h.b16 %v289
      %v495 = vunpack.c.l.b16 %v290
      %v496 = vunpack.c.h.b16 %v290
      %v497 = vunpack.c.l.b16 %v291
      %v498 = vunpack.c.h.b16 %v291
      %v499 = vunpack.c.l.b16 %v292
      %v500 = vunpack.c.h.b16 %v292
      %v501 = vunpack.c.l.b16 %v293
      %v502 = vunpack.c.h.b16 %v293
      %v503 = vunpack.c.l.b16 %v294
      %v504 = vunpack.c.h.b16 %v294
      %v505 = vunpack.c.l.b16 %v295
      %v506 = vunpack.c.h.b16 %v295
      %v507 = vunpack.c.l.b16 %v296
      %v508 = vunpack.c.h.b16 %v296
      %v509 = vunpack.c.l.b16 %v297
      %v510 = vunpack.c.h.b16 %v297
      %v511 = vunpack.c.l.b16 %v298
      %v512 = vunpack.c.h.b16 %v298
      %v513 = vunpack.c.l.b16 %v299
      %v514 = vunpack.c.h.b16 %v299
      %v515 = vunpack.c.l.b16 %v300
      %v516 = vunpack.c.h.b16 %v300
      %v517 = vunpack.c.l.b16 %v301
      %v518 = vunpack.c.h.b16 %v301
      %v519 = vunpack.c.l.b16 %v302
      %v520 = vunpack.c.h.b16 %v302
      %v521 = vunpack.c.l.b16 %v303
      %v522 = vunpack.c.h.b16 %v303
      %v523 = vunpack.c.l.b16 %v304
      %v524 = vunpack.c.h.b16 %v304
      %v525 = vunpack.c.l.b16 %v305
      %v526 = vunpack.c.h.b16 %v305
      %v527 = vunpack.c.l.b16 %v306
      %v528 = vunpack.c.h.b16 %v306
      %v529 = vunpack.c.l.b16 %v307
      %v530 = vunpack.c.h.b16 %v307
      %v531 = vunpack.c.l.b16 %v308
      %v532 = vunpack.c.h.b16 %v308
      %v533 = vunpack.c.l.b16 %v309
      %v534 = vunpack.c.h.b16 %v309
      %v535 = vunpack.c.l.b16 %v310
      %v536 = vunpack.c.h.b16 %v310
      %v537 = vunpack.c.l.b16 %v311
      %v538 = vunpack.c.h.b16 %v311
      %v539 = vunpack.c.l.b16 %v312
      %v540 = vunpack.c.h.b16 %v312
      %v541 = vunpack.c.l.b16 %v313
      %v542 = vunpack.c.h.b16 %v313
      %v543 = vunpack.c.l.b16 %v314
      %v544 = vunpack.c.h.b16 %v314
      %v545 = vunpack.c.l.b16 %v315
      %v546 = vunpack.c.h.b16 %v315
      %v547 = vunpack.c.l.b16 %v316
      %v548 = vunpack.c.h.b16 %v316
      %v549 = vunpack.c.l.b16 %v317
      %v550 = vunpack.c.h.b16 %v317
      %v551 = vunpack.c.l.b16 %v318
      %v552 = vunpack.c.h.b16 %v318
      %v553 = vunpack.c.l.b16 %v319
      %v554 = vunpack.c.h.b16 %v319
      %v555 = vpack.c.b16 %v435, %v427
      %v556 = vpack.c.b16 %v436, %v428
      %v557 = vpack.c.b16 %v437, %v429
      %v558 = vpack.c.b16 %v438, %v430
      %v559 = vpack.c.b16 %v439, %v431
      %v560 = vpack.c.b16 %v440, %v432
      %v561 = vpack.c.b16 %v441, %v433
      %v562 = vpack.c.b16 %v442, %v434
      %v563 = vpack.c.b16 %v451, %v443
      %v564 = vpack.c.b16 %v452, %v444
      %v565 = vpack.c.b16 %v453, %v445
      %v566 = vpack.c.b16 %v454, %v446
      %v567 = vpack.c.b16 %v455, %v447
      %v568 = vpack.c.b16 %v456, %v448
      %v569 = vpack.c.b16 %v457, %v449
      %v570 = vpack.c.b16 %v458, %v450
      %v571 = vpack.c.b16 %v467, %v459
      %v572 = vpack.c.b16 %v468, %v460
      %v573 = vpack.c.b16 %v469, %v461
      %v574 = vpack.c.b16 %v470, %v462
      %v575 = vpack.c.b16 %v471, %v463
      %v576 = vpack.c.b16 %v472, %v464
      %v577 = vpack.c.b16 %v473, %v465
      %v578 = vpack.c.b16 %v474, %v466
      %v579 = vpack.c.b16 %v483, %v475
      %v580 = vpack.c.b16 %v484, %v476
      %v581 = vpack.c.b16 %v485, %v477
      %v582 = vpack.c.b16 %v486, %v478
      %v583 = vpack.c.b16 %v487, %v479
      %v584 = vpack.c.b16 %v488, %v480
      %v585 = vpack.c.b16 %v489, %v481
      %v586 = vpack.c.b16 %v490, %v482
      %v587 = vpack.c.b16 %v499, %v491
      %v588 = vpack.c.b16 %v500, %v492
      %v589 = vpack.c.b16 %v501, %v493
      %v590 = vpack.c.b16 %v502, %v494
      %v591 = vpack.c.b16 %v503, %v495
      %v592 = vpack.c.b16 %v504, %v496
      %v593 = vpack.c.b16 %v505, %v497
      %v594 = vpack.c.b16 %v506, %v498
      %v595 = vpack.c.b16 %v515, %v507
      %v596 = vpack.c.b16 %v516, %v508
      %v597 = vpack.c.b16 %v517, %v509
      %v598 = vpack.c.b16 %v518, %v510
      %v599 = vpack.c.b16 %v519, %v511
      %v600 = vpack.c.b16 %v520, %v512
      %v601 = vpack.c.b16 %v521, %v513
      %v602 = vpack.c.b16 %v522, %v514
      %v603 = vpack.c.b16 %v531, %v523
      %v604 = vpack.c.b16 %v532, %v524
      %v605 = vpack.c.b16 %v533, %v525
      %v606 = vpack.c.b16 %v534, %v526
      %v607 = vpack.c.b16 %v535, %v527
      %v608 = vpack.c.b16 %v536, %v528
      %v609 = vpack.c.b16 %v537, %v529
      %v610 = vpack.c.b16 %v538, %v530
      %v611 = vpack.c.b16 %v547, %v539
      %v612 = vpack.c.b16 %v548, %v540
      %v613 = vpack.c.b16 %v549, %v541
      %v614 = vpack.c.b16 %v550, %v542
      %v615 = vpack.c.b16 %v551, %v543
      %v616 = vpack.c.b16 %v552, %v544
      %v617 = vpack.c.b16 %v553, %v545
      %v618 = vpack.c.b16 %v554, %v546
      %683 = vmatprep.subr.bf16.mxu0 %v556
      %684 = vmatpush1.bf16.msra.mxu0 %v555
      %685 = vmatprep.subr.bf16.mxu0 %v564
      %686 = vmatpush1.bf16.msra.mxu0 %v563
      %687 = vmatprep.subr.bf16.mxu0 %v572
      %688 = vmatpush1.bf16.msra.mxu0 %v571
      %689 = vmatprep.subr.bf16.mxu0 %v580
      %690 = vmatpush1.bf16.msra.mxu0 %v579
      %691 = vmatprep.subr.bf16.mxu0 %v588
      %692 = vmatpush1.bf16.msra.mxu0 %v587
      %693 = vmatprep.subr.bf16.mxu0 %v596
      %694 = vmatpush1.bf16.msra.mxu0 %v595
      %695 = vmatprep.subr.bf16.mxu0 %v604
      %696 = vmatpush1.bf16.msra.mxu0 %v603
      %697 = vmatprep.subr.bf16.mxu0 %v612
      %698 = vmatpush1.bf16.msra.mxu0 %v611
      %699 = vmatprep.subr.bf16.mxu0 0
      %700 = vmatpush1.bf16.msra.mxu0 0
      %701 = vmatprep.subr.bf16.mxu0 0
      %702 = vmatpush1.bf16.msra.mxu0 0
      %703 = vmatprep.subr.bf16.mxu0 0
      %704 = vmatpush1.bf16.msra.mxu0 0
      %705 = vmatprep.subr.bf16.mxu0 0
      %706 = vmatpush1.bf16.msra.mxu0 0
      %707 = vmatprep.subr.bf16.mxu0 0
      %708 = vmatpush1.bf16.msra.mxu0 0
      %709 = vmatprep.subr.bf16.mxu0 0
      %710 = vmatpush1.bf16.msra.mxu0 0
      %711 = vmatprep.subr.bf16.mxu0 0
      %712 = vmatpush1.bf16.msra.mxu0 0
      %713 = vmatprep.subr.bf16.mxu0 0
      %714 = vmatpush1.bf16.msra.mxu0 0
      %715 = vmatprep.mubr.bf16.mxu0 0
      %716 = vmatmul.mubr.bf16.gmra.mrb[0].mxu0 %v320
      %v717 = vpop.f32.mrb[0].mxu0
      %v718 = vadd.f32 %v326, %v717
      %v719 = vpop.f32.mrb[0].mxu0
      %v720 = vadd.f32 %v330, %v719
      %v721 = vpop.f32.mrb[0].mxu0
      %v722 = vpop.f32.mrb[0].mxu0
      %723 = vdwg.mxu0
      %724 = vmatprep.subr.bf16.mxu0 %v558
      %725 = vmatpush1.bf16.msra.mxu0 %v557
      %726 = vmatprep.subr.bf16.mxu0 %v566
      %727 = vmatpush1.bf16.msra.mxu0 %v565
      %728 = vmatprep.subr.bf16.mxu0 %v574
      %729 = vmatpush1.bf16.msra.mxu0 %v573
      %730 = vmatprep.subr.bf16.mxu0 %v582
      %731 = vmatpush1.bf16.msra.mxu0 %v581
      %732 = vmatprep.subr.bf16.mxu0 %v590
      %733 = vmatpush1.bf16.msra.mxu0 %v589
      %734 = vmatprep.subr.bf16.mxu0 %v598
      %735 = vmatpush1.bf16.msra.mxu0 %v597
      %736 = vmatprep.subr.bf16.mxu0 %v606
      %737 = vmatpush1.bf16.msra.mxu0 %v605
      %738 = vmatprep.subr.bf16.mxu0 %v614
      %739 = vmatpush1.bf16.msra.mxu0 %v613
      %740 = vmatprep.subr.bf16.mxu0 0
      %741 = vmatpush1.bf16.msra.mxu0 0
      %742 = vmatprep.subr.bf16.mxu0 0
      %743 = vmatpush1.bf16.msra.mxu0 0
      %744 = vmatprep.subr.bf16.mxu0 0
      %745 = vmatpush1.bf16.msra.mxu0 0
      %746 = vmatprep.subr.bf16.mxu0 0
      %747 = vmatpush1.bf16.msra.mxu0 0
      %748 = vmatprep.subr.bf16.mxu0 0
      %749 = vmatpush1.bf16.msra.mxu0 0
      %750 = vmatprep.subr.bf16.mxu0 0
      %751 = vmatpush1.bf16.msra.mxu0 0
      %752 = vmatprep.subr.bf16.mxu0 0
      %753 = vmatpush1.bf16.msra.mxu0 0
      %754 = vmatprep.subr.bf16.mxu0 0
      %755 = vmatpush1.bf16.msra.mxu0 0
      %756 = vmatprep.mubr.bf16.mxu0 0
      %757 = vmatmul.mubr.bf16.gmra.mrb[0].mxu0 %v320
      %v758 = vpop.f32.mrb[0].mxu0
      %v759 = vadd.f32 %v334, %v758
      %v760 = vpop.f32.mrb[0].mxu0
      %v761 = vadd.f32 %v338, %v760
      %v762 = vpop.f32.mrb[0].mxu0
      %v763 = vpop.f32.mrb[0].mxu0
      %764 = vdwg.mxu0
      %765 = vmatprep.subr.bf16.mxu0 %v560
      %766 = vmatpush1.bf16.msra.mxu0 %v559
      %767 = vmatprep.subr.bf16.mxu0 %v568
      %768 = vmatpush1.bf16.msra.mxu0 %v567
      %769 = vmatprep.subr.bf16.mxu0 %v576
      %770 = vmatpush1.bf16.msra.mxu0 %v575
      %771 = vmatprep.subr.bf16.mxu0 %v584
      %772 = vmatpush1.bf16.msra.mxu0 %v583
      %773 = vmatprep.subr.bf16.mxu0 %v592
      %774 = vmatpush1.bf16.msra.mxu0 %v591
      %775 = vmatprep.subr.bf16.mxu0 %v600
      %776 = vmatpush1.bf16.msra.mxu0 %v599
      %777 = vmatprep.subr.bf16.mxu0 %v608
      %778 = vmatpush1.bf16.msra.mxu0 %v607
      %779 = vmatprep.subr.bf16.mxu0 %v616
      %780 = vmatpush1.bf16.msra.mxu0 %v615
      %781 = vmatprep.subr.bf16.mxu0 0
      %782 = vmatpush1.bf16.msra.mxu0 0
      %783 = vmatprep.subr.bf16.mxu0 0
      %784 = vmatpush1.bf16.msra.mxu0 0
      %785 = vmatprep.subr.bf16.mxu0 0
      %786 = vmatpush1.bf16.msra.mxu0 0
      %787 = vmatprep.subr.bf16.mxu0 0
      %788 = vmatpush1.bf16.msra.mxu0 0
      %789 = vmatprep.subr.bf16.mxu0 0
      %790 = vmatpush1.bf16.msra.mxu0 0
      %791 = vmatprep.subr.bf16.mxu0 0
      %792 = vmatpush1.bf16.msra.mxu0 0
      %793 = vmatprep.subr.bf16.mxu0 0
      %794 = vmatpush1.bf16.msra.mxu0 0
      %795 = vmatprep.subr.bf16.mxu0 0
      %796 = vmatpush1.bf16.msra.mxu0 0
      %797 = vmatprep.mubr.bf16.mxu0 0
      %798 = vmatmul.mubr.bf16.gmra.mrb[0].mxu0 %v320
      %v799 = vpop.f32.mrb[0].mxu0
      %v800 = vadd.f32 %v342, %v799
      %v801 = vpop.f32.mrb[0].mxu0
      %v802 = vadd.f32 %v346, %v801
      %v803 = vpop.f32.mrb[0].mxu0
      %v804 = vpop.f32.mrb[0].mxu0
      %805 = vdwg.mxu0
      %806 = vmatprep.subr.bf16.mxu0 %v562
      %807 = vmatpush1.bf16.msra.mxu0 %v561
      %808 = vmatprep.subr.bf16.mxu0 %v570
      %809 = vmatpush1.bf16.msra.mxu0 %v569
      %810 = vmatprep.subr.bf16.mxu0 %v578
      %811 = vmatpush1.bf16.msra.mxu0 %v577
      %812 = vmatprep.subr.bf16.mxu0 %v586
      %813 = vmatpush1.bf16.msra.mxu0 %v585
      %814 = vmatprep.subr.bf16.mxu0 %v594
      %815 = vmatpush1.bf16.msra.mxu0 %v593
      %816 = vmatprep.subr.bf16.mxu0 %v602
      %817 = vmatpush1.bf16.msra.mxu0 %v601
      %818 = vmatprep.subr.bf16.mxu0 %v610
      %819 = vmatpush1.bf16.msra.mxu0 %v609
      %820 = vmatprep.subr.bf16.mxu0 %v618
      %821 = vmatpush1.bf16.msra.mxu0 %v617
      %822 = vmatprep.subr.bf16.mxu0 0
      %823 = vmatpush1.bf16.msra.mxu0 0
      %824 = vmatprep.subr.bf16.mxu0 0
      %825 = vmatpush1.bf16.msra.mxu0 0
      %826 = vmatprep.subr.bf16.mxu0 0
      %827 = vmatpush1.bf16.msra.mxu0 0
      %828 = vmatprep.subr.bf16.mxu0 0
      %829 = vmatpush1.bf16.msra.mxu0 0
      %830 = vmatprep.subr.bf16.mxu0 0
      %831 = vmatpush1.bf16.msra.mxu0 0
      %832 = vmatprep.subr.bf16.mxu0 0
      %833 = vmatpush1.bf16.msra.mxu0 0
      %834 = vmatprep.subr.bf16.mxu0 0
      %835 = vmatpush1.bf16.msra.mxu0 0
      %836 = vmatprep.subr.bf16.mxu0 0
      %837 = vmatpush1.bf16.msra.mxu0 0
      %838 = vmatprep.mubr.bf16.mxu0 0
      %839 = vmatmul.mubr.bf16.gmra.mrb[0].mxu0 %v320
      %v840 = vpop.f32.mrb[0].mxu0
      %v841 = vadd.f32 %v350, %v840
      %v842 = vpop.f32.mrb[0].mxu0
      %v843 = vadd.f32 %v354, %v842
      %v844 = vpop.f32.mrb[0].mxu0
      %v845 = vpop.f32.mrb[0].mxu0
      %846 = vdwg.mxu0
      %vm847 = vcmp.gt.f32.partialorder %v718, 0.0
      %vm848 = vcmp.gt.f32.partialorder %v720, 0.0
      %vm849 = vcmp.gt.f32.partialorder %v759, 0.0
      %vm850 = vcmp.gt.f32.partialorder %v761, 0.0
      %vm851 = vcmp.gt.f32.partialorder %v800, 0.0
      %vm852 = vcmp.gt.f32.partialorder %v802, 0.0
      %vm853 = vcmp.gt.f32.partialorder %v841, 0.0
      %vm854 = vcmp.gt.f32.partialorder %v843, 0.0
      %v855 = vstv %s245
      %v856 = vmul.f32 %v855, %v718
      %v857 = vmul.f32 %v855, %v720
      %v858 = vmul.f32 %v855, %v759
      %v859 = vmul.f32 %v855, %v761
      %v860 = vmul.f32 %v855, %v800
      %v861 = vmul.f32 %v855, %v802
      %v862 = vmul.f32 %v855, %v841
      %v863 = vmul.f32 %v855, %v843
      %v864 = vsel %vm847, %v718, %v856
      %v865 = vsel %vm848, %v720, %v857
      %v866 = vsel %vm849, %v759, %v858
      %v867 = vsel %vm850, %v761, %v859
      %v868 = vsel %vm851, %v800, %v860
      %v869 = vsel %vm852, %v802, %v861
      %v870 = vsel %vm853, %v841, %v862
      %v871 = vsel %vm854, %v843, %v863
      %v872 = vld [vmem:[#allocation7] sm:$0xff]
      %v873 = vld [vmem:[#allocation7 + $0x8] sm:$0xff]
      %v874 = vld [vmem:[#allocation7 + $0x10] sm:$0xff]
      %v875 = vld [vmem:[#allocation7 + $0x18] sm:$0xff]
      %v876 = vld [vmem:[#allocation7 + $0x20] sm:$0xff]
      %v877 = vld [vmem:[#allocation7 + $0x28] sm:$0xff]
      %v878 = vld [vmem:[#allocation7 + $0x30] sm:$0xff]
      %v879 = vld [vmem:[#allocation7 + $0x38] sm:$0xff]
      %v880 = vld [vmem:[#allocation7 + $0x40] sm:$0xff]
      %v881 = vld [vmem:[#allocation7 + $0x48] sm:$0xff]
      %v882 = vld [vmem:[#allocation7 + $0x50] sm:$0xff]
      %v883 = vld [vmem:[#allocation7 + $0x58] sm:$0xff]
      %v884 = vld [vmem:[#allocation7 + $0x60] sm:$0xff]
      %v885 = vld [vmem:[#allocation7 + $0x68] sm:$0xff]
      %v886 = vld [vmem:[#allocation7 + $0x70] sm:$0xff]
      %v887 = vld [vmem:[#allocation7 + $0x78] sm:$0xff]
      %v888 = vld [vmem:[#allocation7 + $0x80] sm:$0xff]
      %v889 = vld [vmem:[#allocation7 + $0x88] sm:$0xff]
      %v890 = vld [vmem:[#allocation7 + $0x90] sm:$0xff]
      %v891 = vld [vmem:[#allocation7 + $0x98] sm:$0xff]
      %v892 = vld [vmem:[#allocation7 + $0xa0] sm:$0xff]
      %v893 = vld [vmem:[#allocation7 + $0xa8] sm:$0xff]
      %v894 = vld [vmem:[#allocation7 + $0xb0] sm:$0xff]
      %v895 = vld [vmem:[#allocation7 + $0xb8] sm:$0xff]
      %v896 = vld [vmem:[#allocation7 + $0xc0] sm:$0xff]
      %v897 = vld [vmem:[#allocation7 + $0xc8] sm:$0xff]
      %v898 = vld [vmem:[#allocation7 + $0xd0] sm:$0xff]
      %v899 = vld [vmem:[#allocation7 + $0xd8] sm:$0xff]
      %v900 = vld [vmem:[#allocation7 + $0xe0] sm:$0xff]
      %v901 = vld [vmem:[#allocation7 + $0xe8] sm:$0xff]
      %v902 = vld [vmem:[#allocation7 + $0xf0] sm:$0xff]
      %v903 = vld [vmem:[#allocation7 + $0xf8] sm:$0xff]
      %v904 = vld [vmem:[#allocation7 + $0x100] sm:$0xff]
      %v905 = vld [vmem:[#allocation7 + $0x108] sm:$0xff]
      %v906 = vld [vmem:[#allocation7 + $0x110] sm:$0xff]
      %v907 = vld [vmem:[#allocation7 + $0x118] sm:$0xff]
      %v908 = vld [vmem:[#allocation7 + $0x120] sm:$0xff]
      %v909 = vld [vmem:[#allocation7 + $0x128] sm:$0xff]
      %v910 = vld [vmem:[#allocation7 + $0x130] sm:$0xff]
      %v911 = vld [vmem:[#allocation7 + $0x138] sm:$0xff]
      %v912 = vld [vmem:[#allocation7 + $0x140] sm:$0xff]
      %v913 = vld [vmem:[#allocation7 + $0x148] sm:$0xff]
      %v914 = vld [vmem:[#allocation7 + $0x150] sm:$0xff]
      %v915 = vld [vmem:[#allocation7 + $0x158] sm:$0xff]
      %v916 = vld [vmem:[#allocation7 + $0x160] sm:$0xff]
      %v917 = vld [vmem:[#allocation7 + $0x168] sm:$0xff]
      %v918 = vld [vmem:[#allocation7 + $0x170] sm:$0xff]
      %v919 = vld [vmem:[#allocation7 + $0x178] sm:$0xff]
      %v920 = vld [vmem:[#allocation7 + $0x180] sm:$0xff]
      %v921 = vld [vmem:[#allocation7 + $0x188] sm:$0xff]
      %v922 = vld [vmem:[#allocation7 + $0x190] sm:$0xff]
      %v923 = vld [vmem:[#allocation7 + $0x198] sm:$0xff]
      %v924 = vld [vmem:[#allocation7 + $0x1a0] sm:$0xff]
      %v925 = vld [vmem:[#allocation7 + $0x1a8] sm:$0xff]
      %v926 = vld [vmem:[#allocation7 + $0x1b0] sm:$0xff]
      %v927 = vld [vmem:[#allocation7 + $0x1b8] sm:$0xff]
      %v928 = vld [vmem:[#allocation7 + $0x1c0] sm:$0xff]
      %v929 = vld [vmem:[#allocation7 + $0x1c8] sm:$0xff]
      %v930 = vld [vmem:[#allocation7 + $0x1d0] sm:$0xff]
      %v931 = vld [vmem:[#allocation7 + $0x1d8] sm:$0xff]
      %v932 = vld [vmem:[#allocation7 + $0x1e0] sm:$0xff]
      %v933 = vld [vmem:[#allocation7 + $0x1e8] sm:$0xff]
      %v934 = vld [vmem:[#allocation7 + $0x1f0] sm:$0xff]
      %v935 = vld [vmem:[#allocation7 + $0x1f8] sm:$0xff]
      %v936 = vld [vmem:[#allocation7 + $0x200] sm:$0xff]
      %v937 = vld [vmem:[#allocation7 + $0x208] sm:$0xff]
      %v938 = vld [vmem:[#allocation7 + $0x210] sm:$0xff]
      %v939 = vld [vmem:[#allocation7 + $0x218] sm:$0xff]
      %v940 = vld [vmem:[#allocation7 + $0x220] sm:$0xff]
      %v941 = vld [vmem:[#allocation7 + $0x228] sm:$0xff]
      %v942 = vld [vmem:[#allocation7 + $0x230] sm:$0xff]
      %v943 = vld [vmem:[#allocation7 + $0x238] sm:$0xff]
      %v944 = vld [vmem:[#allocation7 + $0x240] sm:$0xff]
      %v945 = vld [vmem:[#allocation7 + $0x248] sm:$0xff]
      %v946 = vld [vmem:[#allocation7 + $0x250] sm:$0xff]
      %v947 = vld [vmem:[#allocation7 + $0x258] sm:$0xff]
      %v948 = vld [vmem:[#allocation7 + $0x260] sm:$0xff]
      %v949 = vld [vmem:[#allocation7 + $0x268] sm:$0xff]
      %v950 = vld [vmem:[#allocation7 + $0x270] sm:$0xff]
      %v951 = vld [vmem:[#allocation7 + $0x278] sm:$0xff]
      %v952 = vld [vmem:[#allocation7 + $0x280] sm:$0xff]
      %v953 = vld [vmem:[#allocation7 + $0x288] sm:$0xff]
      %v954 = vld [vmem:[#allocation7 + $0x290] sm:$0xff]
      %v955 = vld [vmem:[#allocation7 + $0x298] sm:$0xff]
      %v956 = vld [vmem:[#allocation7 + $0x2a0] sm:$0xff]
      %v957 = vld [vmem:[#allocation7 + $0x2a8] sm:$0xff]
      %v958 = vld [vmem:[#allocation7 + $0x2b0] sm:$0xff]
      %v959 = vld [vmem:[#allocation7 + $0x2b8] sm:$0xff]
      %v960 = vld [vmem:[#allocation7 + $0x2c0] sm:$0xff]
      %v961 = vld [vmem:[#allocation7 + $0x2c8] sm:$0xff]
      %v962 = vld [vmem:[#allocation7 + $0x2d0] sm:$0xff]
      %v963 = vld [vmem:[#allocation7 + $0x2d8] sm:$0xff]
      %v964 = vld [vmem:[#allocation7 + $0x2e0] sm:$0xff]
      %v965 = vld [vmem:[#allocation7 + $0x2e8] sm:$0xff]
      %v966 = vld [vmem:[#allocation7 + $0x2f0] sm:$0xff]
      %v967 = vld [vmem:[#allocation7 + $0x2f8] sm:$0xff]
      %v968 = vld [vmem:[#allocation7 + $0x300] sm:$0xff]
      %v969 = vld [vmem:[#allocation7 + $0x308] sm:$0xff]
      %v970 = vld [vmem:[#allocation7 + $0x310] sm:$0xff]
      %v971 = vld [vmem:[#allocation7 + $0x318] sm:$0xff]
      %v972 = vld [vmem:[#allocation7 + $0x320] sm:$0xff]
      %v973 = vld [vmem:[#allocation7 + $0x328] sm:$0xff]
      %v974 = vld [vmem:[#allocation7 + $0x330] sm:$0xff]
      %v975 = vld [vmem:[#allocation7 + $0x338] sm:$0xff]
      %v976 = vld [vmem:[#allocation7 + $0x340] sm:$0xff]
      %v977 = vld [vmem:[#allocation7 + $0x348] sm:$0xff]
      %v978 = vld [vmem:[#allocation7 + $0x350] sm:$0xff]
      %v979 = vld [vmem:[#allocation7 + $0x358] sm:$0xff]
      %v980 = vld [vmem:[#allocation7 + $0x360] sm:$0xff]
      %v981 = vld [vmem:[#allocation7 + $0x368] sm:$0xff]
      %v982 = vld [vmem:[#allocation7 + $0x370] sm:$0xff]
      %v983 = vld [vmem:[#allocation7 + $0x378] sm:$0xff]
      %v984 = vld [vmem:[#allocation7 + $0x380] sm:$0xff]
      %v985 = vld [vmem:[#allocation7 + $0x388] sm:$0xff]
      %v986 = vld [vmem:[#allocation7 + $0x390] sm:$0xff]
      %v987 = vld [vmem:[#allocation7 + $0x398] sm:$0xff]
      %v988 = vld [vmem:[#allocation7 + $0x3a0] sm:$0xff]
      %v989 = vld [vmem:[#allocation7 + $0x3a8] sm:$0xff]
      %v990 = vld [vmem:[#allocation7 + $0x3b0] sm:$0xff]
      %v991 = vld [vmem:[#allocation7 + $0x3b8] sm:$0xff]
      %v992 = vld [vmem:[#allocation7 + $0x3c0] sm:$0xff]
      %v993 = vld [vmem:[#allocation7 + $0x3c8] sm:$0xff]
      %v994 = vld [vmem:[#allocation7 + $0x3d0] sm:$0xff]
      %v995 = vld [vmem:[#allocation7 + $0x3d8] sm:$0xff]
      %v996 = vld [vmem:[#allocation7 + $0x3e0] sm:$0xff]
      %v997 = vld [vmem:[#allocation7 + $0x3e8] sm:$0xff]
      %v998 = vld [vmem:[#allocation7 + $0x3f0] sm:$0xff]
      %v999 = vld [vmem:[#allocation7 + $0x3f8] sm:$0xff]
      %v1000 = vld [vmem:[#allocation7 + $0x400] sm:$0xff]
      %v1001 = vld [vmem:[#allocation7 + $0x408] sm:$0xff]
      %v1002 = vld [vmem:[#allocation7 + $0x410] sm:$0xff]
      %v1003 = vld [vmem:[#allocation7 + $0x418] sm:$0xff]
      %v1004 = vld [vmem:[#allocation7 + $0x420] sm:$0xff]
      %v1005 = vld [vmem:[#allocation7 + $0x428] sm:$0xff]
      %v1006 = vld [vmem:[#allocation7 + $0x430] sm:$0xff]
      %v1007 = vld [vmem:[#allocation7 + $0x438] sm:$0xff]
      %v1008 = vld [vmem:[#allocation7 + $0x440] sm:$0xff]
      %v1009 = vld [vmem:[#allocation7 + $0x448] sm:$0xff]
      %v1010 = vld [vmem:[#allocation7 + $0x450] sm:$0xff]
      %v1011 = vld [vmem:[#allocation7 + $0x458] sm:$0xff]
      %v1012 = vld [vmem:[#allocation7 + $0x460] sm:$0xff]
      %v1013 = vld [vmem:[#allocation7 + $0x468] sm:$0xff]
      %v1014 = vld [vmem:[#allocation7 + $0x470] sm:$0xff]
      %v1015 = vld [vmem:[#allocation7 + $0x478] sm:$0xff]
      %v1016 = vld [vmem:[#allocation7 + $0x480] sm:$0xff]
      %v1017 = vld [vmem:[#allocation7 + $0x488] sm:$0xff]
      %v1018 = vld [vmem:[#allocation7 + $0x490] sm:$0xff]
      %v1019 = vld [vmem:[#allocation7 + $0x498] sm:$0xff]
      %v1020 = vld [vmem:[#allocation7 + $0x4a0] sm:$0xff]
      %v1021 = vld [vmem:[#allocation7 + $0x4a8] sm:$0xff]
      %v1022 = vld [vmem:[#allocation7 + $0x4b0] sm:$0xff]
      %v1023 = vld [vmem:[#allocation7 + $0x4b8] sm:$0xff]
      %v1024 = vld [vmem:[#allocation7 + $0x4c0] sm:$0xff]
      %v1025 = vld [vmem:[#allocation7 + $0x4c8] sm:$0xff]
      %v1026 = vld [vmem:[#allocation7 + $0x4d0] sm:$0xff]
      %v1027 = vld [vmem:[#allocation7 + $0x4d8] sm:$0xff]
      %v1028 = vld [vmem:[#allocation7 + $0x4e0] sm:$0xff]
      %v1029 = vld [vmem:[#allocation7 + $0x4e8] sm:$0xff]
      %v1030 = vld [vmem:[#allocation7 + $0x4f0] sm:$0xff]
      %v1031 = vld [vmem:[#allocation7 + $0x4f8] sm:$0xff]
      %v1032 = vld [vmem:[#allocation7 + $0x500] sm:$0xff]
      %v1033 = vld [vmem:[#allocation7 + $0x508] sm:$0xff]
      %v1034 = vld [vmem:[#allocation7 + $0x510] sm:$0xff]
      %v1035 = vld [vmem:[#allocation7 + $0x518] sm:$0xff]
      %v1036 = vld [vmem:[#allocation7 + $0x520] sm:$0xff]
      %v1037 = vld [vmem:[#allocation7 + $0x528] sm:$0xff]
      %v1038 = vld [vmem:[#allocation7 + $0x530] sm:$0xff]
      %v1039 = vld [vmem:[#allocation7 + $0x538] sm:$0xff]
      %v1040 = vld [vmem:[#allocation7 + $0x540] sm:$0xff]
      %v1041 = vld [vmem:[#allocation7 + $0x548] sm:$0xff]
      %v1042 = vld [vmem:[#allocation7 + $0x550] sm:$0xff]
      %v1043 = vld [vmem:[#allocation7 + $0x558] sm:$0xff]
      %v1044 = vld [vmem:[#allocation7 + $0x560] sm:$0xff]
      %v1045 = vld [vmem:[#allocation7 + $0x568] sm:$0xff]
      %v1046 = vld [vmem:[#allocation7 + $0x570] sm:$0xff]
      %v1047 = vld [vmem:[#allocation7 + $0x578] sm:$0xff]
      %v1048 = vld [vmem:[#allocation7 + $0x580] sm:$0xff]
      %v1049 = vld [vmem:[#allocation7 + $0x588] sm:$0xff]
      %v1050 = vld [vmem:[#allocation7 + $0x590] sm:$0xff]
      %v1051 = vld [vmem:[#allocation7 + $0x598] sm:$0xff]
      %v1052 = vld [vmem:[#allocation7 + $0x5a0] sm:$0xff]
      %v1053 = vld [vmem:[#allocation7 + $0x5a8] sm:$0xff]
      %v1054 = vld [vmem:[#allocation7 + $0x5b0] sm:$0xff]
      %v1055 = vld [vmem:[#allocation7 + $0x5b8] sm:$0xff]
      %v1056 = vld [vmem:[#allocation7 + $0x5c0] sm:$0xff]
      %v1057 = vld [vmem:[#allocation7 + $0x5c8] sm:$0xff]
      %v1058 = vld [vmem:[#allocation7 + $0x5d0] sm:$0xff]
      %v1059 = vld [vmem:[#allocation7 + $0x5d8] sm:$0xff]
      %v1060 = vld [vmem:[#allocation7 + $0x5e0] sm:$0xff]
      %v1061 = vld [vmem:[#allocation7 + $0x5e8] sm:$0xff]
      %v1062 = vld [vmem:[#allocation7 + $0x5f0] sm:$0xff]
      %v1063 = vld [vmem:[#allocation7 + $0x5f8] sm:$0xff]
      %v1064 = vld [vmem:[#allocation7 + $0x600] sm:$0xff]
      %v1065 = vld [vmem:[#allocation7 + $0x608] sm:$0xff]
      %v1066 = vld [vmem:[#allocation7 + $0x610] sm:$0xff]
      %v1067 = vld [vmem:[#allocation7 + $0x618] sm:$0xff]
      %v1068 = vld [vmem:[#allocation7 + $0x620] sm:$0xff]
      %v1069 = vld [vmem:[#allocation7 + $0x628] sm:$0xff]
      %v1070 = vld [vmem:[#allocation7 + $0x630] sm:$0xff]
      %v1071 = vld [vmem:[#allocation7 + $0x638] sm:$0xff]
      %v1072 = vld [vmem:[#allocation7 + $0x640] sm:$0xff]
      %v1073 = vld [vmem:[#allocation7 + $0x648] sm:$0xff]
      %v1074 = vld [vmem:[#allocation7 + $0x650] sm:$0xff]
      %v1075 = vld [vmem:[#allocation7 + $0x658] sm:$0xff]
      %v1076 = vld [vmem:[#allocation7 + $0x660] sm:$0xff]
      %v1077 = vld [vmem:[#allocation7 + $0x668] sm:$0xff]
      %v1078 = vld [vmem:[#allocation7 + $0x670] sm:$0xff]
      %v1079 = vld [vmem:[#allocation7 + $0x678] sm:$0xff]
      %v1080 = vld [vmem:[#allocation7 + $0x680] sm:$0xff]
      %v1081 = vld [vmem:[#allocation7 + $0x688] sm:$0xff]
      %v1082 = vld [vmem:[#allocation7 + $0x690] sm:$0xff]
      %v1083 = vld [vmem:[#allocation7 + $0x698] sm:$0xff]
      %v1084 = vld [vmem:[#allocation7 + $0x6a0] sm:$0xff]
      %v1085 = vld [vmem:[#allocation7 + $0x6a8] sm:$0xff]
      %v1086 = vld [vmem:[#allocation7 + $0x6b0] sm:$0xff]
      %v1087 = vld [vmem:[#allocation7 + $0x6b8] sm:$0xff]
      %v1088 = vld [vmem:[#allocation7 + $0x6c0] sm:$0xff]
      %v1089 = vld [vmem:[#allocation7 + $0x6c8] sm:$0xff]
      %v1090 = vld [vmem:[#allocation7 + $0x6d0] sm:$0xff]
      %v1091 = vld [vmem:[#allocation7 + $0x6d8] sm:$0xff]
      %v1092 = vld [vmem:[#allocation7 + $0x6e0] sm:$0xff]
      %v1093 = vld [vmem:[#allocation7 + $0x6e8] sm:$0xff]
      %v1094 = vld [vmem:[#allocation7 + $0x6f0] sm:$0xff]
      %v1095 = vld [vmem:[#allocation7 + $0x6f8] sm:$0xff]
      %v1096 = vld [vmem:[#allocation7 + $0x700] sm:$0xff]
      %v1097 = vld [vmem:[#allocation7 + $0x708] sm:$0xff]
      %v1098 = vld [vmem:[#allocation7 + $0x710] sm:$0xff]
      %v1099 = vld [vmem:[#allocation7 + $0x718] sm:$0xff]
      %v1100 = vld [vmem:[#allocation7 + $0x720] sm:$0xff]
      %v1101 = vld [vmem:[#allocation7 + $0x728] sm:$0xff]
      %v1102 = vld [vmem:[#allocation7 + $0x730] sm:$0xff]
      %v1103 = vld [vmem:[#allocation7 + $0x738] sm:$0xff]
      %v1104 = vld [vmem:[#allocation7 + $0x740] sm:$0xff]
      %v1105 = vld [vmem:[#allocation7 + $0x748] sm:$0xff]
      %v1106 = vld [vmem:[#allocation7 + $0x750] sm:$0xff]
      %v1107 = vld [vmem:[#allocation7 + $0x758] sm:$0xff]
      %v1108 = vld [vmem:[#allocation7 + $0x760] sm:$0xff]
      %v1109 = vld [vmem:[#allocation7 + $0x768] sm:$0xff]
      %v1110 = vld [vmem:[#allocation7 + $0x770] sm:$0xff]
      %v1111 = vld [vmem:[#allocation7 + $0x778] sm:$0xff]
      %v1112 = vld [vmem:[#allocation7 + $0x780] sm:$0xff]
      %v1113 = vld [vmem:[#allocation7 + $0x788] sm:$0xff]
      %v1114 = vld [vmem:[#allocation7 + $0x790] sm:$0xff]
      %v1115 = vld [vmem:[#allocation7 + $0x798] sm:$0xff]
      %v1116 = vld [vmem:[#allocation7 + $0x7a0] sm:$0xff]
      %v1117 = vld [vmem:[#allocation7 + $0x7a8] sm:$0xff]
      %v1118 = vld [vmem:[#allocation7 + $0x7b0] sm:$0xff]
      %v1119 = vld [vmem:[#allocation7 + $0x7b8] sm:$0xff]
      %v1120 = vld [vmem:[#allocation7 + $0x7c0] sm:$0xff]
      %v1121 = vld [vmem:[#allocation7 + $0x7c8] sm:$0xff]
      %v1122 = vld [vmem:[#allocation7 + $0x7d0] sm:$0xff]
      %v1123 = vld [vmem:[#allocation7 + $0x7d8] sm:$0xff]
      %v1124 = vld [vmem:[#allocation7 + $0x7e0] sm:$0xff]
      %v1125 = vld [vmem:[#allocation7 + $0x7e8] sm:$0xff]
      %v1126 = vld [vmem:[#allocation7 + $0x7f0] sm:$0xff]
      %v1127 = vld [vmem:[#allocation7 + $0x7f8] sm:$0xff]
      %v1128 = vpack.c.bf16 %v864, %v864
      %v1129 = vpack.c.bf16 %v865, %v865
      %v1130 = vpack.c.bf16 %v866, %v866
      %v1131 = vpack.c.bf16 %v867, %v867
      %v1132 = vpack.c.bf16 %v868, %v868
      %v1133 = vpack.c.bf16 %v869, %v869
      %v1134 = vpack.c.bf16 %v870, %v870
      %v1135 = vpack.c.bf16 %v871, %v871
      %v1136 = vld [vmem:[#allocation9] sm:$0xf]
      %v1138 = vlaneseq
      %v1139 = vshrl.u32 %v1138, 7
      %v1140 = vsub.s32 0, %v1139
      %v1141 = vrot.slane %v1136, %v1140
      %v1142 = vlaneseq
      %v1143 = vshrl.u32 %v1142, 7
      %v1144 = vsub.s32 1, %v1143
      %v1145 = vrot.slane %v1136, %v1144
      %v1146 = vlaneseq
      %v1147 = vshrl.u32 %v1146, 7
      %v1148 = vsub.s32 2, %v1147
      %v1149 = vrot.slane %v1136, %v1148
      %v1150 = vlaneseq
      %v1151 = vshrl.u32 %v1150, 7
      %v1152 = vsub.s32 3, %v1151
      %v1153 = vrot.slane %v1136, %v1152
      %v1414 = vunpack.c.l.b16 %v872
      %v1415 = vunpack.c.h.b16 %v872
      %v1416 = vunpack.c.l.b16 %v873
      %v1417 = vunpack.c.h.b16 %v873
      %v1418 = vunpack.c.l.b16 %v874
      %v1419 = vunpack.c.h.b16 %v874
      %v1420 = vunpack.c.l.b16 %v875
      %v1421 = vunpack.c.h.b16 %v875
      %v1422 = vunpack.c.l.b16 %v876
      %v1423 = vunpack.c.h.b16 %v876
      %v1424 = vunpack.c.l.b16 %v877
      %v1425 = vunpack.c.h.b16 %v877
      %v1426 = vunpack.c.l.b16 %v878
      %v1427 = vunpack.c.h.b16 %v878
      %v1428 = vunpack.c.l.b16 %v879
      %v1429 = vunpack.c.h.b16 %v879
      %v1430 = vunpack.c.l.b16 %v880
      %v1431 = vunpack.c.h.b16 %v880
      %v1432 = vunpack.c.l.b16 %v881
      %v1433 = vunpack.c.h.b16 %v881
      %v1434 = vunpack.c.l.b16 %v882
      %v1435 = vunpack.c.h.b16 %v882
      %v1436 = vunpack.c.l.b16 %v883
      %v1437 = vunpack.c.h.b16 %v883
      %v1438 = vunpack.c.l.b16 %v884
      %v1439 = vunpack.c.h.b16 %v884
      %v1440 = vunpack.c.l.b16 %v885
      %v1441 = vunpack.c.h.b16 %v885
      %v1442 = vunpack.c.l.b16 %v886
      %v1443 = vunpack.c.h.b16 %v886
      %v1444 = vunpack.c.l.b16 %v887
      %v1445 = vunpack.c.h.b16 %v887
      %v1446 = vunpack.c.l.b16 %v888
      %v1447 = vunpack.c.h.b16 %v888
      %v1448 = vunpack.c.l.b16 %v889
      %v1449 = vunpack.c.h.b16 %v889
      %v1450 = vunpack.c.l.b16 %v890
      %v1451 = vunpack.c.h.b16 %v890
      %v1452 = vunpack.c.l.b16 %v891
      %v1453 = vunpack.c.h.b16 %v891
      %v1454 = vunpack.c.l.b16 %v892
      %v1455 = vunpack.c.h.b16 %v892
      %v1456 = vunpack.c.l.b16 %v893
      %v1457 = vunpack.c.h.b16 %v893
      %v1458 = vunpack.c.l.b16 %v894
      %v1459 = vunpack.c.h.b16 %v894
      %v1460 = vunpack.c.l.b16 %v895
      %v1461 = vunpack.c.h.b16 %v895
      %v1462 = vunpack.c.l.b16 %v896
      %v1463 = vunpack.c.h.b16 %v896
      %v1464 = vunpack.c.l.b16 %v897
      %v1465 = vunpack.c.h.b16 %v897
      %v1466 = vunpack.c.l.b16 %v898
      %v1467 = vunpack.c.h.b16 %v898
      %v1468 = vunpack.c.l.b16 %v899
      %v1469 = vunpack.c.h.b16 %v899
      %v1470 = vunpack.c.l.b16 %v900
      %v1471 = vunpack.c.h.b16 %v900
      %v1472 = vunpack.c.l.b16 %v901
      %v1473 = vunpack.c.h.b16 %v901
      %v1474 = vunpack.c.l.b16 %v902
      %v1475 = vunpack.c.h.b16 %v902
      %v1476 = vunpack.c.l.b16 %v903
      %v1477 = vunpack.c.h.b16 %v903
      %v1478 = vunpack.c.l.b16 %v904
      %v1479 = vunpack.c.h.b16 %v904
      %v1480 = vunpack.c.l.b16 %v905
      %v1481 = vunpack.c.h.b16 %v905
      %v1482 = vunpack.c.l.b16 %v906
      %v1483 = vunpack.c.h.b16 %v906
      %v1484 = vunpack.c.l.b16 %v907
      %v1485 = vunpack.c.h.b16 %v907
      %v1486 = vunpack.c.l.b16 %v908
      %v1487 = vunpack.c.h.b16 %v908
      %v1488 = vunpack.c.l.b16 %v909
      %v1489 = vunpack.c.h.b16 %v909
      %v1490 = vunpack.c.l.b16 %v910
      %v1491 = vunpack.c.h.b16 %v910
      %v1492 = vunpack.c.l.b16 %v911
      %v1493 = vunpack.c.h.b16 %v911
      %v1494 = vunpack.c.l.b16 %v912
      %v1495 = vunpack.c.h.b16 %v912
      %v1496 = vunpack.c.l.b16 %v913
      %v1497 = vunpack.c.h.b16 %v913
      %v1498 = vunpack.c.l.b16 %v914
      %v1499 = vunpack.c.h.b16 %v914
      %v1500 = vunpack.c.l.b16 %v915
      %v1501 = vunpack.c.h.b16 %v915
      %v1502 = vunpack.c.l.b16 %v916
      %v1503 = vunpack.c.h.b16 %v916
      %v1504 = vunpack.c.l.b16 %v917
      %v1505 = vunpack.c.h.b16 %v917
      %v1506 = vunpack.c.l.b16 %v918
      %v1507 = vunpack.c.h.b16 %v918
      %v1508 = vunpack.c.l.b16 %v919
      %v1509 = vunpack.c.h.b16 %v919
      %v1510 = vunpack.c.l.b16 %v920
      %v1511 = vunpack.c.h.b16 %v920
      %v1512 = vunpack.c.l.b16 %v921
      %v1513 = vunpack.c.h.b16 %v921
      %v1514 = vunpack.c.l.b16 %v922
      %v1515 = vunpack.c.h.b16 %v922
      %v1516 = vunpack.c.l.b16 %v923
      %v1517 = vunpack.c.h.b16 %v923
      %v1518 = vunpack.c.l.b16 %v924
      %v1519 = vunpack.c.h.b16 %v924
      %v1520 = vunpack.c.l.b16 %v925
      %v1521 = vunpack.c.h.b16 %v925
      %v1522 = vunpack.c.l.b16 %v926
      %v1523 = vunpack.c.h.b16 %v926
      %v1524 = vunpack.c.l.b16 %v927
      %v1525 = vunpack.c.h.b16 %v927
      %v1526 = vunpack.c.l.b16 %v928
      %v1527 = vunpack.c.h.b16 %v928
      %v1528 = vunpack.c.l.b16 %v929
      %v1529 = vunpack.c.h.b16 %v929
      %v1530 = vunpack.c.l.b16 %v930
      %v1531 = vunpack.c.h.b16 %v930
      %v1532 = vunpack.c.l.b16 %v931
      %v1533 = vunpack.c.h.b16 %v931
      %v1534 = vunpack.c.l.b16 %v932
      %v1535 = vunpack.c.h.b16 %v932
      %v1536 = vunpack.c.l.b16 %v933
      %v1537 = vunpack.c.h.b16 %v933
      %v1538 = vunpack.c.l.b16 %v934
      %v1539 = vunpack.c.h.b16 %v934
      %v1540 = vunpack.c.l.b16 %v935
      %v1541 = vunpack.c.h.b16 %v935
      %v1542 = vunpack.c.l.b16 %v936
      %v1543 = vunpack.c.h.b16 %v936
      %v1544 = vunpack.c.l.b16 %v937
      %v1545 = vunpack.c.h.b16 %v937
      %v1546 = vunpack.c.l.b16 %v938
      %v1547 = vunpack.c.h.b16 %v938
      %v1548 = vunpack.c.l.b16 %v939
      %v1549 = vunpack.c.h.b16 %v939
      %v1550 = vunpack.c.l.b16 %v940
      %v1551 = vunpack.c.h.b16 %v940
      %v1552 = vunpack.c.l.b16 %v941
      %v1553 = vunpack.c.h.b16 %v941
      %v1554 = vunpack.c.l.b16 %v942
      %v1555 = vunpack.c.h.b16 %v942
      %v1556 = vunpack.c.l.b16 %v943
      %v1557 = vunpack.c.h.b16 %v943
      %v1558 = vunpack.c.l.b16 %v944
      %v1559 = vunpack.c.h.b16 %v944
      %v1560 = vunpack.c.l.b16 %v945
      %v1561 = vunpack.c.h.b16 %v945
      %v1562 = vunpack.c.l.b16 %v946
      %v1563 = vunpack.c.h.b16 %v946
      %v1564 = vunpack.c.l.b16 %v947
      %v1565 = vunpack.c.h.b16 %v947
      %v1566 = vunpack.c.l.b16 %v948
      %v1567 = vunpack.c.h.b16 %v948
      %v1568 = vunpack.c.l.b16 %v949
      %v1569 = vunpack.c.h.b16 %v949
      %v1570 = vunpack.c.l.b16 %v950
      %v1571 = vunpack.c.h.b16 %v950
      %v1572 = vunpack.c.l.b16 %v951
      %v1573 = vunpack.c.h.b16 %v951
      %v1574 = vunpack.c.l.b16 %v952
      %v1575 = vunpack.c.h.b16 %v952
      %v1576 = vunpack.c.l.b16 %v953
      %v1577 = vunpack.c.h.b16 %v953
      %v1578 = vunpack.c.l.b16 %v954
      %v1579 = vunpack.c.h.b16 %v954
      %v1580 = vunpack.c.l.b16 %v955
      %v1581 = vunpack.c.h.b16 %v955
      %v1582 = vunpack.c.l.b16 %v956
      %v1583 = vunpack.c.h.b16 %v956
      %v1584 = vunpack.c.l.b16 %v957
      %v1585 = vunpack.c.h.b16 %v957
      %v1586 = vunpack.c.l.b16 %v958
      %v1587 = vunpack.c.h.b16 %v958
      %v1588 = vunpack.c.l.b16 %v959
      %v1589 = vunpack.c.h.b16 %v959
      %v1590 = vunpack.c.l.b16 %v960
      %v1591 = vunpack.c.h.b16 %v960
      %v1592 = vunpack.c.l.b16 %v961
      %v1593 = vunpack.c.h.b16 %v961
      %v1594 = vunpack.c.l.b16 %v962
      %v1595 = vunpack.c.h.b16 %v962
      %v1596 = vunpack.c.l.b16 %v963
      %v1597 = vunpack.c.h.b16 %v963
      %v1598 = vunpack.c.l.b16 %v964
      %v1599 = vunpack.c.h.b16 %v964
      %v1600 = vunpack.c.l.b16 %v965
      %v1601 = vunpack.c.h.b16 %v965
      %v1602 = vunpack.c.l.b16 %v966
      %v1603 = vunpack.c.h.b16 %v966
      %v1604 = vunpack.c.l.b16 %v967
      %v1605 = vunpack.c.h.b16 %v967
      %v1606 = vunpack.c.l.b16 %v968
      %v1607 = vunpack.c.h.b16 %v968
      %v1608 = vunpack.c.l.b16 %v969
      %v1609 = vunpack.c.h.b16 %v969
      %v1610 = vunpack.c.l.b16 %v970
      %v1611 = vunpack.c.h.b16 %v970
      %v1612 = vunpack.c.l.b16 %v971
      %v1613 = vunpack.c.h.b16 %v971
      %v1614 = vunpack.c.l.b16 %v972
      %v1615 = vunpack.c.h.b16 %v972
      %v1616 = vunpack.c.l.b16 %v973
      %v1617 = vunpack.c.h.b16 %v973
      %v1618 = vunpack.c.l.b16 %v974
      %v1619 = vunpack.c.h.b16 %v974
      %v1620 = vunpack.c.l.b16 %v975
      %v1621 = vunpack.c.h.b16 %v975
      %v1622 = vunpack.c.l.b16 %v976
      %v1623 = vunpack.c.h.b16 %v976
      %v1624 = vunpack.c.l.b16 %v977
      %v1625 = vunpack.c.h.b16 %v977
      %v1626 = vunpack.c.l.b16 %v978
      %v1627 = vunpack.c.h.b16 %v978
      %v1628 = vunpack.c.l.b16 %v979
      %v1629 = vunpack.c.h.b16 %v979
      %v1630 = vunpack.c.l.b16 %v980
      %v1631 = vunpack.c.h.b16 %v980
      %v1632 = vunpack.c.l.b16 %v981
      %v1633 = vunpack.c.h.b16 %v981
      %v1634 = vunpack.c.l.b16 %v982
      %v1635 = vunpack.c.h.b16 %v982
      %v1636 = vunpack.c.l.b16 %v983
      %v1637 = vunpack.c.h.b16 %v983
      %v1638 = vunpack.c.l.b16 %v984
      %v1639 = vunpack.c.h.b16 %v984
      %v1640 = vunpack.c.l.b16 %v985
      %v1641 = vunpack.c.h.b16 %v985
      %v1642 = vunpack.c.l.b16 %v986
      %v1643 = vunpack.c.h.b16 %v986
      %v1644 = vunpack.c.l.b16 %v987
      %v1645 = vunpack.c.h.b16 %v987
      %v1646 = vunpack.c.l.b16 %v988
      %v1647 = vunpack.c.h.b16 %v988
      %v1648 = vunpack.c.l.b16 %v989
      %v1649 = vunpack.c.h.b16 %v989
      %v1650 = vunpack.c.l.b16 %v990
      %v1651 = vunpack.c.h.b16 %v990
      %v1652 = vunpack.c.l.b16 %v991
      %v1653 = vunpack.c.h.b16 %v991
      %v1654 = vunpack.c.l.b16 %v992
      %v1655 = vunpack.c.h.b16 %v992
      %v1656 = vunpack.c.l.b16 %v993
      %v1657 = vunpack.c.h.b16 %v993
      %v1658 = vunpack.c.l.b16 %v994
      %v1659 = vunpack.c.h.b16 %v994
      %v1660 = vunpack.c.l.b16 %v995
      %v1661 = vunpack.c.h.b16 %v995
      %v1662 = vunpack.c.l.b16 %v996
      %v1663 = vunpack.c.h.b16 %v996
      %v1664 = vunpack.c.l.b16 %v997
      %v1665 = vunpack.c.h.b16 %v997
      %v1666 = vunpack.c.l.b16 %v998
      %v1667 = vunpack.c.h.b16 %v998
      %v1668 = vunpack.c.l.b16 %v999
      %v1669 = vunpack.c.h.b16 %v999
      %v1670 = vunpack.c.l.b16 %v1000
      %v1671 = vunpack.c.h.b16 %v1000
      %v1672 = vunpack.c.l.b16 %v1001
      %v1673 = vunpack.c.h.b16 %v1001
      %v1674 = vunpack.c.l.b16 %v1002
      %v1675 = vunpack.c.h.b16 %v1002
      %v1676 = vunpack.c.l.b16 %v1003
      %v1677 = vunpack.c.h.b16 %v1003
      %v1678 = vunpack.c.l.b16 %v1004
      %v1679 = vunpack.c.h.b16 %v1004
      %v1680 = vunpack.c.l.b16 %v1005
      %v1681 = vunpack.c.h.b16 %v1005
      %v1682 = vunpack.c.l.b16 %v1006
      %v1683 = vunpack.c.h.b16 %v1006
      %v1684 = vunpack.c.l.b16 %v1007
      %v1685 = vunpack.c.h.b16 %v1007
      %v1686 = vunpack.c.l.b16 %v1008
      %v1687 = vunpack.c.h.b16 %v1008
      %v1688 = vunpack.c.l.b16 %v1009
      %v1689 = vunpack.c.h.b16 %v1009
      %v1690 = vunpack.c.l.b16 %v1010
      %v1691 = vunpack.c.h.b16 %v1010
      %v1692 = vunpack.c.l.b16 %v1011
      %v1693 = vunpack.c.h.b16 %v1011
      %v1694 = vunpack.c.l.b16 %v1012
      %v1695 = vunpack.c.h.b16 %v1012
      %v1696 = vunpack.c.l.b16 %v1013
      %v1697 = vunpack.c.h.b16 %v1013
      %v1698 = vunpack.c.l.b16 %v1014
      %v1699 = vunpack.c.h.b16 %v1014
      %v1700 = vunpack.c.l.b16 %v1015
      %v1701 = vunpack.c.h.b16 %v1015
      %v1702 = vunpack.c.l.b16 %v1016
      %v1703 = vunpack.c.h.b16 %v1016
      %v1704 = vunpack.c.l.b16 %v1017
      %v1705 = vunpack.c.h.b16 %v1017
      %v1706 = vunpack.c.l.b16 %v1018
      %v1707 = vunpack.c.h.b16 %v1018
      %v1708 = vunpack.c.l.b16 %v1019
      %v1709 = vunpack.c.h.b16 %v1019
      %v1710 = vunpack.c.l.b16 %v1020
      %v1711 = vunpack.c.h.b16 %v1020
      %v1712 = vunpack.c.l.b16 %v1021
      %v1713 = vunpack.c.h.b16 %v1021
      %v1714 = vunpack.c.l.b16 %v1022
      %v1715 = vunpack.c.h.b16 %v1022
      %v1716 = vunpack.c.l.b16 %v1023
      %v1717 = vunpack.c.h.b16 %v1023
      %v1718 = vunpack.c.l.b16 %v1024
      %v1719 = vunpack.c.h.b16 %v1024
      %v1720 = vunpack.c.l.b16 %v1025
      %v1721 = vunpack.c.h.b16 %v1025
      %v1722 = vunpack.c.l.b16 %v1026
      %v1723 = vunpack.c.h.b16 %v1026
      %v1724 = vunpack.c.l.b16 %v1027
      %v1725 = vunpack.c.h.b16 %v1027
      %v1726 = vunpack.c.l.b16 %v1028
      %v1727 = vunpack.c.h.b16 %v1028
      %v1728 = vunpack.c.l.b16 %v1029
      %v1729 = vunpack.c.h.b16 %v1029
      %v1730 = vunpack.c.l.b16 %v1030
      %v1731 = vunpack.c.h.b16 %v1030
      %v1732 = vunpack.c.l.b16 %v1031
      %v1733 = vunpack.c.h.b16 %v1031
      %v1734 = vunpack.c.l.b16 %v1032
      %v1735 = vunpack.c.h.b16 %v1032
      %v1736 = vunpack.c.l.b16 %v1033
      %v1737 = vunpack.c.h.b16 %v1033
      %v1738 = vunpack.c.l.b16 %v1034
      %v1739 = vunpack.c.h.b16 %v1034
      %v1740 = vunpack.c.l.b16 %v1035
      %v1741 = vunpack.c.h.b16 %v1035
      %v1742 = vunpack.c.l.b16 %v1036
      %v1743 = vunpack.c.h.b16 %v1036
      %v1744 = vunpack.c.l.b16 %v1037
      %v1745 = vunpack.c.h.b16 %v1037
      %v1746 = vunpack.c.l.b16 %v1038
      %v1747 = vunpack.c.h.b16 %v1038
      %v1748 = vunpack.c.l.b16 %v1039
      %v1749 = vunpack.c.h.b16 %v1039
      %v1750 = vunpack.c.l.b16 %v1040
      %v1751 = vunpack.c.h.b16 %v1040
      %v1752 = vunpack.c.l.b16 %v1041
      %v1753 = vunpack.c.h.b16 %v1041
      %v1754 = vunpack.c.l.b16 %v1042
      %v1755 = vunpack.c.h.b16 %v1042
      %v1756 = vunpack.c.l.b16 %v1043
      %v1757 = vunpack.c.h.b16 %v1043
      %v1758 = vunpack.c.l.b16 %v1044
      %v1759 = vunpack.c.h.b16 %v1044
      %v1760 = vunpack.c.l.b16 %v1045
      %v1761 = vunpack.c.h.b16 %v1045
      %v1762 = vunpack.c.l.b16 %v1046
      %v1763 = vunpack.c.h.b16 %v1046
      %v1764 = vunpack.c.l.b16 %v1047
      %v1765 = vunpack.c.h.b16 %v1047
      %v1766 = vunpack.c.l.b16 %v1048
      %v1767 = vunpack.c.h.b16 %v1048
      %v1768 = vunpack.c.l.b16 %v1049
      %v1769 = vunpack.c.h.b16 %v1049
      %v1770 = vunpack.c.l.b16 %v1050
      %v1771 = vunpack.c.h.b16 %v1050
      %v1772 = vunpack.c.l.b16 %v1051
      %v1773 = vunpack.c.h.b16 %v1051
      %v1774 = vunpack.c.l.b16 %v1052
      %v1775 = vunpack.c.h.b16 %v1052
      %v1776 = vunpack.c.l.b16 %v1053
      %v1777 = vunpack.c.h.b16 %v1053
      %v1778 = vunpack.c.l.b16 %v1054
      %v1779 = vunpack.c.h.b16 %v1054
      %v1780 = vunpack.c.l.b16 %v1055
      %v1781 = vunpack.c.h.b16 %v1055
      %v1782 = vunpack.c.l.b16 %v1056
      %v1783 = vunpack.c.h.b16 %v1056
      %v1784 = vunpack.c.l.b16 %v1057
      %v1785 = vunpack.c.h.b16 %v1057
      %v1786 = vunpack.c.l.b16 %v1058
      %v1787 = vunpack.c.h.b16 %v1058
      %v1788 = vunpack.c.l.b16 %v1059
      %v1789 = vunpack.c.h.b16 %v1059
      %v1790 = vunpack.c.l.b16 %v1060
      %v1791 = vunpack.c.h.b16 %v1060
      %v1792 = vunpack.c.l.b16 %v1061
      %v1793 = vunpack.c.h.b16 %v1061
      %v1794 = vunpack.c.l.b16 %v1062
      %v1795 = vunpack.c.h.b16 %v1062
      %v1796 = vunpack.c.l.b16 %v1063
      %v1797 = vunpack.c.h.b16 %v1063
      %v1798 = vunpack.c.l.b16 %v1064
      %v1799 = vunpack.c.h.b16 %v1064
      %v1800 = vunpack.c.l.b16 %v1065
      %v1801 = vunpack.c.h.b16 %v1065
      %v1802 = vunpack.c.l.b16 %v1066
      %v1803 = vunpack.c.h.b16 %v1066
      %v1804 = vunpack.c.l.b16 %v1067
      %v1805 = vunpack.c.h.b16 %v1067
      %v1806 = vunpack.c.l.b16 %v1068
      %v1807 = vunpack.c.h.b16 %v1068
      %v1808 = vunpack.c.l.b16 %v1069
      %v1809 = vunpack.c.h.b16 %v1069
      %v1810 = vunpack.c.l.b16 %v1070
      %v1811 = vunpack.c.h.b16 %v1070
      %v1812 = vunpack.c.l.b16 %v1071
      %v1813 = vunpack.c.h.b16 %v1071
      %v1814 = vunpack.c.l.b16 %v1072
      %v1815 = vunpack.c.h.b16 %v1072
      %v1816 = vunpack.c.l.b16 %v1073
      %v1817 = vunpack.c.h.b16 %v1073
      %v1818 = vunpack.c.l.b16 %v1074
      %v1819 = vunpack.c.h.b16 %v1074
      %v1820 = vunpack.c.l.b16 %v1075
      %v1821 = vunpack.c.h.b16 %v1075
      %v1822 = vunpack.c.l.b16 %v1076
      %v1823 = vunpack.c.h.b16 %v1076
      %v1824 = vunpack.c.l.b16 %v1077
      %v1825 = vunpack.c.h.b16 %v1077
      %v1826 = vunpack.c.l.b16 %v1078
      %v1827 = vunpack.c.h.b16 %v1078
      %v1828 = vunpack.c.l.b16 %v1079
      %v1829 = vunpack.c.h.b16 %v1079
      %v1830 = vunpack.c.l.b16 %v1080
      %v1831 = vunpack.c.h.b16 %v1080
      %v1832 = vunpack.c.l.b16 %v1081
      %v1833 = vunpack.c.h.b16 %v1081
      %v1834 = vunpack.c.l.b16 %v1082
      %v1835 = vunpack.c.h.b16 %v1082
      %v1836 = vunpack.c.l.b16 %v1083
      %v1837 = vunpack.c.h.b16 %v1083
      %v1838 = vunpack.c.l.b16 %v1084
      %v1839 = vunpack.c.h.b16 %v1084
      %v1840 = vunpack.c.l.b16 %v1085
      %v1841 = vunpack.c.h.b16 %v1085
      %v1842 = vunpack.c.l.b16 %v1086
      %v1843 = vunpack.c.h.b16 %v1086
      %v1844 = vunpack.c.l.b16 %v1087
      %v1845 = vunpack.c.h.b16 %v1087
      %v1846 = vunpack.c.l.b16 %v1088
      %v1847 = vunpack.c.h.b16 %v1088
      %v1848 = vunpack.c.l.b16 %v1089
      %v1849 = vunpack.c.h.b16 %v1089
      %v1850 = vunpack.c.l.b16 %v1090
      %v1851 = vunpack.c.h.b16 %v1090
      %v1852 = vunpack.c.l.b16 %v1091
      %v1853 = vunpack.c.h.b16 %v1091
      %v1854 = vunpack.c.l.b16 %v1092
      %v1855 = vunpack.c.h.b16 %v1092
      %v1856 = vunpack.c.l.b16 %v1093
      %v1857 = vunpack.c.h.b16 %v1093
      %v1858 = vunpack.c.l.b16 %v1094
      %v1859 = vunpack.c.h.b16 %v1094
      %v1860 = vunpack.c.l.b16 %v1095
      %v1861 = vunpack.c.h.b16 %v1095
      %v1862 = vunpack.c.l.b16 %v1096
      %v1863 = vunpack.c.h.b16 %v1096
      %v1864 = vunpack.c.l.b16 %v1097
      %v1865 = vunpack.c.h.b16 %v1097
      %v1866 = vunpack.c.l.b16 %v1098
      %v1867 = vunpack.c.h.b16 %v1098
      %v1868 = vunpack.c.l.b16 %v1099
      %v1869 = vunpack.c.h.b16 %v1099
      %v1870 = vunpack.c.l.b16 %v1100
      %v1871 = vunpack.c.h.b16 %v1100
      %v1872 = vunpack.c.l.b16 %v1101
      %v1873 = vunpack.c.h.b16 %v1101
      %v1874 = vunpack.c.l.b16 %v1102
      %v1875 = vunpack.c.h.b16 %v1102
      %v1876 = vunpack.c.l.b16 %v1103
      %v1877 = vunpack.c.h.b16 %v1103
      %v1878 = vunpack.c.l.b16 %v1104
      %v1879 = vunpack.c.h.b16 %v1104
      %v1880 = vunpack.c.l.b16 %v1105
      %v1881 = vunpack.c.h.b16 %v1105
      %v1882 = vunpack.c.l.b16 %v1106
      %v1883 = vunpack.c.h.b16 %v1106
      %v1884 = vunpack.c.l.b16 %v1107
      %v1885 = vunpack.c.h.b16 %v1107
      %v1886 = vunpack.c.l.b16 %v1108
      %v1887 = vunpack.c.h.b16 %v1108
      %v1888 = vunpack.c.l.b16 %v1109
      %v1889 = vunpack.c.h.b16 %v1109
      %v1890 = vunpack.c.l.b16 %v1110
      %v1891 = vunpack.c.h.b16 %v1110
      %v1892 = vunpack.c.l.b16 %v1111
      %v1893 = vunpack.c.h.b16 %v1111
      %v1894 = vunpack.c.l.b16 %v1112
      %v1895 = vunpack.c.h.b16 %v1112
      %v1896 = vunpack.c.l.b16 %v1113
      %v1897 = vunpack.c.h.b16 %v1113
      %v1898 = vunpack.c.l.b16 %v1114
      %v1899 = vunpack.c.h.b16 %v1114
      %v1900 = vunpack.c.l.b16 %v1115
      %v1901 = vunpack.c.h.b16 %v1115
      %v1902 = vunpack.c.l.b16 %v1116
      %v1903 = vunpack.c.h.b16 %v1116
      %v1904 = vunpack.c.l.b16 %v1117
      %v1905 = vunpack.c.h.b16 %v1117
      %v1906 = vunpack.c.l.b16 %v1118
      %v1907 = vunpack.c.h.b16 %v1118
      %v1908 = vunpack.c.l.b16 %v1119
      %v1909 = vunpack.c.h.b16 %v1119
      %v1910 = vunpack.c.l.b16 %v1120
      %v1911 = vunpack.c.h.b16 %v1120
      %v1912 = vunpack.c.l.b16 %v1121
      %v1913 = vunpack.c.h.b16 %v1121
      %v1914 = vunpack.c.l.b16 %v1122
      %v1915 = vunpack.c.h.b16 %v1122
      %v1916 = vunpack.c.l.b16 %v1123
      %v1917 = vunpack.c.h.b16 %v1123
      %v1918 = vunpack.c.l.b16 %v1124
      %v1919 = vunpack.c.h.b16 %v1124
      %v1920 = vunpack.c.l.b16 %v1125
      %v1921 = vunpack.c.h.b16 %v1125
      %v1922 = vunpack.c.l.b16 %v1126
      %v1923 = vunpack.c.h.b16 %v1126
      %v1924 = vunpack.c.l.b16 %v1127
      %v1925 = vunpack.c.h.b16 %v1127
      %v1926 = vpack.c.b16 %v1418, %v1414
      %v1927 = vpack.c.b16 %v1419, %v1415
      %v1928 = vpack.c.b16 %v1420, %v1416
      %v1929 = vpack.c.b16 %v1421, %v1417
      %v1930 = vpack.c.b16 %v1426, %v1422
      %v1931 = vpack.c.b16 %v1427, %v1423
      %v1932 = vpack.c.b16 %v1428, %v1424
      %v1933 = vpack.c.b16 %v1429, %v1425
      %v1934 = vpack.c.b16 %v1434, %v1430
      %v1935 = vpack.c.b16 %v1435, %v1431
      %v1936 = vpack.c.b16 %v1436, %v1432
      %v1937 = vpack.c.b16 %v1437, %v1433
      %v1938 = vpack.c.b16 %v1442, %v1438
      %v1939 = vpack.c.b16 %v1443, %v1439
      %v1940 = vpack.c.b16 %v1444, %v1440
      %v1941 = vpack.c.b16 %v1445, %v1441
      %v1942 = vpack.c.b16 %v1450, %v1446
      %v1943 = vpack.c.b16 %v1451, %v1447
      %v1944 = vpack.c.b16 %v1452, %v1448
      %v1945 = vpack.c.b16 %v1453, %v1449
      %v1946 = vpack.c.b16 %v1458, %v1454
      %v1947 = vpack.c.b16 %v1459, %v1455
      %v1948 = vpack.c.b16 %v1460, %v1456
      %v1949 = vpack.c.b16 %v1461, %v1457
      %v1950 = vpack.c.b16 %v1466, %v1462
      %v1951 = vpack.c.b16 %v1467, %v1463
      %v1952 = vpack.c.b16 %v1468, %v1464
      %v1953 = vpack.c.b16 %v1469, %v1465
      %v1954 = vpack.c.b16 %v1474, %v1470
      %v1955 = vpack.c.b16 %v1475, %v1471
      %v1956 = vpack.c.b16 %v1476, %v1472
      %v1957 = vpack.c.b16 %v1477, %v1473
      %v1958 = vpack.c.b16 %v1482, %v1478
      %v1959 = vpack.c.b16 %v1483, %v1479
      %v1960 = vpack.c.b16 %v1484, %v1480
      %v1961 = vpack.c.b16 %v1485, %v1481
      %v1962 = vpack.c.b16 %v1490, %v1486
      %v1963 = vpack.c.b16 %v1491, %v1487
      %v1964 = vpack.c.b16 %v1492, %v1488
      %v1965 = vpack.c.b16 %v1493, %v1489
      %v1966 = vpack.c.b16 %v1498, %v1494
      %v1967 = vpack.c.b16 %v1499, %v1495
      %v1968 = vpack.c.b16 %v1500, %v1496
      %v1969 = vpack.c.b16 %v1501, %v1497
      %v1970 = vpack.c.b16 %v1506, %v1502
      %v1971 = vpack.c.b16 %v1507, %v1503
      %v1972 = vpack.c.b16 %v1508, %v1504
      %v1973 = vpack.c.b16 %v1509, %v1505
      %v1974 = vpack.c.b16 %v1514, %v1510
      %v1975 = vpack.c.b16 %v1515, %v1511
      %v1976 = vpack.c.b16 %v1516, %v1512
      %v1977 = vpack.c.b16 %v1517, %v1513
      %v1978 = vpack.c.b16 %v1522, %v1518
      %v1979 = vpack.c.b16 %v1523, %v1519
      %v1980 = vpack.c.b16 %v1524, %v1520
      %v1981 = vpack.c.b16 %v1525, %v1521
      %v1982 = vpack.c.b16 %v1530, %v1526
      %v1983 = vpack.c.b16 %v1531, %v1527
      %v1984 = vpack.c.b16 %v1532, %v1528
      %v1985 = vpack.c.b16 %v1533, %v1529
      %v1986 = vpack.c.b16 %v1538, %v1534
      %v1987 = vpack.c.b16 %v1539, %v1535
      %v1988 = vpack.c.b16 %v1540, %v1536
      %v1989 = vpack.c.b16 %v1541, %v1537
      %v1990 = vpack.c.b16 %v1546, %v1542
      %v1991 = vpack.c.b16 %v1547, %v1543
      %v1992 = vpack.c.b16 %v1548, %v1544
      %v1993 = vpack.c.b16 %v1549, %v1545
      %v1994 = vpack.c.b16 %v1554, %v1550
      %v1995 = vpack.c.b16 %v1555, %v1551
      %v1996 = vpack.c.b16 %v1556, %v1552
      %v1997 = vpack.c.b16 %v1557, %v1553
      %v1998 = vpack.c.b16 %v1562, %v1558
      %v1999 = vpack.c.b16 %v1563, %v1559
      %v2000 = vpack.c.b16 %v1564, %v1560
      %v2001 = vpack.c.b16 %v1565, %v1561
      %v2002 = vpack.c.b16 %v1570, %v1566
      %v2003 = vpack.c.b16 %v1571, %v1567
      %v2004 = vpack.c.b16 %v1572, %v1568
      %v2005 = vpack.c.b16 %v1573, %v1569
      %v2006 = vpack.c.b16 %v1578, %v1574
      %v2007 = vpack.c.b16 %v1579, %v1575
      %v2008 = vpack.c.b16 %v1580, %v1576
      %v2009 = vpack.c.b16 %v1581, %v1577
      %v2010 = vpack.c.b16 %v1586, %v1582
      %v2011 = vpack.c.b16 %v1587, %v1583
      %v2012 = vpack.c.b16 %v1588, %v1584
      %v2013 = vpack.c.b16 %v1589, %v1585
      %v2014 = vpack.c.b16 %v1594, %v1590
      %v2015 = vpack.c.b16 %v1595, %v1591
      %v2016 = vpack.c.b16 %v1596, %v1592
      %v2017 = vpack.c.b16 %v1597, %v1593
      %v2018 = vpack.c.b16 %v1602, %v1598
      %v2019 = vpack.c.b16 %v1603, %v1599
      %v2020 = vpack.c.b16 %v1604, %v1600
      %v2021 = vpack.c.b16 %v1605, %v1601
      %v2022 = vpack.c.b16 %v1610, %v1606
      %v2023 = vpack.c.b16 %v1611, %v1607
      %v2024 = vpack.c.b16 %v1612, %v1608
      %v2025 = vpack.c.b16 %v1613, %v1609
      %v2026 = vpack.c.b16 %v1618, %v1614
      %v2027 = vpack.c.b16 %v1619, %v1615
      %v2028 = vpack.c.b16 %v1620, %v1616
      %v2029 = vpack.c.b16 %v1621, %v1617
      %v2030 = vpack.c.b16 %v1626, %v1622
      %v2031 = vpack.c.b16 %v1627, %v1623
      %v2032 = vpack.c.b16 %v1628, %v1624
      %v2033 = vpack.c.b16 %v1629, %v1625
      %v2034 = vpack.c.b16 %v1634, %v1630
      %v2035 = vpack.c.b16 %v1635, %v1631
      %v2036 = vpack.c.b16 %v1636, %v1632
      %v2037 = vpack.c.b16 %v1637, %v1633
      %v2038 = vpack.c.b16 %v1642, %v1638
      %v2039 = vpack.c.b16 %v1643, %v1639
      %v2040 = vpack.c.b16 %v1644, %v1640
      %v2041 = vpack.c.b16 %v1645, %v1641
      %v2042 = vpack.c.b16 %v1650, %v1646
      %v2043 = vpack.c.b16 %v1651, %v1647
      %v2044 = vpack.c.b16 %v1652, %v1648
      %v2045 = vpack.c.b16 %v1653, %v1649
      %v2046 = vpack.c.b16 %v1658, %v1654
      %v2047 = vpack.c.b16 %v1659, %v1655
      %v2048 = vpack.c.b16 %v1660, %v1656
      %v2049 = vpack.c.b16 %v1661, %v1657
      %v2050 = vpack.c.b16 %v1666, %v1662
      %v2051 = vpack.c.b16 %v1667, %v1663
      %v2052 = vpack.c.b16 %v1668, %v1664
      %v2053 = vpack.c.b16 %v1669, %v1665
      %v2054 = vpack.c.b16 %v1674, %v1670
      %v2055 = vpack.c.b16 %v1675, %v1671
      %v2056 = vpack.c.b16 %v1676, %v1672
      %v2057 = vpack.c.b16 %v1677, %v1673
      %v2058 = vpack.c.b16 %v1682, %v1678
      %v2059 = vpack.c.b16 %v1683, %v1679
      %v2060 = vpack.c.b16 %v1684, %v1680
      %v2061 = vpack.c.b16 %v1685, %v1681
      %v2062 = vpack.c.b16 %v1690, %v1686
      %v2063 = vpack.c.b16 %v1691, %v1687
      %v2064 = vpack.c.b16 %v1692, %v1688
      %v2065 = vpack.c.b16 %v1693, %v1689
      %v2066 = vpack.c.b16 %v1698, %v1694
      %v2067 = vpack.c.b16 %v1699, %v1695
      %v2068 = vpack.c.b16 %v1700, %v1696
      %v2069 = vpack.c.b16 %v1701, %v1697
      %v2070 = vpack.c.b16 %v1706, %v1702
      %v2071 = vpack.c.b16 %v1707, %v1703
      %v2072 = vpack.c.b16 %v1708, %v1704
      %v2073 = vpack.c.b16 %v1709, %v1705
      %v2074 = vpack.c.b16 %v1714, %v1710
      %v2075 = vpack.c.b16 %v1715, %v1711
      %v2076 = vpack.c.b16 %v1716, %v1712
      %v2077 = vpack.c.b16 %v1717, %v1713
      %v2078 = vpack.c.b16 %v1722, %v1718
      %v2079 = vpack.c.b16 %v1723, %v1719
      %v2080 = vpack.c.b16 %v1724, %v1720
      %v2081 = vpack.c.b16 %v1725, %v1721
      %v2082 = vpack.c.b16 %v1730, %v1726
      %v2083 = vpack.c.b16 %v1731, %v1727
      %v2084 = vpack.c.b16 %v1732, %v1728
      %v2085 = vpack.c.b16 %v1733, %v1729
      %v2086 = vpack.c.b16 %v1738, %v1734
      %v2087 = vpack.c.b16 %v1739, %v1735
      %v2088 = vpack.c.b16 %v1740, %v1736
      %v2089 = vpack.c.b16 %v1741, %v1737
      %v2090 = vpack.c.b16 %v1746, %v1742
      %v2091 = vpack.c.b16 %v1747, %v1743
      %v2092 = vpack.c.b16 %v1748, %v1744
      %v2093 = vpack.c.b16 %v1749, %v1745
      %v2094 = vpack.c.b16 %v1754, %v1750
      %v2095 = vpack.c.b16 %v1755, %v1751
      %v2096 = vpack.c.b16 %v1756, %v1752
      %v2097 = vpack.c.b16 %v1757, %v1753
      %v2098 = vpack.c.b16 %v1762, %v1758
      %v2099 = vpack.c.b16 %v1763, %v1759
      %v2100 = vpack.c.b16 %v1764, %v1760
      %v2101 = vpack.c.b16 %v1765, %v1761
      %v2102 = vpack.c.b16 %v1770, %v1766
      %v2103 = vpack.c.b16 %v1771, %v1767
      %v2104 = vpack.c.b16 %v1772, %v1768
      %v2105 = vpack.c.b16 %v1773, %v1769
      %v2106 = vpack.c.b16 %v1778, %v1774
      %v2107 = vpack.c.b16 %v1779, %v1775
      %v2108 = vpack.c.b16 %v1780, %v1776
      %v2109 = vpack.c.b16 %v1781, %v1777
      %v2110 = vpack.c.b16 %v1786, %v1782
      %v2111 = vpack.c.b16 %v1787, %v1783
      %v2112 = vpack.c.b16 %v1788, %v1784
      %v2113 = vpack.c.b16 %v1789, %v1785
      %v2114 = vpack.c.b16 %v1794, %v1790
      %v2115 = vpack.c.b16 %v1795, %v1791
      %v2116 = vpack.c.b16 %v1796, %v1792
      %v2117 = vpack.c.b16 %v1797, %v1793
      %v2118 = vpack.c.b16 %v1802, %v1798
      %v2119 = vpack.c.b16 %v1803, %v1799
      %v2120 = vpack.c.b16 %v1804, %v1800
      %v2121 = vpack.c.b16 %v1805, %v1801
      %v2122 = vpack.c.b16 %v1810, %v1806
      %v2123 = vpack.c.b16 %v1811, %v1807
      %v2124 = vpack.c.b16 %v1812, %v1808
      %v2125 = vpack.c.b16 %v1813, %v1809
      %v2126 = vpack.c.b16 %v1818, %v1814
      %v2127 = vpack.c.b16 %v1819, %v1815
      %v2128 = vpack.c.b16 %v1820, %v1816
      %v2129 = vpack.c.b16 %v1821, %v1817
      %v2130 = vpack.c.b16 %v1826, %v1822
      %v2131 = vpack.c.b16 %v1827, %v1823
      %v2132 = vpack.c.b16 %v1828, %v1824
      %v2133 = vpack.c.b16 %v1829, %v1825
      %v2134 = vpack.c.b16 %v1834, %v1830
      %v2135 = vpack.c.b16 %v1835, %v1831
      %v2136 = vpack.c.b16 %v1836, %v1832
      %v2137 = vpack.c.b16 %v1837, %v1833
      %v2138 = vpack.c.b16 %v1842, %v1838
      %v2139 = vpack.c.b16 %v1843, %v1839
      %v2140 = vpack.c.b16 %v1844, %v1840
      %v2141 = vpack.c.b16 %v1845, %v1841
      %v2142 = vpack.c.b16 %v1850, %v1846
      %v2143 = vpack.c.b16 %v1851, %v1847
      %v2144 = vpack.c.b16 %v1852, %v1848
      %v2145 = vpack.c.b16 %v1853, %v1849
      %v2146 = vpack.c.b16 %v1858, %v1854
      %v2147 = vpack.c.b16 %v1859, %v1855
      %v2148 = vpack.c.b16 %v1860, %v1856
      %v2149 = vpack.c.b16 %v1861, %v1857
      %v2150 = vpack.c.b16 %v1866, %v1862
      %v2151 = vpack.c.b16 %v1867, %v1863
      %v2152 = vpack.c.b16 %v1868, %v1864
      %v2153 = vpack.c.b16 %v1869, %v1865
      %v2154 = vpack.c.b16 %v1874, %v1870
      %v2155 = vpack.c.b16 %v1875, %v1871
      %v2156 = vpack.c.b16 %v1876, %v1872
      %v2157 = vpack.c.b16 %v1877, %v1873
      %v2158 = vpack.c.b16 %v1882, %v1878
      %v2159 = vpack.c.b16 %v1883, %v1879
      %v2160 = vpack.c.b16 %v1884, %v1880
      %v2161 = vpack.c.b16 %v1885, %v1881
      %v2162 = vpack.c.b16 %v1890, %v1886
      %v2163 = vpack.c.b16 %v1891, %v1887
      %v2164 = vpack.c.b16 %v1892, %v1888
      %v2165 = vpack.c.b16 %v1893, %v1889
      %v2166 = vpack.c.b16 %v1898, %v1894
      %v2167 = vpack.c.b16 %v1899, %v1895
      %v2168 = vpack.c.b16 %v1900, %v1896
      %v2169 = vpack.c.b16 %v1901, %v1897
      %v2170 = vpack.c.b16 %v1906, %v1902
      %v2171 = vpack.c.b16 %v1907, %v1903
      %v2172 = vpack.c.b16 %v1908, %v1904
      %v2173 = vpack.c.b16 %v1909, %v1905
      %v2174 = vpack.c.b16 %v1914, %v1910
      %v2175 = vpack.c.b16 %v1915, %v1911
      %v2176 = vpack.c.b16 %v1916, %v1912
      %v2177 = vpack.c.b16 %v1917, %v1913
      %v2178 = vpack.c.b16 %v1922, %v1918
      %v2179 = vpack.c.b16 %v1923, %v1919
      %v2180 = vpack.c.b16 %v1924, %v1920
      %v2181 = vpack.c.b16 %v1925, %v1921
      %2438 = vmatprep.subr.bf16.mxu0 %v1927
      %2439 = vmatpush1.bf16.msra.mxu0 %v1926
      %2440 = vmatprep.subr.bf16.mxu0 %v1931
      %2441 = vmatpush1.bf16.msra.mxu0 %v1930
      %2442 = vmatprep.subr.bf16.mxu0 %v1935
      %2443 = vmatpush1.bf16.msra.mxu0 %v1934
      %2444 = vmatprep.subr.bf16.mxu0 %v1939
      %2445 = vmatpush1.bf16.msra.mxu0 %v1938
      %2446 = vmatprep.subr.bf16.mxu0 %v1943
      %2447 = vmatpush1.bf16.msra.mxu0 %v1942
      %2448 = vmatprep.subr.bf16.mxu0 %v1947
      %2449 = vmatpush1.bf16.msra.mxu0 %v1946
      %2450 = vmatprep.subr.bf16.mxu0 %v1951
      %2451 = vmatpush1.bf16.msra.mxu0 %v1950
      %2452 = vmatprep.subr.bf16.mxu0 %v1955
      %2453 = vmatpush1.bf16.msra.mxu0 %v1954
      %2454 = vmatprep.subr.bf16.mxu0 %v1959
      %2455 = vmatpush1.bf16.msra.mxu0 %v1958
      %2456 = vmatprep.subr.bf16.mxu0 %v1963
      %2457 = vmatpush1.bf16.msra.mxu0 %v1962
      %2458 = vmatprep.subr.bf16.mxu0 %v1967
      %2459 = vmatpush1.bf16.msra.mxu0 %v1966
      %2460 = vmatprep.subr.bf16.mxu0 %v1971
      %2461 = vmatpush1.bf16.msra.mxu0 %v1970
      %2462 = vmatprep.subr.bf16.mxu0 %v1975
      %2463 = vmatpush1.bf16.msra.mxu0 %v1974
      %2464 = vmatprep.subr.bf16.mxu0 %v1979
      %2465 = vmatpush1.bf16.msra.mxu0 %v1978
      %2466 = vmatprep.subr.bf16.mxu0 %v1983
      %2467 = vmatpush1.bf16.msra.mxu0 %v1982
      %2468 = vmatprep.subr.bf16.mxu0 %v1987
      %2469 = vmatpush1.bf16.msra.mxu0 %v1986
      %2470 = vmatprep.mubr.bf16.mxu0 %v1129
      %2471 = vmatmul.mubr.bf16.gmra.mrb[0].mxu0 %v1128
      %v2472 = vpop.f32.mrb[0].mxu0
      %v2473 = vadd.f32 %v1141, %v2472
      %v2474 = vpop.f32.mrb[0].mxu0
      %v2475 = vadd.f32 %v1145, %v2474
      %v2476 = vpop.f32.mrb[0].mxu0
      %v2477 = vpop.f32.mrb[0].mxu0
      %2478 = vdwg.mxu0
      %2479 = vmatprep.subr.bf16.mxu0 %v1991
      %2480 = vmatpush1.bf16.msra.mxu0 %v1990
      %2481 = vmatprep.subr.bf16.mxu0 %v1995
      %2482 = vmatpush1.bf16.msra.mxu0 %v1994
      %2483 = vmatprep.subr.bf16.mxu0 %v1999
      %2484 = vmatpush1.bf16.msra.mxu0 %v1998
      %2485 = vmatprep.subr.bf16.mxu0 %v2003
      %2486 = vmatpush1.bf16.msra.mxu0 %v2002
      %2487 = vmatprep.subr.bf16.mxu0 %v2007
      %2488 = vmatpush1.bf16.msra.mxu0 %v2006
      %2489 = vmatprep.subr.bf16.mxu0 %v2011
      %2490 = vmatpush1.bf16.msra.mxu0 %v2010
      %2491 = vmatprep.subr.bf16.mxu0 %v2015
      %2492 = vmatpush1.bf16.msra.mxu0 %v2014
      %2493 = vmatprep.subr.bf16.mxu0 %v2019
      %2494 = vmatpush1.bf16.msra.mxu0 %v2018
      %2495 = vmatprep.subr.bf16.mxu0 %v2023
      %2496 = vmatpush1.bf16.msra.mxu0 %v2022
      %2497 = vmatprep.subr.bf16.mxu0 %v2027
      %2498 = vmatpush1.bf16.msra.mxu0 %v2026
      %2499 = vmatprep.subr.bf16.mxu0 %v2031
      %2500 = vmatpush1.bf16.msra.mxu0 %v2030
      %2501 = vmatprep.subr.bf16.mxu0 %v2035
      %2502 = vmatpush1.bf16.msra.mxu0 %v2034
      %2503 = vmatprep.subr.bf16.mxu0 %v2039
      %2504 = vmatpush1.bf16.msra.mxu0 %v2038
      %2505 = vmatprep.subr.bf16.mxu0 %v2043
      %2506 = vmatpush1.bf16.msra.mxu0 %v2042
      %2507 = vmatprep.subr.bf16.mxu0 %v2047
      %2508 = vmatpush1.bf16.msra.mxu0 %v2046
      %2509 = vmatprep.subr.bf16.mxu0 %v2051
      %2510 = vmatpush1.bf16.msra.mxu0 %v2050
      %2511 = vmatprep.mubr.bf16.mxu0 %v1131
      %2512 = vmatmul.mubr.bf16.gmra.mrb[0].mxu0 %v1130
      %v2513 = vpop.f32.mrb[0].mxu0
      %v2514 = vadd.f32 %v2473, %v2513
      %v2515 = vpop.f32.mrb[0].mxu0
      %v2516 = vadd.f32 %v2475, %v2515
      %v2517 = vpop.f32.mrb[0].mxu0
      %v2518 = vpop.f32.mrb[0].mxu0
      %2519 = vdwg.mxu0
      %2520 = vmatprep.subr.bf16.mxu0 %v2055
      %2521 = vmatpush1.bf16.msra.mxu0 %v2054
      %2522 = vmatprep.subr.bf16.mxu0 %v2059
      %2523 = vmatpush1.bf16.msra.mxu0 %v2058
      %2524 = vmatprep.subr.bf16.mxu0 %v2063
      %2525 = vmatpush1.bf16.msra.mxu0 %v2062
      %2526 = vmatprep.subr.bf16.mxu0 %v2067
      %2527 = vmatpush1.bf16.msra.mxu0 %v2066
      %2528 = vmatprep.subr.bf16.mxu0 %v2071
      %2529 = vmatpush1.bf16.msra.mxu0 %v2070
      %2530 = vmatprep.subr.bf16.mxu0 %v2075
      %2531 = vmatpush1.bf16.msra.mxu0 %v2074
      %2532 = vmatprep.subr.bf16.mxu0 %v2079
      %2533 = vmatpush1.bf16.msra.mxu0 %v2078
      %2534 = vmatprep.subr.bf16.mxu0 %v2083
      %2535 = vmatpush1.bf16.msra.mxu0 %v2082
      %2536 = vmatprep.subr.bf16.mxu0 %v2087
      %2537 = vmatpush1.bf16.msra.mxu0 %v2086
      %2538 = vmatprep.subr.bf16.mxu0 %v2091
      %2539 = vmatpush1.bf16.msra.mxu0 %v2090
      %2540 = vmatprep.subr.bf16.mxu0 %v2095
      %2541 = vmatpush1.bf16.msra.mxu0 %v2094
      %2542 = vmatprep.subr.bf16.mxu0 %v2099
      %2543 = vmatpush1.bf16.msra.mxu0 %v2098
      %2544 = vmatprep.subr.bf16.mxu0 %v2103
      %2545 = vmatpush1.bf16.msra.mxu0 %v2102
      %2546 = vmatprep.subr.bf16.mxu0 %v2107
      %2547 = vmatpush1.bf16.msra.mxu0 %v2106
      %2548 = vmatprep.subr.bf16.mxu0 %v2111
      %2549 = vmatpush1.bf16.msra.mxu0 %v2110
      %2550 = vmatprep.subr.bf16.mxu0 %v2115
      %2551 = vmatpush1.bf16.msra.mxu0 %v2114
      %2552 = vmatprep.mubr.bf16.mxu0 %v1133
      %2553 = vmatmul.mubr.bf16.gmra.mrb[0].mxu0 %v1132
      %v2554 = vpop.f32.mrb[0].mxu0
      %v2555 = vadd.f32 %v2514, %v2554
      %v2556 = vpop.f32.mrb[0].mxu0
      %v2557 = vadd.f32 %v2516, %v2556
      %v2558 = vpop.f32.mrb[0].mxu0
      %v2559 = vpop.f32.mrb[0].mxu0
      %2560 = vdwg.mxu0
      %2561 = vmatprep.subr.bf16.mxu0 %v2119
      %2562 = vmatpush1.bf16.msra.mxu0 %v2118
      %2563 = vmatprep.subr.bf16.mxu0 %v2123
      %2564 = vmatpush1.bf16.msra.mxu0 %v2122
      %2565 = vmatprep.subr.bf16.mxu0 %v2127
      %2566 = vmatpush1.bf16.msra.mxu0 %v2126
      %2567 = vmatprep.subr.bf16.mxu0 %v2131
      %2568 = vmatpush1.bf16.msra.mxu0 %v2130
      %2569 = vmatprep.subr.bf16.mxu0 %v2135
      %2570 = vmatpush1.bf16.msra.mxu0 %v2134
      %2571 = vmatprep.subr.bf16.mxu0 %v2139
      %2572 = vmatpush1.bf16.msra.mxu0 %v2138
      %2573 = vmatprep.subr.bf16.mxu0 %v2143
      %2574 = vmatpush1.bf16.msra.mxu0 %v2142
      %2575 = vmatprep.subr.bf16.mxu0 %v2147
      %2576 = vmatpush1.bf16.msra.mxu0 %v2146
      %2577 = vmatprep.subr.bf16.mxu0 %v2151
      %2578 = vmatpush1.bf16.msra.mxu0 %v2150
      %2579 = vmatprep.subr.bf16.mxu0 %v2155
      %2580 = vmatpush1.bf16.msra.mxu0 %v2154
      %2581 = vmatprep.subr.bf16.mxu0 %v2159
      %2582 = vmatpush1.bf16.msra.mxu0 %v2158
      %2583 = vmatprep.subr.bf16.mxu0 %v2163
      %2584 = vmatpush1.bf16.msra.mxu0 %v2162
      %2585 = vmatprep.subr.bf16.mxu0 %v2167
      %2586 = vmatpush1.bf16.msra.mxu0 %v2166
      %2587 = vmatprep.subr.bf16.mxu0 %v2171
      %2588 = vmatpush1.bf16.msra.mxu0 %v2170
      %2589 = vmatprep.subr.bf16.mxu0 %v2175
      %2590 = vmatpush1.bf16.msra.mxu0 %v2174
      %2591 = vmatprep.subr.bf16.mxu0 %v2179
      %2592 = vmatpush1.bf16.msra.mxu0 %v2178
      %2593 = vmatprep.mubr.bf16.mxu0 %v1135
      %2594 = vmatmul.mubr.bf16.gmra.mrb[0].mxu0 %v1134
      %v2595 = vpop.f32.mrb[0].mxu0
      %v2596 = vadd.f32 %v2555, %v2595
      %v2597 = vpop.f32.mrb[0].mxu0
      %v2598 = vadd.f32 %v2557, %v2597
      %v2599 = vpop.f32.mrb[0].mxu0
      %v2600 = vpop.f32.mrb[0].mxu0
      %2601 = vdwg.mxu0
      %2602 = vmatprep.subr.bf16.mxu0 %v1929
      %2603 = vmatpush1.bf16.msra.mxu0 %v1928
      %2604 = vmatprep.subr.bf16.mxu0 %v1933
      %2605 = vmatpush1.bf16.msra.mxu0 %v1932
      %2606 = vmatprep.subr.bf16.mxu0 %v1937
      %2607 = vmatpush1.bf16.msra.mxu0 %v1936
      %2608 = vmatprep.subr.bf16.mxu0 %v1941
      %2609 = vmatpush1.bf16.msra.mxu0 %v1940
      %2610 = vmatprep.subr.bf16.mxu0 %v1945
      %2611 = vmatpush1.bf16.msra.mxu0 %v1944
      %2612 = vmatprep.subr.bf16.mxu0 %v1949
      %2613 = vmatpush1.bf16.msra.mxu0 %v1948
      %2614 = vmatprep.subr.bf16.mxu0 %v1953
      %2615 = vmatpush1.bf16.msra.mxu0 %v1952
      %2616 = vmatprep.subr.bf16.mxu0 %v1957
      %2617 = vmatpush1.bf16.msra.mxu0 %v1956
      %2618 = vmatprep.subr.bf16.mxu0 %v1961
      %2619 = vmatpush1.bf16.msra.mxu0 %v1960
      %2620 = vmatprep.subr.bf16.mxu0 %v1965
      %2621 = vmatpush1.bf16.msra.mxu0 %v1964
      %2622 = vmatprep.subr.bf16.mxu0 %v1969
      %2623 = vmatpush1.bf16.msra.mxu0 %v1968
      %2624 = vmatprep.subr.bf16.mxu0 %v1973
      %2625 = vmatpush1.bf16.msra.mxu0 %v1972
      %2626 = vmatprep.subr.bf16.mxu0 %v1977
      %2627 = vmatpush1.bf16.msra.mxu0 %v1976
      %2628 = vmatprep.subr.bf16.mxu0 %v1981
      %2629 = vmatpush1.bf16.msra.mxu0 %v1980
      %2630 = vmatprep.subr.bf16.mxu0 %v1985
      %2631 = vmatpush1.bf16.msra.mxu0 %v1984
      %2632 = vmatprep.subr.bf16.mxu0 %v1989
      %2633 = vmatpush1.bf16.msra.mxu0 %v1988
      %2634 = vmatprep.mubr.bf16.mxu0 %v1129
      %2635 = vmatmul.mubr.bf16.gmra.mrb[0].mxu0 %v1128
      %v2636 = vpop.f32.mrb[0].mxu0
      %v2637 = vadd.f32 %v1149, %v2636
      %v2638 = vpop.f32.mrb[0].mxu0
      %v2639 = vadd.f32 %v1153, %v2638
      %v2640 = vpop.f32.mrb[0].mxu0
      %v2641 = vpop.f32.mrb[0].mxu0
      %2642 = vdwg.mxu0
      %2643 = vmatprep.subr.bf16.mxu0 %v1993
      %2644 = vmatpush1.bf16.msra.mxu0 %v1992
      %2645 = vmatprep.subr.bf16.mxu0 %v1997
      %2646 = vmatpush1.bf16.msra.mxu0 %v1996
      %2647 = vmatprep.subr.bf16.mxu0 %v2001
      %2648 = vmatpush1.bf16.msra.mxu0 %v2000
      %2649 = vmatprep.subr.bf16.mxu0 %v2005
      %2650 = vmatpush1.bf16.msra.mxu0 %v2004
      %2651 = vmatprep.subr.bf16.mxu0 %v2009
      %2652 = vmatpush1.bf16.msra.mxu0 %v2008
      %2653 = vmatprep.subr.bf16.mxu0 %v2013
      %2654 = vmatpush1.bf16.msra.mxu0 %v2012
      %2655 = vmatprep.subr.bf16.mxu0 %v2017
      %2656 = vmatpush1.bf16.msra.mxu0 %v2016
      %2657 = vmatprep.subr.bf16.mxu0 %v2021
      %2658 = vmatpush1.bf16.msra.mxu0 %v2020
      %2659 = vmatprep.subr.bf16.mxu0 %v2025
      %2660 = vmatpush1.bf16.msra.mxu0 %v2024
      %2661 = vmatprep.subr.bf16.mxu0 %v2029
      %2662 = vmatpush1.bf16.msra.mxu0 %v2028
      %2663 = vmatprep.subr.bf16.mxu0 %v2033
      %2664 = vmatpush1.bf16.msra.mxu0 %v2032
      %2665 = vmatprep.subr.bf16.mxu0 %v2037
      %2666 = vmatpush1.bf16.msra.mxu0 %v2036
      %2667 = vmatprep.subr.bf16.mxu0 %v2041
      %2668 = vmatpush1.bf16.msra.mxu0 %v2040
      %2669 = vmatprep.subr.bf16.mxu0 %v2045
      %2670 = vmatpush1.bf16.msra.mxu0 %v2044
      %2671 = vmatprep.subr.bf16.mxu0 %v2049
      %2672 = vmatpush1.bf16.msra.mxu0 %v2048
      %2673 = vmatprep.subr.bf16.mxu0 %v2053
      %2674 = vmatpush1.bf16.msra.mxu0 %v2052
      %2675 = vmatprep.mubr.bf16.mxu0 %v1131
      %2676 = vmatmul.mubr.bf16.gmra.mrb[0].mxu0 %v1130
      %v2677 = vpop.f32.mrb[0].mxu0
      %v2678 = vadd.f32 %v2637, %v2677
      %v2679 = vpop.f32.mrb[0].mxu0
      %v2680 = vadd.f32 %v2639, %v2679
      %v2681 = vpop.f32.mrb[0].mxu0
      %v2682 = vpop.f32.mrb[0].mxu0
      %2683 = vdwg.mxu0
      %2684 = vmatprep.subr.bf16.mxu0 %v2057
      %2685 = vmatpush1.bf16.msra.mxu0 %v2056
      %2686 = vmatprep.subr.bf16.mxu0 %v2061
      %2687 = vmatpush1.bf16.msra.mxu0 %v2060
      %2688 = vmatprep.subr.bf16.mxu0 %v2065
      %2689 = vmatpush1.bf16.msra.mxu0 %v2064
      %2690 = vmatprep.subr.bf16.mxu0 %v2069
      %2691 = vmatpush1.bf16.msra.mxu0 %v2068
      %2692 = vmatprep.subr.bf16.mxu0 %v2073
      %2693 = vmatpush1.bf16.msra.mxu0 %v2072
      %2694 = vmatprep.subr.bf16.mxu0 %v2077
      %2695 = vmatpush1.bf16.msra.mxu0 %v2076
      %2696 = vmatprep.subr.bf16.mxu0 %v2081
      %2697 = vmatpush1.bf16.msra.mxu0 %v2080
      %2698 = vmatprep.subr.bf16.mxu0 %v2085
      %2699 = vmatpush1.bf16.msra.mxu0 %v2084
      %2700 = vmatprep.subr.bf16.mxu0 %v2089
      %2701 = vmatpush1.bf16.msra.mxu0 %v2088
      %2702 = vmatprep.subr.bf16.mxu0 %v2093
      %2703 = vmatpush1.bf16.msra.mxu0 %v2092
      %2704 = vmatprep.subr.bf16.mxu0 %v2097
      %2705 = vmatpush1.bf16.msra.mxu0 %v2096
      %2706 = vmatprep.subr.bf16.mxu0 %v2101
      %2707 = vmatpush1.bf16.msra.mxu0 %v2100
      %2708 = vmatprep.subr.bf16.mxu0 %v2105
      %2709 = vmatpush1.bf16.msra.mxu0 %v2104
      %2710 = vmatprep.subr.bf16.mxu0 %v2109
      %2711 = vmatpush1.bf16.msra.mxu0 %v2108
      %2712 = vmatprep.subr.bf16.mxu0 %v2113
      %2713 = vmatpush1.bf16.msra.mxu0 %v2112
      %2714 = vmatprep.subr.bf16.mxu0 %v2117
      %2715 = vmatpush1.bf16.msra.mxu0 %v2116
      %2716 = vmatprep.mubr.bf16.mxu0 %v1133
      %2717 = vmatmul.mubr.bf16.gmra.mrb[0].mxu0 %v1132
      %v2718 = vpop.f32.mrb[0].mxu0
      %v2719 = vadd.f32 %v2678, %v2718
      %v2720 = vpop.f32.mrb[0].mxu0
      %v2721 = vadd.f32 %v2680, %v2720
      %v2722 = vpop.f32.mrb[0].mxu0
      %v2723 = vpop.f32.mrb[0].mxu0
      %2724 = vdwg.mxu0
      %2725 = vmatprep.subr.bf16.mxu0 %v2121
      %2726 = vmatpush1.bf16.msra.mxu0 %v2120
      %2727 = vmatprep.subr.bf16.mxu0 %v2125
      %2728 = vmatpush1.bf16.msra.mxu0 %v2124
      %2729 = vmatprep.subr.bf16.mxu0 %v2129
      %2730 = vmatpush1.bf16.msra.mxu0 %v2128
      %2731 = vmatprep.subr.bf16.mxu0 %v2133
      %2732 = vmatpush1.bf16.msra.mxu0 %v2132
      %2733 = vmatprep.subr.bf16.mxu0 %v2137
      %2734 = vmatpush1.bf16.msra.mxu0 %v2136
      %2735 = vmatprep.subr.bf16.mxu0 %v2141
      %2736 = vmatpush1.bf16.msra.mxu0 %v2140
      %2737 = vmatprep.subr.bf16.mxu0 %v2145
      %2738 = vmatpush1.bf16.msra.mxu0 %v2144
      %2739 = vmatprep.subr.bf16.mxu0 %v2149
      %2740 = vmatpush1.bf16.msra.mxu0 %v2148
      %2741 = vmatprep.subr.bf16.mxu0 %v2153
      %2742 = vmatpush1.bf16.msra.mxu0 %v2152
      %2743 = vmatprep.subr.bf16.mxu0 %v2157
      %2744 = vmatpush1.bf16.msra.mxu0 %v2156
      %2745 = vmatprep.subr.bf16.mxu0 %v2161
      %2746 = vmatpush1.bf16.msra.mxu0 %v2160
      %2747 = vmatprep.subr.bf16.mxu0 %v2165
      %2748 = vmatpush1.bf16.msra.mxu0 %v2164
      %2749 = vmatprep.subr.bf16.mxu0 %v2169
      %2750 = vmatpush1.bf16.msra.mxu0 %v2168
      %2751 = vmatprep.subr.bf16.mxu0 %v2173
      %2752 = vmatpush1.bf16.msra.mxu0 %v2172
      %2753 = vmatprep.subr.bf16.mxu0 %v2177
      %2754 = vmatpush1.bf16.msra.mxu0 %v2176
      %2755 = vmatprep.subr.bf16.mxu0 %v2181
      %2756 = vmatpush1.bf16.msra.mxu0 %v2180
      %2757 = vmatprep.mubr.bf16.mxu0 %v1135
      %2758 = vmatmul.mubr.bf16.gmra.mrb[0].mxu0 %v1134
      %v2759 = vpop.f32.mrb[0].mxu0
      %v2760 = vadd.f32 %v2719, %v2759
      %v2761 = vpop.f32.mrb[0].mxu0
      %v2762 = vadd.f32 %v2721, %v2761
      %v2763 = vpop.f32.mrb[0].mxu0
      %v2764 = vpop.f32.mrb[0].mxu0
      %2765 = vdwg.mxu0
      %vm2766 = vcmp.gt.f32.partialorder %v2596, 0.0
      %vm2767 = vcmp.gt.f32.partialorder %v2598, 0.0
      %vm2768 = vcmp.gt.f32.partialorder %v2760, 0.0
      %vm2769 = vcmp.gt.f32.partialorder %v2762, 0.0
      %v2770 = vstv %s246
      %v2771 = vmul.f32 %v2770, %v2596
      %v2772 = vmul.f32 %v2770, %v2598
      %v2773 = vmul.f32 %v2770, %v2760
      %v2774 = vmul.f32 %v2770, %v2762
      %v2775 = vsel %vm2766, %v2596, %v2771
      %v2776 = vsel %vm2767, %v2598, %v2772
      %v2777 = vsel %vm2768, %v2760, %v2773
      %v2778 = vsel %vm2769, %v2762, %v2774
      %v2779 = vld [vmem:[#allocation10] sm:$0xff]
      %v2780 = vld [vmem:[#allocation10 + $0x8] sm:$0xff]
      %v2781 = vld [vmem:[#allocation10 + $0x10] sm:$0xff]
      %v2782 = vld [vmem:[#allocation10 + $0x18] sm:$0xff]
      %v2783 = vld [vmem:[#allocation10 + $0x20] sm:$0xff]
      %v2784 = vld [vmem:[#allocation10 + $0x28] sm:$0xff]
      %v2785 = vld [vmem:[#allocation10 + $0x30] sm:$0xff]
      %v2786 = vld [vmem:[#allocation10 + $0x38] sm:$0xff]
      %v2787 = vld [vmem:[#allocation10 + $0x40] sm:$0xff]
      %v2788 = vld [vmem:[#allocation10 + $0x48] sm:$0xff]
      %v2789 = vld [vmem:[#allocation10 + $0x50] sm:$0xff]
      %v2790 = vld [vmem:[#allocation10 + $0x58] sm:$0xff]
      %v2791 = vld [vmem:[#allocation10 + $0x60] sm:$0xff]
      %v2792 = vld [vmem:[#allocation10 + $0x68] sm:$0xff]
      %v2793 = vld [vmem:[#allocation10 + $0x70] sm:$0xff]
      %v2794 = vld [vmem:[#allocation10 + $0x78] sm:$0xff]
      %v2795 = vld [vmem:[#allocation10 + $0x80] sm:$0xff]
      %v2796 = vld [vmem:[#allocation10 + $0x88] sm:$0xff]
      %v2797 = vld [vmem:[#allocation10 + $0x90] sm:$0xff]
      %v2798 = vld [vmem:[#allocation10 + $0x98] sm:$0xff]
      %v2799 = vld [vmem:[#allocation10 + $0xa0] sm:$0xff]
      %v2800 = vld [vmem:[#allocation10 + $0xa8] sm:$0xff]
      %v2801 = vld [vmem:[#allocation10 + $0xb0] sm:$0xff]
      %v2802 = vld [vmem:[#allocation10 + $0xb8] sm:$0xff]
      %v2803 = vld [vmem:[#allocation10 + $0xc0] sm:$0xff]
      %v2804 = vld [vmem:[#allocation10 + $0xc8] sm:$0xff]
      %v2805 = vld [vmem:[#allocation10 + $0xd0] sm:$0xff]
      %v2806 = vld [vmem:[#allocation10 + $0xd8] sm:$0xff]
      %v2807 = vld [vmem:[#allocation10 + $0xe0] sm:$0xff]
      %v2808 = vld [vmem:[#allocation10 + $0xe8] sm:$0xff]
      %v2809 = vld [vmem:[#allocation10 + $0xf0] sm:$0xff]
      %v2810 = vld [vmem:[#allocation10 + $0xf8] sm:$0xff]
      %v2811 = vld [vmem:[#allocation10 + $0x100] sm:$0xff]
      %v2812 = vld [vmem:[#allocation10 + $0x108] sm:$0xff]
      %v2813 = vld [vmem:[#allocation10 + $0x110] sm:$0xff]
      %v2814 = vld [vmem:[#allocation10 + $0x118] sm:$0xff]
      %v2815 = vld [vmem:[#allocation10 + $0x120] sm:$0xff]
      %v2816 = vld [vmem:[#allocation10 + $0x128] sm:$0xff]
      %v2817 = vld [vmem:[#allocation10 + $0x130] sm:$0xff]
      %v2818 = vld [vmem:[#allocation10 + $0x138] sm:$0xff]
      %v2819 = vld [vmem:[#allocation10 + $0x140] sm:$0xff]
      %v2820 = vld [vmem:[#allocation10 + $0x148] sm:$0xff]
      %v2821 = vld [vmem:[#allocation10 + $0x150] sm:$0xff]
      %v2822 = vld [vmem:[#allocation10 + $0x158] sm:$0xff]
      %v2823 = vld [vmem:[#allocation10 + $0x160] sm:$0xff]
      %v2824 = vld [vmem:[#allocation10 + $0x168] sm:$0xff]
      %v2825 = vld [vmem:[#allocation10 + $0x170] sm:$0xff]
      %v2826 = vld [vmem:[#allocation10 + $0x178] sm:$0xff]
      %v2827 = vld [vmem:[#allocation10 + $0x180] sm:$0xff]
      %v2828 = vld [vmem:[#allocation10 + $0x188] sm:$0xff]
      %v2829 = vld [vmem:[#allocation10 + $0x190] sm:$0xff]
      %v2830 = vld [vmem:[#allocation10 + $0x198] sm:$0xff]
      %v2831 = vld [vmem:[#allocation10 + $0x1a0] sm:$0xff]
      %v2832 = vld [vmem:[#allocation10 + $0x1a8] sm:$0xff]
      %v2833 = vld [vmem:[#allocation10 + $0x1b0] sm:$0xff]
      %v2834 = vld [vmem:[#allocation10 + $0x1b8] sm:$0xff]
      %v2835 = vld [vmem:[#allocation10 + $0x1c0] sm:$0xff]
      %v2836 = vld [vmem:[#allocation10 + $0x1c8] sm:$0xff]
      %v2837 = vld [vmem:[#allocation10 + $0x1d0] sm:$0xff]
      %v2838 = vld [vmem:[#allocation10 + $0x1d8] sm:$0xff]
      %v2839 = vld [vmem:[#allocation10 + $0x1e0] sm:$0xff]
      %v2840 = vld [vmem:[#allocation10 + $0x1e8] sm:$0xff]
      %v2841 = vld [vmem:[#allocation10 + $0x1f0] sm:$0xff]
      %v2842 = vld [vmem:[#allocation10 + $0x1f8] sm:$0xff]
      %v2843 = vpack.c.bf16 %v2775, %v2775
      %v2844 = vpack.c.bf16 %v2776, %v2776
      %v2845 = vpack.c.bf16 %v2777, %v2777
      %v2846 = vpack.c.bf16 %v2778, %v2778
      %v2847 = vld [vmem:[#allocation12] sm:$0x3]
      %v2849 = vlaneseq
      %v2850 = vshrl.u32 %v2849, 7
      %v2851 = vsub.s32 0, %v2850
      %v2852 = vrot.slane %v2847, %v2851
      %v2853 = vlaneseq
      %v2854 = vshrl.u32 %v2853, 7
      %v2855 = vsub.s32 1, %v2854
      %v2856 = vrot.slane %v2847, %v2855
      %v2923 = vunpack.c.l.b16 %v2779
      %v2924 = vunpack.c.h.b16 %v2779
      %v2925 = vunpack.c.l.b16 %v2780
      %v2926 = vunpack.c.h.b16 %v2780
      %v2927 = vunpack.c.l.b16 %v2781
      %v2928 = vunpack.c.h.b16 %v2781
      %v2929 = vunpack.c.l.b16 %v2782
      %v2930 = vunpack.c.h.b16 %v2782
      %v2931 = vunpack.c.l.b16 %v2783
      %v2932 = vunpack.c.h.b16 %v2783
      %v2933 = vunpack.c.l.b16 %v2784
      %v2934 = vunpack.c.h.b16 %v2784
      %v2935 = vunpack.c.l.b16 %v2785
      %v2936 = vunpack.c.h.b16 %v2785
      %v2937 = vunpack.c.l.b16 %v2786
      %v2938 = vunpack.c.h.b16 %v2786
      %v2939 = vunpack.c.l.b16 %v2787
      %v2940 = vunpack.c.h.b16 %v2787
      %v2941 = vunpack.c.l.b16 %v2788
      %v2942 = vunpack.c.h.b16 %v2788
      %v2943 = vunpack.c.l.b16 %v2789
      %v2944 = vunpack.c.h.b16 %v2789
      %v2945 = vunpack.c.l.b16 %v2790
      %v2946 = vunpack.c.h.b16 %v2790
      %v2947 = vunpack.c.l.b16 %v2791
      %v2948 = vunpack.c.h.b16 %v2791
      %v2949 = vunpack.c.l.b16 %v2792
      %v2950 = vunpack.c.h.b16 %v2792
      %v2951 = vunpack.c.l.b16 %v2793
      %v2952 = vunpack.c.h.b16 %v2793
      %v2953 = vunpack.c.l.b16 %v2794
      %v2954 = vunpack.c.h.b16 %v2794
      %v2955 = vunpack.c.l.b16 %v2795
      %v2956 = vunpack.c.h.b16 %v2795
      %v2957 = vunpack.c.l.b16 %v2796
      %v2958 = vunpack.c.h.b16 %v2796
      %v2959 = vunpack.c.l.b16 %v2797
      %v2960 = vunpack.c.h.b16 %v2797
      %v2961 = vunpack.c.l.b16 %v2798
      %v2962 = vunpack.c.h.b16 %v2798
      %v2963 = vunpack.c.l.b16 %v2799
      %v2964 = vunpack.c.h.b16 %v2799
      %v2965 = vunpack.c.l.b16 %v2800
      %v2966 = vunpack.c.h.b16 %v2800
      %v2967 = vunpack.c.l.b16 %v2801
      %v2968 = vunpack.c.h.b16 %v2801
      %v2969 = vunpack.c.l.b16 %v2802
      %v2970 = vunpack.c.h.b16 %v2802
      %v2971 = vunpack.c.l.b16 %v2803
      %v2972 = vunpack.c.h.b16 %v2803
      %v2973 = vunpack.c.l.b16 %v2804
      %v2974 = vunpack.c.h.b16 %v2804
      %v2975 = vunpack.c.l.b16 %v2805
      %v2976 = vunpack.c.h.b16 %v2805
      %v2977 = vunpack.c.l.b16 %v2806
      %v2978 = vunpack.c.h.b16 %v2806
      %v2979 = vunpack.c.l.b16 %v2807
      %v2980 = vunpack.c.h.b16 %v2807
      %v2981 = vunpack.c.l.b16 %v2808
      %v2982 = vunpack.c.h.b16 %v2808
      %v2983 = vunpack.c.l.b16 %v2809
      %v2984 = vunpack.c.h.b16 %v2809
      %v2985 = vunpack.c.l.b16 %v2810
      %v2986 = vunpack.c.h.b16 %v2810
      %v2987 = vunpack.c.l.b16 %v2811
      %v2988 = vunpack.c.h.b16 %v2811
      %v2989 = vunpack.c.l.b16 %v2812
      %v2990 = vunpack.c.h.b16 %v2812
      %v2991 = vunpack.c.l.b16 %v2813
      %v2992 = vunpack.c.h.b16 %v2813
      %v2993 = vunpack.c.l.b16 %v2814
      %v2994 = vunpack.c.h.b16 %v2814
      %v2995 = vunpack.c.l.b16 %v2815
      %v2996 = vunpack.c.h.b16 %v2815
      %v2997 = vunpack.c.l.b16 %v2816
      %v2998 = vunpack.c.h.b16 %v2816
      %v2999 = vunpack.c.l.b16 %v2817
      %v3000 = vunpack.c.h.b16 %v2817
      %v3001 = vunpack.c.l.b16 %v2818
      %v3002 = vunpack.c.h.b16 %v2818
      %v3003 = vunpack.c.l.b16 %v2819
      %v3004 = vunpack.c.h.b16 %v2819
      %v3005 = vunpack.c.l.b16 %v2820
      %v3006 = vunpack.c.h.b16 %v2820
      %v3007 = vunpack.c.l.b16 %v2821
      %v3008 = vunpack.c.h.b16 %v2821
      %v3009 = vunpack.c.l.b16 %v2822
      %v3010 = vunpack.c.h.b16 %v2822
      %v3011 = vunpack.c.l.b16 %v2823
      %v3012 = vunpack.c.h.b16 %v2823
      %v3013 = vunpack.c.l.b16 %v2824
      %v3014 = vunpack.c.h.b16 %v2824
      %v3015 = vunpack.c.l.b16 %v2825
      %v3016 = vunpack.c.h.b16 %v2825
      %v3017 = vunpack.c.l.b16 %v2826
      %v3018 = vunpack.c.h.b16 %v2826
      %v3019 = vunpack.c.l.b16 %v2827
      %v3020 = vunpack.c.h.b16 %v2827
      %v3021 = vunpack.c.l.b16 %v2828
      %v3022 = vunpack.c.h.b16 %v2828
      %v3023 = vunpack.c.l.b16 %v2829
      %v3024 = vunpack.c.h.b16 %v2829
      %v3025 = vunpack.c.l.b16 %v2830
      %v3026 = vunpack.c.h.b16 %v2830
      %v3027 = vunpack.c.l.b16 %v2831
      %v3028 = vunpack.c.h.b16 %v2831
      %v3029 = vunpack.c.l.b16 %v2832
      %v3030 = vunpack.c.h.b16 %v2832
      %v3031 = vunpack.c.l.b16 %v2833
      %v3032 = vunpack.c.h.b16 %v2833
      %v3033 = vunpack.c.l.b16 %v2834
      %v3034 = vunpack.c.h.b16 %v2834
      %v3035 = vunpack.c.l.b16 %v2835
      %v3036 = vunpack.c.h.b16 %v2835
      %v3037 = vunpack.c.l.b16 %v2836
      %v3038 = vunpack.c.h.b16 %v2836
      %v3039 = vunpack.c.l.b16 %v2837
      %v3040 = vunpack.c.h.b16 %v2837
      %v3041 = vunpack.c.l.b16 %v2838
      %v3042 = vunpack.c.h.b16 %v2838
      %v3043 = vunpack.c.l.b16 %v2839
      %v3044 = vunpack.c.h.b16 %v2839
      %v3045 = vunpack.c.l.b16 %v2840
      %v3046 = vunpack.c.h.b16 %v2840
      %v3047 = vunpack.c.l.b16 %v2841
      %v3048 = vunpack.c.h.b16 %v2841
      %v3049 = vunpack.c.l.b16 %v2842
      %v3050 = vunpack.c.h.b16 %v2842
      %v3051 = vpack.c.b16 %v2925, %v2923
      %v3052 = vpack.c.b16 %v2926, %v2924
      %v3053 = vpack.c.b16 %v2929, %v2927
      %v3054 = vpack.c.b16 %v2930, %v2928
      %v3055 = vpack.c.b16 %v2933, %v2931
      %v3056 = vpack.c.b16 %v2934, %v2932
      %v3057 = vpack.c.b16 %v2937, %v2935
      %v3058 = vpack.c.b16 %v2938, %v2936
      %v3059 = vpack.c.b16 %v2941, %v2939
      %v3060 = vpack.c.b16 %v2942, %v2940
      %v3061 = vpack.c.b16 %v2945, %v2943
      %v3062 = vpack.c.b16 %v2946, %v2944
      %v3063 = vpack.c.b16 %v2949, %v2947
      %v3064 = vpack.c.b16 %v2950, %v2948
      %v3065 = vpack.c.b16 %v2953, %v2951
      %v3066 = vpack.c.b16 %v2954, %v2952
      %v3067 = vpack.c.b16 %v2957, %v2955
      %v3068 = vpack.c.b16 %v2958, %v2956
      %v3069 = vpack.c.b16 %v2961, %v2959
      %v3070 = vpack.c.b16 %v2962, %v2960
      %v3071 = vpack.c.b16 %v2965, %v2963
      %v3072 = vpack.c.b16 %v2966, %v2964
      %v3073 = vpack.c.b16 %v2969, %v2967
      %v3074 = vpack.c.b16 %v2970, %v2968
      %v3075 = vpack.c.b16 %v2973, %v2971
      %v3076 = vpack.c.b16 %v2974, %v2972
      %v3077 = vpack.c.b16 %v2977, %v2975
      %v3078 = vpack.c.b16 %v2978, %v2976
      %v3079 = vpack.c.b16 %v2981, %v2979
      %v3080 = vpack.c.b16 %v2982, %v2980
      %v3081 = vpack.c.b16 %v2985, %v2983
      %v3082 = vpack.c.b16 %v2986, %v2984
      %v3083 = vpack.c.b16 %v2989, %v2987
      %v3084 = vpack.c.b16 %v2990, %v2988
      %v3085 = vpack.c.b16 %v2993, %v2991
      %v3086 = vpack.c.b16 %v2994, %v2992
      %v3087 = vpack.c.b16 %v2997, %v2995
      %v3088 = vpack.c.b16 %v2998, %v2996
      %v3089 = vpack.c.b16 %v3001, %v2999
      %v3090 = vpack.c.b16 %v3002, %v3000
      %v3091 = vpack.c.b16 %v3005, %v3003
      %v3092 = vpack.c.b16 %v3006, %v3004
      %v3093 = vpack.c.b16 %v3009, %v3007
      %v3094 = vpack.c.b16 %v3010, %v3008
      %v3095 = vpack.c.b16 %v3013, %v3011
      %v3096 = vpack.c.b16 %v3014, %v3012
      %v3097 = vpack.c.b16 %v3017, %v3015
      %v3098 = vpack.c.b16 %v3018, %v3016
      %v3099 = vpack.c.b16 %v3021, %v3019
      %v3100 = vpack.c.b16 %v3022, %v3020
      %v3101 = vpack.c.b16 %v3025, %v3023
      %v3102 = vpack.c.b16 %v3026, %v3024
      %v3103 = vpack.c.b16 %v3029, %v3027
      %v3104 = vpack.c.b16 %v3030, %v3028
      %v3105 = vpack.c.b16 %v3033, %v3031
      %v3106 = vpack.c.b16 %v3034, %v3032
      %v3107 = vpack.c.b16 %v3037, %v3035
      %v3108 = vpack.c.b16 %v3038, %v3036
      %v3109 = vpack.c.b16 %v3041, %v3039
      %v3110 = vpack.c.b16 %v3042, %v3040
      %v3111 = vpack.c.b16 %v3045, %v3043
      %v3112 = vpack.c.b16 %v3046, %v3044
      %v3113 = vpack.c.b16 %v3049, %v3047
      %v3114 = vpack.c.b16 %v3050, %v3048
      %3179 = vmatprep.subr.bf16.mxu0 %v3052
      %3180 = vmatpush1.bf16.msra.mxu0 %v3051
      %3181 = vmatprep.subr.bf16.mxu0 %v3054
      %3182 = vmatpush1.bf16.msra.mxu0 %v3053
      %3183 = vmatprep.subr.bf16.mxu0 %v3056
      %3184 = vmatpush1.bf16.msra.mxu0 %v3055
      %3185 = vmatprep.subr.bf16.mxu0 %v3058
      %3186 = vmatpush1.bf16.msra.mxu0 %v3057
      %3187 = vmatprep.subr.bf16.mxu0 %v3060
      %3188 = vmatpush1.bf16.msra.mxu0 %v3059
      %3189 = vmatprep.subr.bf16.mxu0 %v3062
      %3190 = vmatpush1.bf16.msra.mxu0 %v3061
      %3191 = vmatprep.subr.bf16.mxu0 %v3064
      %3192 = vmatpush1.bf16.msra.mxu0 %v3063
      %3193 = vmatprep.subr.bf16.mxu0 %v3066
      %3194 = vmatpush1.bf16.msra.mxu0 %v3065
      %3195 = vmatprep.subr.bf16.mxu0 %v3068
      %3196 = vmatpush1.bf16.msra.mxu0 %v3067
      %3197 = vmatprep.subr.bf16.mxu0 %v3070
      %3198 = vmatpush1.bf16.msra.mxu0 %v3069
      %3199 = vmatprep.subr.bf16.mxu0 %v3072
      %3200 = vmatpush1.bf16.msra.mxu0 %v3071
      %3201 = vmatprep.subr.bf16.mxu0 %v3074
      %3202 = vmatpush1.bf16.msra.mxu0 %v3073
      %3203 = vmatprep.subr.bf16.mxu0 %v3076
      %3204 = vmatpush1.bf16.msra.mxu0 %v3075
      %3205 = vmatprep.subr.bf16.mxu0 %v3078
      %3206 = vmatpush1.bf16.msra.mxu0 %v3077
      %3207 = vmatprep.subr.bf16.mxu0 %v3080
      %3208 = vmatpush1.bf16.msra.mxu0 %v3079
      %3209 = vmatprep.subr.bf16.mxu0 %v3082
      %3210 = vmatpush1.bf16.msra.mxu0 %v3081
      %3211 = vmatprep.mubr.bf16.mxu0 %v2844
      %3212 = vmatmul.mubr.bf16.gmra.mrb[0].mxu0 %v2843
      %v3213 = vpop.f32.mrb[0].mxu0
      %v3214 = vadd.f32 %v2852, %v3213
      %v3215 = vpop.f32.mrb[0].mxu0
      %v3216 = vadd.f32 %v2856, %v3215
      %v3217 = vpop.f32.mrb[0].mxu0
      %v3218 = vpop.f32.mrb[0].mxu0
      %3219 = vdwg.mxu0
      %3220 = vmatprep.subr.bf16.mxu0 %v3084
      %3221 = vmatpush1.bf16.msra.mxu0 %v3083
      %3222 = vmatprep.subr.bf16.mxu0 %v3086
      %3223 = vmatpush1.bf16.msra.mxu0 %v3085
      %3224 = vmatprep.subr.bf16.mxu0 %v3088
      %3225 = vmatpush1.bf16.msra.mxu0 %v3087
      %3226 = vmatprep.subr.bf16.mxu0 %v3090
      %3227 = vmatpush1.bf16.msra.mxu0 %v3089
      %3228 = vmatprep.subr.bf16.mxu0 %v3092
      %3229 = vmatpush1.bf16.msra.mxu0 %v3091
      %3230 = vmatprep.subr.bf16.mxu0 %v3094
      %3231 = vmatpush1.bf16.msra.mxu0 %v3093
      %3232 = vmatprep.subr.bf16.mxu0 %v3096
      %3233 = vmatpush1.bf16.msra.mxu0 %v3095
      %3234 = vmatprep.subr.bf16.mxu0 %v3098
      %3235 = vmatpush1.bf16.msra.mxu0 %v3097
      %3236 = vmatprep.subr.bf16.mxu0 %v3100
      %3237 = vmatpush1.bf16.msra.mxu0 %v3099
      %3238 = vmatprep.subr.bf16.mxu0 %v3102
      %3239 = vmatpush1.bf16.msra.mxu0 %v3101
      %3240 = vmatprep.subr.bf16.mxu0 %v3104
      %3241 = vmatpush1.bf16.msra.mxu0 %v3103
      %3242 = vmatprep.subr.bf16.mxu0 %v3106
      %3243 = vmatpush1.bf16.msra.mxu0 %v3105
      %3244 = vmatprep.subr.bf16.mxu0 %v3108
      %3245 = vmatpush1.bf16.msra.mxu0 %v3107
      %3246 = vmatprep.subr.bf16.mxu0 %v3110
      %3247 = vmatpush1.bf16.msra.mxu0 %v3109
      %3248 = vmatprep.subr.bf16.mxu0 %v3112
      %3249 = vmatpush1.bf16.msra.mxu0 %v3111
      %3250 = vmatprep.subr.bf16.mxu0 %v3114
      %3251 = vmatpush1.bf16.msra.mxu0 %v3113
      %3252 = vmatprep.mubr.bf16.mxu0 %v2846
      %3253 = vmatmul.mubr.bf16.gmra.mrb[0].mxu0 %v2845
      %v3254 = vpop.f32.mrb[0].mxu0
      %v3255 = vadd.f32 %v3214, %v3254
      %v3256 = vpop.f32.mrb[0].mxu0
      %v3257 = vadd.f32 %v3216, %v3256
      %v3258 = vpop.f32.mrb[0].mxu0
      %v3259 = vpop.f32.mrb[0].mxu0
      %3260 = vdwg.mxu0
      %vm3261 = vcmp.gt.f32.partialorder %v3255, 0.0
      %vm3262 = vcmp.gt.f32.partialorder %v3257, 0.0
      %v3263 = vstv %s247
      %v3264 = vmul.f32 %v3263, %v3255
      %v3265 = vmul.f32 %v3263, %v3257
      %v3266 = vsel %vm3261, %v3255, %v3264
      %v3267 = vsel %vm3262, %v3257, %v3265
      %v3268 = vld [vmem:[#allocation13] sm:$0xff]
      %v3269 = vld [vmem:[#allocation13 + $0x8] sm:$0xff]
      %v3270 = vld [vmem:[#allocation13 + $0x10] sm:$0xff]
      %v3271 = vld [vmem:[#allocation13 + $0x18] sm:$0xff]
      %v3272 = vld [vmem:[#allocation13 + $0x20] sm:$0xff]
      %v3273 = vld [vmem:[#allocation13 + $0x28] sm:$0xff]
      %v3274 = vld [vmem:[#allocation13 + $0x30] sm:$0xff]
      %v3275 = vld [vmem:[#allocation13 + $0x38] sm:$0xff]
      %v3276 = vld [vmem:[#allocation13 + $0x40] sm:$0xff]
      %v3277 = vld [vmem:[#allocation13 + $0x48] sm:$0xff]
      %v3278 = vld [vmem:[#allocation13 + $0x50] sm:$0xff]
      %v3279 = vld [vmem:[#allocation13 + $0x58] sm:$0xff]
      %v3280 = vld [vmem:[#allocation13 + $0x60] sm:$0xff]
      %v3281 = vld [vmem:[#allocation13 + $0x68] sm:$0xff]
      %v3282 = vld [vmem:[#allocation13 + $0x70] sm:$0xff]
      %v3283 = vld [vmem:[#allocation13 + $0x78] sm:$0xff]
      %v3284 = vld [vmem:[#allocation13 + $0x80] sm:$0xff]
      %v3285 = vld [vmem:[#allocation13 + $0x88] sm:$0xff]
      %v3286 = vld [vmem:[#allocation13 + $0x90] sm:$0xff]
      %v3287 = vld [vmem:[#allocation13 + $0x98] sm:$0xff]
      %v3288 = vld [vmem:[#allocation13 + $0xa0] sm:$0xff]
      %v3289 = vld [vmem:[#allocation13 + $0xa8] sm:$0xff]
      %v3290 = vld [vmem:[#allocation13 + $0xb0] sm:$0xff]
      %v3291 = vld [vmem:[#allocation13 + $0xb8] sm:$0xff]
      %v3292 = vld [vmem:[#allocation13 + $0xc0] sm:$0xff]
      %v3293 = vld [vmem:[#allocation13 + $0xc8] sm:$0xff]
      %v3294 = vld [vmem:[#allocation13 + $0xd0] sm:$0xff]
      %v3295 = vld [vmem:[#allocation13 + $0xd8] sm:$0xff]
      %v3296 = vld [vmem:[#allocation13 + $0xe0] sm:$0xff]
      %v3297 = vld [vmem:[#allocation13 + $0xe8] sm:$0xff]
      %v3298 = vld [vmem:[#allocation13 + $0xf0] sm:$0xff]
      %v3299 = vld [vmem:[#allocation13 + $0xf8] sm:$0xff]
      %v3300 = vpack.c.bf16 %v3266, %v3266
      %v3301 = vpack.c.bf16 %v3267, %v3267
      %v3302 = vld [vmem:[#allocation15] sm:$0x3]
      %v3304 = vlaneseq
      %v3305 = vshrl.u32 %v3304, 7
      %v3306 = vsub.s32 0, %v3305
      %v3307 = vrot.slane %v3302, %v3306
      %v3308 = vlaneseq
      %v3309 = vshrl.u32 %v3308, 7
      %v3310 = vsub.s32 1, %v3309
      %v3311 = vrot.slane %v3302, %v3310
      %v3346 = vunpack.c.l.b16 %v3268
      %v3347 = vunpack.c.h.b16 %v3268
      %v3348 = vunpack.c.l.b16 %v3269
      %v3349 = vunpack.c.h.b16 %v3269
      %v3350 = vunpack.c.l.b16 %v3270
      %v3351 = vunpack.c.h.b16 %v3270
      %v3352 = vunpack.c.l.b16 %v3271
      %v3353 = vunpack.c.h.b16 %v3271
      %v3354 = vunpack.c.l.b16 %v3272
      %v3355 = vunpack.c.h.b16 %v3272
      %v3356 = vunpack.c.l.b16 %v3273
      %v3357 = vunpack.c.h.b16 %v3273
      %v3358 = vunpack.c.l.b16 %v3274
      %v3359 = vunpack.c.h.b16 %v3274
      %v3360 = vunpack.c.l.b16 %v3275
      %v3361 = vunpack.c.h.b16 %v3275
      %v3362 = vunpack.c.l.b16 %v3276
      %v3363 = vunpack.c.h.b16 %v3276
      %v3364 = vunpack.c.l.b16 %v3277
      %v3365 = vunpack.c.h.b16 %v3277
      %v3366 = vunpack.c.l.b16 %v3278
      %v3367 = vunpack.c.h.b16 %v3278
      %v3368 = vunpack.c.l.b16 %v3279
      %v3369 = vunpack.c.h.b16 %v3279
      %v3370 = vunpack.c.l.b16 %v3280
      %v3371 = vunpack.c.h.b16 %v3280
      %v3372 = vunpack.c.l.b16 %v3281
      %v3373 = vunpack.c.h.b16 %v3281
      %v3374 = vunpack.c.l.b16 %v3282
      %v3375 = vunpack.c.h.b16 %v3282
      %v3376 = vunpack.c.l.b16 %v3283
      %v3377 = vunpack.c.h.b16 %v3283
      %v3378 = vunpack.c.l.b16 %v3284
      %v3379 = vunpack.c.h.b16 %v3284
      %v3380 = vunpack.c.l.b16 %v3285
      %v3381 = vunpack.c.h.b16 %v3285
      %v3382 = vunpack.c.l.b16 %v3286
      %v3383 = vunpack.c.h.b16 %v3286
      %v3384 = vunpack.c.l.b16 %v3287
      %v3385 = vunpack.c.h.b16 %v3287
      %v3386 = vunpack.c.l.b16 %v3288
      %v3387 = vunpack.c.h.b16 %v3288
      %v3388 = vunpack.c.l.b16 %v3289
      %v3389 = vunpack.c.h.b16 %v3289
      %v3390 = vunpack.c.l.b16 %v3290
      %v3391 = vunpack.c.h.b16 %v3290
      %v3392 = vunpack.c.l.b16 %v3291
      %v3393 = vunpack.c.h.b16 %v3291
      %v3394 = vunpack.c.l.b16 %v3292
      %v3395 = vunpack.c.h.b16 %v3292
      %v3396 = vunpack.c.l.b16 %v3293
      %v3397 = vunpack.c.h.b16 %v3293
      %v3398 = vunpack.c.l.b16 %v3294
      %v3399 = vunpack.c.h.b16 %v3294
      %v3400 = vunpack.c.l.b16 %v3295
      %v3401 = vunpack.c.h.b16 %v3295
      %v3402 = vunpack.c.l.b16 %v3296
      %v3403 = vunpack.c.h.b16 %v3296
      %v3404 = vunpack.c.l.b16 %v3297
      %v3405 = vunpack.c.h.b16 %v3297
      %v3406 = vunpack.c.l.b16 %v3298
      %v3407 = vunpack.c.h.b16 %v3298
      %v3408 = vunpack.c.l.b16 %v3299
      %v3409 = vunpack.c.h.b16 %v3299
      %v3410 = vpack.c.b16 %v3348, %v3346
      %v3411 = vpack.c.b16 %v3349, %v3347
      %v3412 = vpack.c.b16 %v3352, %v3350
      %v3413 = vpack.c.b16 %v3353, %v3351
      %v3414 = vpack.c.b16 %v3356, %v3354
      %v3415 = vpack.c.b16 %v3357, %v3355
      %v3416 = vpack.c.b16 %v3360, %v3358
      %v3417 = vpack.c.b16 %v3361, %v3359
      %v3418 = vpack.c.b16 %v3364, %v3362
      %v3419 = vpack.c.b16 %v3365, %v3363
      %v3420 = vpack.c.b16 %v3368, %v3366
      %v3421 = vpack.c.b16 %v3369, %v3367
      %v3422 = vpack.c.b16 %v3372, %v3370
      %v3423 = vpack.c.b16 %v3373, %v3371
      %v3424 = vpack.c.b16 %v3376, %v3374
      %v3425 = vpack.c.b16 %v3377, %v3375
      %v3426 = vpack.c.b16 %v3380, %v3378
      %v3427 = vpack.c.b16 %v3381, %v3379
      %v3428 = vpack.c.b16 %v3384, %v3382
      %v3429 = vpack.c.b16 %v3385, %v3383
      %v3430 = vpack.c.b16 %v3388, %v3386
      %v3431 = vpack.c.b16 %v3389, %v3387
      %v3432 = vpack.c.b16 %v3392, %v3390
      %v3433 = vpack.c.b16 %v3393, %v3391
      %v3434 = vpack.c.b16 %v3396, %v3394
      %v3435 = vpack.c.b16 %v3397, %v3395
      %v3436 = vpack.c.b16 %v3400, %v3398
      %v3437 = vpack.c.b16 %v3401, %v3399
      %v3438 = vpack.c.b16 %v3404, %v3402
      %v3439 = vpack.c.b16 %v3405, %v3403
      %v3440 = vpack.c.b16 %v3408, %v3406
      %v3441 = vpack.c.b16 %v3409, %v3407
      %3474 = vmatprep.subr.bf16.mxu0 %v3411
      %3475 = vmatpush1.bf16.msra.mxu0 %v3410
      %3476 = vmatprep.subr.bf16.mxu0 %v3413
      %3477 = vmatpush1.bf16.msra.mxu0 %v3412
      %3478 = vmatprep.subr.bf16.mxu0 %v3415
      %3479 = vmatpush1.bf16.msra.mxu0 %v3414
      %3480 = vmatprep.subr.bf16.mxu0 %v3417
      %3481 = vmatpush1.bf16.msra.mxu0 %v3416
      %3482 = vmatprep.subr.bf16.mxu0 %v3419
      %3483 = vmatpush1.bf16.msra.mxu0 %v3418
      %3484 = vmatprep.subr.bf16.mxu0 %v3421
      %3485 = vmatpush1.bf16.msra.mxu0 %v3420
      %3486 = vmatprep.subr.bf16.mxu0 %v3423
      %3487 = vmatpush1.bf16.msra.mxu0 %v3422
      %3488 = vmatprep.subr.bf16.mxu0 %v3425
      %3489 = vmatpush1.bf16.msra.mxu0 %v3424
      %3490 = vmatprep.subr.bf16.mxu0 %v3427
      %3491 = vmatpush1.bf16.msra.mxu0 %v3426
      %3492 = vmatprep.subr.bf16.mxu0 %v3429
      %3493 = vmatpush1.bf16.msra.mxu0 %v3428
      %3494 = vmatprep.subr.bf16.mxu0 %v3431
      %3495 = vmatpush1.bf16.msra.mxu0 %v3430
      %3496 = vmatprep.subr.bf16.mxu0 %v3433
      %3497 = vmatpush1.bf16.msra.mxu0 %v3432
      %3498 = vmatprep.subr.bf16.mxu0 %v3435
      %3499 = vmatpush1.bf16.msra.mxu0 %v3434
      %3500 = vmatprep.subr.bf16.mxu0 %v3437
      %3501 = vmatpush1.bf16.msra.mxu0 %v3436
      %3502 = vmatprep.subr.bf16.mxu0 %v3439
      %3503 = vmatpush1.bf16.msra.mxu0 %v3438
      %3504 = vmatprep.subr.bf16.mxu0 %v3441
      %3505 = vmatpush1.bf16.msra.mxu0 %v3440
      %3506 = vmatprep.mubr.bf16.mxu0 %v3301
      %3507 = vmatmul.mubr.bf16.gmra.mrb[0].mxu0 %v3300
      %v3508 = vpop.f32.mrb[0].mxu0
      %v3509 = vadd.f32 %v3307, %v3508
      %v3510 = vpop.f32.mrb[0].mxu0
      %v3511 = vadd.f32 %v3311, %v3510
      %v3512 = vpop.f32.mrb[0].mxu0
      %v3513 = vpop.f32.mrb[0].mxu0
      %3514 = vdwg.mxu0
      %vm3515 = vcmp.gt.f32.partialorder %v3509, 0.0
      %vm3516 = vcmp.gt.f32.partialorder %v3511, 0.0
      %v3517 = vstv %s248
      %v3518 = vmul.f32 %v3517, %v3509
      %v3519 = vmul.f32 %v3517, %v3511
      %v3520 = vsel %vm3515, %v3509, %v3518
      %v3521 = vsel %vm3516, %v3511, %v3519
      %v3522 = vld [vmem:[#allocation16] sm:$0xff]
      %v3523 = vld [vmem:[#allocation16 + $0x8] sm:$0xff]
      %v3524 = vld [vmem:[#allocation16 + $0x10] sm:$0xff]
      %v3525 = vld [vmem:[#allocation16 + $0x18] sm:$0xff]
      %v3526 = vld [vmem:[#allocation16 + $0x20] sm:$0xff]
      %v3527 = vld [vmem:[#allocation16 + $0x28] sm:$0xff]
      %v3528 = vld [vmem:[#allocation16 + $0x30] sm:$0xff]
      %v3529 = vld [vmem:[#allocation16 + $0x38] sm:$0xff]
      %v3530 = vld [vmem:[#allocation16 + $0x40] sm:$0xff]
      %v3531 = vld [vmem:[#allocation16 + $0x48] sm:$0xff]
      %v3532 = vld [vmem:[#allocation16 + $0x50] sm:$0xff]
      %v3533 = vld [vmem:[#allocation16 + $0x58] sm:$0xff]
      %v3534 = vld [vmem:[#allocation16 + $0x60] sm:$0xff]
      %v3535 = vld [vmem:[#allocation16 + $0x68] sm:$0xff]
      %v3536 = vld [vmem:[#allocation16 + $0x70] sm:$0xff]
      %v3537 = vld [vmem:[#allocation16 + $0x78] sm:$0xff]
      %v3538 = vld [vmem:[#allocation16 + $0x80] sm:$0xff]
      %v3539 = vld [vmem:[#allocation16 + $0x88] sm:$0xff]
      %v3540 = vld [vmem:[#allocation16 + $0x90] sm:$0xff]
      %v3541 = vld [vmem:[#allocation16 + $0x98] sm:$0xff]
      %v3542 = vld [vmem:[#allocation16 + $0xa0] sm:$0xff]
      %v3543 = vld [vmem:[#allocation16 + $0xa8] sm:$0xff]
      %v3544 = vld [vmem:[#allocation16 + $0xb0] sm:$0xff]
      %v3545 = vld [vmem:[#allocation16 + $0xb8] sm:$0xff]
      %v3546 = vld [vmem:[#allocation16 + $0xc0] sm:$0xff]
      %v3547 = vld [vmem:[#allocation16 + $0xc8] sm:$0xff]
      %v3548 = vld [vmem:[#allocation16 + $0xd0] sm:$0xff]
      %v3549 = vld [vmem:[#allocation16 + $0xd8] sm:$0xff]
      %v3550 = vld [vmem:[#allocation16 + $0xe0] sm:$0xff]
      %v3551 = vld [vmem:[#allocation16 + $0xe8] sm:$0xff]
      %v3552 = vld [vmem:[#allocation16 + $0xf0] sm:$0xff]
      %v3553 = vld [vmem:[#allocation16 + $0xf8] sm:$0xff]
      %v3554 = vpack.c.bf16 %v3520, %v3520
      %v3555 = vpack.c.bf16 %v3521, %v3521
      %v3556 = vld [vmem:[%s11] sm:$0x3]
      %v3558 = vlaneseq
      %v3559 = vshrl.u32 %v3558, 7
      %v3560 = vsub.s32 0, %v3559
      %v3561 = vrot.slane %v3556, %v3560
      %v3562 = vlaneseq
      %v3563 = vshrl.u32 %v3562, 7
      %v3564 = vsub.s32 1, %v3563
      %v3565 = vrot.slane %v3556, %v3564
      %v3600 = vunpack.c.l.b16 %v3522
      %v3601 = vunpack.c.h.b16 %v3522
      %v3602 = vunpack.c.l.b16 %v3523
      %v3603 = vunpack.c.h.b16 %v3523
      %v3604 = vunpack.c.l.b16 %v3524
      %v3605 = vunpack.c.h.b16 %v3524
      %v3606 = vunpack.c.l.b16 %v3525
      %v3607 = vunpack.c.h.b16 %v3525
      %v3608 = vunpack.c.l.b16 %v3526
      %v3609 = vunpack.c.h.b16 %v3526
      %v3610 = vunpack.c.l.b16 %v3527
      %v3611 = vunpack.c.h.b16 %v3527
      %v3612 = vunpack.c.l.b16 %v3528
      %v3613 = vunpack.c.h.b16 %v3528
      %v3614 = vunpack.c.l.b16 %v3529
      %v3615 = vunpack.c.h.b16 %v3529
      %v3616 = vunpack.c.l.b16 %v3530
      %v3617 = vunpack.c.h.b16 %v3530
      %v3618 = vunpack.c.l.b16 %v3531
      %v3619 = vunpack.c.h.b16 %v3531
      %v3620 = vunpack.c.l.b16 %v3532
      %v3621 = vunpack.c.h.b16 %v3532
      %v3622 = vunpack.c.l.b16 %v3533
      %v3623 = vunpack.c.h.b16 %v3533
      %v3624 = vunpack.c.l.b16 %v3534
      %v3625 = vunpack.c.h.b16 %v3534
      %v3626 = vunpack.c.l.b16 %v3535
      %v3627 = vunpack.c.h.b16 %v3535
      %v3628 = vunpack.c.l.b16 %v3536
      %v3629 = vunpack.c.h.b16 %v3536
      %v3630 = vunpack.c.l.b16 %v3537
      %v3631 = vunpack.c.h.b16 %v3537
      %v3632 = vunpack.c.l.b16 %v3538
      %v3633 = vunpack.c.h.b16 %v3538
      %v3634 = vunpack.c.l.b16 %v3539
      %v3635 = vunpack.c.h.b16 %v3539
      %v3636 = vunpack.c.l.b16 %v3540
      %v3637 = vunpack.c.h.b16 %v3540
      %v3638 = vunpack.c.l.b16 %v3541
      %v3639 = vunpack.c.h.b16 %v3541
      %v3640 = vunpack.c.l.b16 %v3542
      %v3641 = vunpack.c.h.b16 %v3542
      %v3642 = vunpack.c.l.b16 %v3543
      %v3643 = vunpack.c.h.b16 %v3543
      %v3644 = vunpack.c.l.b16 %v3544
      %v3645 = vunpack.c.h.b16 %v3544
      %v3646 = vunpack.c.l.b16 %v3545
      %v3647 = vunpack.c.h.b16 %v3545
      %v3648 = vunpack.c.l.b16 %v3546
      %v3649 = vunpack.c.h.b16 %v3546
      %v3650 = vunpack.c.l.b16 %v3547
      %v3651 = vunpack.c.h.b16 %v3547
      %v3652 = vunpack.c.l.b16 %v3548
      %v3653 = vunpack.c.h.b16 %v3548
      %v3654 = vunpack.c.l.b16 %v3549
      %v3655 = vunpack.c.h.b16 %v3549
      %v3656 = vunpack.c.l.b16 %v3550
      %v3657 = vunpack.c.h.b16 %v3550
      %v3658 = vunpack.c.l.b16 %v3551
      %v3659 = vunpack.c.h.b16 %v3551
      %v3660 = vunpack.c.l.b16 %v3552
      %v3661 = vunpack.c.h.b16 %v3552
      %v3662 = vunpack.c.l.b16 %v3553
      %v3663 = vunpack.c.h.b16 %v3553
      %v3664 = vpack.c.b16 %v3602, %v3600
      %v3665 = vpack.c.b16 %v3603, %v3601
      %v3666 = vpack.c.b16 %v3606, %v3604
      %v3667 = vpack.c.b16 %v3607, %v3605
      %v3668 = vpack.c.b16 %v3610, %v3608
      %v3669 = vpack.c.b16 %v3611, %v3609
      %v3670 = vpack.c.b16 %v3614, %v3612
      %v3671 = vpack.c.b16 %v3615, %v3613
      %v3672 = vpack.c.b16 %v3618, %v3616
      %v3673 = vpack.c.b16 %v3619, %v3617
      %v3674 = vpack.c.b16 %v3622, %v3620
      %v3675 = vpack.c.b16 %v3623, %v3621
      %v3676 = vpack.c.b16 %v3626, %v3624
      %v3677 = vpack.c.b16 %v3627, %v3625
      %v3678 = vpack.c.b16 %v3630, %v3628
      %v3679 = vpack.c.b16 %v3631, %v3629
      %v3680 = vpack.c.b16 %v3634, %v3632
      %v3681 = vpack.c.b16 %v3635, %v3633
      %v3682 = vpack.c.b16 %v3638, %v3636
      %v3683 = vpack.c.b16 %v3639, %v3637
      %v3684 = vpack.c.b16 %v3642, %v3640
      %v3685 = vpack.c.b16 %v3643, %v3641
      %v3686 = vpack.c.b16 %v3646, %v3644
      %v3687 = vpack.c.b16 %v3647, %v3645
      %v3688 = vpack.c.b16 %v3650, %v3648
      %v3689 = vpack.c.b16 %v3651, %v3649
      %v3690 = vpack.c.b16 %v3654, %v3652
      %v3691 = vpack.c.b16 %v3655, %v3653
      %v3692 = vpack.c.b16 %v3658, %v3656
      %v3693 = vpack.c.b16 %v3659, %v3657
      %v3694 = vpack.c.b16 %v3662, %v3660
      %v3695 = vpack.c.b16 %v3663, %v3661
      %3728 = vmatprep.subr.bf16.mxu0 %v3665
      %3729 = vmatpush1.bf16.msra.mxu0 %v3664
      %3730 = vmatprep.subr.bf16.mxu0 %v3667
      %3731 = vmatpush1.bf16.msra.mxu0 %v3666
      %3732 = vmatprep.subr.bf16.mxu0 %v3669
      %3733 = vmatpush1.bf16.msra.mxu0 %v3668
      %3734 = vmatprep.subr.bf16.mxu0 %v3671
      %3735 = vmatpush1.bf16.msra.mxu0 %v3670
      %3736 = vmatprep.subr.bf16.mxu0 %v3673
      %3737 = vmatpush1.bf16.msra.mxu0 %v3672
      %3738 = vmatprep.subr.bf16.mxu0 %v3675
      %3739 = vmatpush1.bf16.msra.mxu0 %v3674
      %3740 = vmatprep.subr.bf16.mxu0 %v3677
      %3741 = vmatpush1.bf16.msra.mxu0 %v3676
      %3742 = vmatprep.subr.bf16.mxu0 %v3679
      %3743 = vmatpush1.bf16.msra.mxu0 %v3678
      %3744 = vmatprep.subr.bf16.mxu0 %v3681
      %3745 = vmatpush1.bf16.msra.mxu0 %v3680
      %3746 = vmatprep.subr.bf16.mxu0 %v3683
      %3747 = vmatpush1.bf16.msra.mxu0 %v3682
      %3748 = vmatprep.subr.bf16.mxu0 %v3685
      %3749 = vmatpush1.bf16.msra.mxu0 %v3684
      %3750 = vmatprep.subr.bf16.mxu0 %v3687
      %3751 = vmatpush1.bf16.msra.mxu0 %v3686
      %3752 = vmatprep.subr.bf16.mxu0 %v3689
      %3753 = vmatpush1.bf16.msra.mxu0 %v3688
      %3754 = vmatprep.subr.bf16.mxu0 %v3691
      %3755 = vmatpush1.bf16.msra.mxu0 %v3690
      %3756 = vmatprep.subr.bf16.mxu0 %v3693
      %3757 = vmatpush1.bf16.msra.mxu0 %v3692
      %3758 = vmatprep.subr.bf16.mxu0 %v3695
      %3759 = vmatpush1.bf16.msra.mxu0 %v3694
      %3760 = vmatprep.mubr.bf16.mxu0 %v3555
      %3761 = vmatmul.mubr.bf16.gmra.mrb[0].mxu0 %v3554
      %v3762 = vpop.f32.mrb[0].mxu0
      %v3763 = vadd.f32 %v3561, %v3762
      %v3764 = vpop.f32.mrb[0].mxu0
      %v3765 = vadd.f32 %v3565, %v3764
      %v3766 = vpop.f32.mrb[0].mxu0
      %v3767 = vpop.f32.mrb[0].mxu0
      %3768 = vdwg.mxu0
      %v3769 = vadd.f32 %v3763, %v3266
      %v3770 = vadd.f32 %v3765, %v3267
      %vm3771 = vcmp.gt.f32.partialorder %v3769, 0.0
      %vm3772 = vcmp.gt.f32.partialorder %v3770, 0.0
      %v3773 = vmul.f32 %v3517, %v3769
      %v3774 = vmul.f32 %v3517, %v3770
      %v3775 = vsel %vm3771, %v3769, %v3773
      %v3776 = vsel %vm3772, %v3770, %v3774
      %v3777 = vld [vmem:[#allocation18] sm:$0xff]
      %v3778 = vld [vmem:[#allocation18 + $0x8] sm:$0xff]
      %v3779 = vld [vmem:[#allocation18 + $0x10] sm:$0xff]
      %v3780 = vld [vmem:[#allocation18 + $0x18] sm:$0xff]
      %v3781 = vld [vmem:[#allocation18 + $0x20] sm:$0xff]
      %v3782 = vld [vmem:[#allocation18 + $0x28] sm:$0xff]
      %v3783 = vld [vmem:[#allocation18 + $0x30] sm:$0xff]
      %v3784 = vld [vmem:[#allocation18 + $0x38] sm:$0xff]
      %v3785 = vld [vmem:[#allocation18 + $0x40] sm:$0xff]
      %v3786 = vld [vmem:[#allocation18 + $0x48] sm:$0xff]
      %v3787 = vld [vmem:[#allocation18 + $0x50] sm:$0xff]
      %v3788 = vld [vmem:[#allocation18 + $0x58] sm:$0xff]
      %v3789 = vld [vmem:[#allocation18 + $0x60] sm:$0xff]
      %v3790 = vld [vmem:[#allocation18 + $0x68] sm:$0xff]
      %v3791 = vld [vmem:[#allocation18 + $0x70] sm:$0xff]
      %v3792 = vld [vmem:[#allocation18 + $0x78] sm:$0xff]
      %v3793 = vld [vmem:[#allocation18 + $0x80] sm:$0xff]
      %v3794 = vld [vmem:[#allocation18 + $0x88] sm:$0xff]
      %v3795 = vld [vmem:[#allocation18 + $0x90] sm:$0xff]
      %v3796 = vld [vmem:[#allocation18 + $0x98] sm:$0xff]
      %v3797 = vld [vmem:[#allocation18 + $0xa0] sm:$0xff]
      %v3798 = vld [vmem:[#allocation18 + $0xa8] sm:$0xff]
      %v3799 = vld [vmem:[#allocation18 + $0xb0] sm:$0xff]
      %v3800 = vld [vmem:[#allocation18 + $0xb8] sm:$0xff]
      %v3801 = vld [vmem:[#allocation18 + $0xc0] sm:$0xff]
      %v3802 = vld [vmem:[#allocation18 + $0xc8] sm:$0xff]
      %v3803 = vld [vmem:[#allocation18 + $0xd0] sm:$0xff]
      %v3804 = vld [vmem:[#allocation18 + $0xd8] sm:$0xff]
      %v3805 = vld [vmem:[#allocation18 + $0xe0] sm:$0xff]
      %v3806 = vld [vmem:[#allocation18 + $0xe8] sm:$0xff]
      %v3807 = vld [vmem:[#allocation18 + $0xf0] sm:$0xff]
      %v3808 = vld [vmem:[#allocation18 + $0xf8] sm:$0xff]
      %v3809 = vpack.c.bf16 %v3775, %v3775
      %v3810 = vpack.c.bf16 %v3776, %v3776
      %v3811 = vld [vmem:[%s13] sm:$0x3]
      %v3813 = vlaneseq
      %v3814 = vshrl.u32 %v3813, 7
      %v3815 = vsub.s32 0, %v3814
      %v3816 = vrot.slane %v3811, %v3815
      %v3817 = vlaneseq
      %v3818 = vshrl.u32 %v3817, 7
      %v3819 = vsub.s32 1, %v3818
      %v3820 = vrot.slane %v3811, %v3819
      %v3855 = vunpack.c.l.b16 %v3777
      %v3856 = vunpack.c.h.b16 %v3777
      %v3857 = vunpack.c.l.b16 %v3778
      %v3858 = vunpack.c.h.b16 %v3778
      %v3859 = vunpack.c.l.b16 %v3779
      %v3860 = vunpack.c.h.b16 %v3779
      %v3861 = vunpack.c.l.b16 %v3780
      %v3862 = vunpack.c.h.b16 %v3780
      %v3863 = vunpack.c.l.b16 %v3781
      %v3864 = vunpack.c.h.b16 %v3781
      %v3865 = vunpack.c.l.b16 %v3782
      %v3866 = vunpack.c.h.b16 %v3782
      %v3867 = vunpack.c.l.b16 %v3783
      %v3868 = vunpack.c.h.b16 %v3783
      %v3869 = vunpack.c.l.b16 %v3784
      %v3870 = vunpack.c.h.b16 %v3784
      %v3871 = vunpack.c.l.b16 %v3785
      %v3872 = vunpack.c.h.b16 %v3785
      %v3873 = vunpack.c.l.b16 %v3786
      %v3874 = vunpack.c.h.b16 %v3786
      %v3875 = vunpack.c.l.b16 %v3787
      %v3876 = vunpack.c.h.b16 %v3787
      %v3877 = vunpack.c.l.b16 %v3788
      %v3878 = vunpack.c.h.b16 %v3788
      %v3879 = vunpack.c.l.b16 %v3789
      %v3880 = vunpack.c.h.b16 %v3789
      %v3881 = vunpack.c.l.b16 %v3790
      %v3882 = vunpack.c.h.b16 %v3790
      %v3883 = vunpack.c.l.b16 %v3791
      %v3884 = vunpack.c.h.b16 %v3791
      %v3885 = vunpack.c.l.b16 %v3792
      %v3886 = vunpack.c.h.b16 %v3792
      %v3887 = vunpack.c.l.b16 %v3793
      %v3888 = vunpack.c.h.b16 %v3793
      %v3889 = vunpack.c.l.b16 %v3794
      %v3890 = vunpack.c.h.b16 %v3794
      %v3891 = vunpack.c.l.b16 %v3795
      %v3892 = vunpack.c.h.b16 %v3795
      %v3893 = vunpack.c.l.b16 %v3796
      %v3894 = vunpack.c.h.b16 %v3796
      %v3895 = vunpack.c.l.b16 %v3797
      %v3896 = vunpack.c.h.b16 %v3797
      %v3897 = vunpack.c.l.b16 %v3798
      %v3898 = vunpack.c.h.b16 %v3798
      %v3899 = vunpack.c.l.b16 %v3799
      %v3900 = vunpack.c.h.b16 %v3799
      %v3901 = vunpack.c.l.b16 %v3800
      %v3902 = vunpack.c.h.b16 %v3800
      %v3903 = vunpack.c.l.b16 %v3801
      %v3904 = vunpack.c.h.b16 %v3801
      %v3905 = vunpack.c.l.b16 %v3802
      %v3906 = vunpack.c.h.b16 %v3802
      %v3907 = vunpack.c.l.b16 %v3803
      %v3908 = vunpack.c.h.b16 %v3803
      %v3909 = vunpack.c.l.b16 %v3804
      %v3910 = vunpack.c.h.b16 %v3804
      %v3911 = vunpack.c.l.b16 %v3805
      %v3912 = vunpack.c.h.b16 %v3805
      %v3913 = vunpack.c.l.b16 %v3806
      %v3914 = vunpack.c.h.b16 %v3806
      %v3915 = vunpack.c.l.b16 %v3807
      %v3916 = vunpack.c.h.b16 %v3807
      %v3917 = vunpack.c.l.b16 %v3808
      %v3918 = vunpack.c.h.b16 %v3808
      %v3919 = vpack.c.b16 %v3857, %v3855
      %v3920 = vpack.c.b16 %v3858, %v3856
      %v3921 = vpack.c.b16 %v3861, %v3859
      %v3922 = vpack.c.b16 %v3862, %v3860
      %v3923 = vpack.c.b16 %v3865, %v3863
      %v3924 = vpack.c.b16 %v3866, %v3864
      %v3925 = vpack.c.b16 %v3869, %v3867
      %v3926 = vpack.c.b16 %v3870, %v3868
      %v3927 = vpack.c.b16 %v3873, %v3871
      %v3928 = vpack.c.b16 %v3874, %v3872
      %v3929 = vpack.c.b16 %v3877, %v3875
      %v3930 = vpack.c.b16 %v3878, %v3876
      %v3931 = vpack.c.b16 %v3881, %v3879
      %v3932 = vpack.c.b16 %v3882, %v3880
      %v3933 = vpack.c.b16 %v3885, %v3883
      %v3934 = vpack.c.b16 %v3886, %v3884
      %v3935 = vpack.c.b16 %v3889, %v3887
      %v3936 = vpack.c.b16 %v3890, %v3888
      %v3937 = vpack.c.b16 %v3893, %v3891
      %v3938 = vpack.c.b16 %v3894, %v3892
      %v3939 = vpack.c.b16 %v3897, %v3895
      %v3940 = vpack.c.b16 %v3898, %v3896
      %v3941 = vpack.c.b16 %v3901, %v3899
      %v3942 = vpack.c.b16 %v3902, %v3900
      %v3943 = vpack.c.b16 %v3905, %v3903
      %v3944 = vpack.c.b16 %v3906, %v3904
      %v3945 = vpack.c.b16 %v3909, %v3907
      %v3946 = vpack.c.b16 %v3910, %v3908
      %v3947 = vpack.c.b16 %v3913, %v3911
      %v3948 = vpack.c.b16 %v3914, %v3912
      %v3949 = vpack.c.b16 %v3917, %v3915
      %v3950 = vpack.c.b16 %v3918, %v3916
      %3983 = vmatprep.subr.bf16.mxu0 %v3920
      %3984 = vmatpush1.bf16.msra.mxu0 %v3919
      %3985 = vmatprep.subr.bf16.mxu0 %v3922
      %3986 = vmatpush1.bf16.msra.mxu0 %v3921
      %3987 = vmatprep.subr.bf16.mxu0 %v3924
      %3988 = vmatpush1.bf16.msra.mxu0 %v3923
      %3989 = vmatprep.subr.bf16.mxu0 %v3926
      %3990 = vmatpush1.bf16.msra.mxu0 %v3925
      %3991 = vmatprep.subr.bf16.mxu0 %v3928
      %3992 = vmatpush1.bf16.msra.mxu0 %v3927
      %3993 = vmatprep.subr.bf16.mxu0 %v3930
      %3994 = vmatpush1.bf16.msra.mxu0 %v3929
      %3995 = vmatprep.subr.bf16.mxu0 %v3932
      %3996 = vmatpush1.bf16.msra.mxu0 %v3931
      %3997 = vmatprep.subr.bf16.mxu0 %v3934
      %3998 = vmatpush1.bf16.msra.mxu0 %v3933
      %3999 = vmatprep.subr.bf16.mxu0 %v3936
      %4000 = vmatpush1.bf16.msra.mxu0 %v3935
      %4001 = vmatprep.subr.bf16.mxu0 %v3938
      %4002 = vmatpush1.bf16.msra.mxu0 %v3937
      %4003 = vmatprep.subr.bf16.mxu0 %v3940
      %4004 = vmatpush1.bf16.msra.mxu0 %v3939
      %4005 = vmatprep.subr.bf16.mxu0 %v3942
      %4006 = vmatpush1.bf16.msra.mxu0 %v3941
      %4007 = vmatprep.subr.bf16.mxu0 %v3944
      %4008 = vmatpush1.bf16.msra.mxu0 %v3943
      %4009 = vmatprep.subr.bf16.mxu0 %v3946
      %4010 = vmatpush1.bf16.msra.mxu0 %v3945
      %4011 = vmatprep.subr.bf16.mxu0 %v3948
      %4012 = vmatpush1.bf16.msra.mxu0 %v3947
      %4013 = vmatprep.subr.bf16.mxu0 %v3950
      %4014 = vmatpush1.bf16.msra.mxu0 %v3949
      %4015 = vmatprep.mubr.bf16.mxu0 %v3810
      %4016 = vmatmul.mubr.bf16.gmra.mrb[0].mxu0 %v3809
      %v4017 = vpop.f32.mrb[0].mxu0
      %v4018 = vadd.f32 %v3816, %v4017
      %v4019 = vpop.f32.mrb[0].mxu0
      %v4020 = vadd.f32 %v3820, %v4019
      %v4021 = vpop.f32.mrb[0].mxu0
      %v4022 = vpop.f32.mrb[0].mxu0
      %4023 = vdwg.mxu0
      %vm4024 = vcmp.gt.f32.partialorder %v4018, 0.0
      %vm4025 = vcmp.gt.f32.partialorder %v4020, 0.0
      %v4026 = vstv %s249
      %v4027 = vmul.f32 %v4026, %v4018
      %v4028 = vmul.f32 %v4026, %v4020
      %v4029 = vsel %vm4024, %v4018, %v4027
      %v4030 = vsel %vm4025, %v4020, %v4028
      %v4031 = vld [vmem:[#allocation19] sm:$0xff]
      %v4032 = vld [vmem:[#allocation19 + $0x8] sm:$0xff]
      %v4033 = vld [vmem:[#allocation19 + $0x10] sm:$0xff]
      %v4034 = vld [vmem:[#allocation19 + $0x18] sm:$0xff]
      %v4035 = vld [vmem:[#allocation19 + $0x20] sm:$0xff]
      %v4036 = vld [vmem:[#allocation19 + $0x28] sm:$0xff]
      %v4037 = vld [vmem:[#allocation19 + $0x30] sm:$0xff]
      %v4038 = vld [vmem:[#allocation19 + $0x38] sm:$0xff]
      %v4039 = vld [vmem:[#allocation19 + $0x40] sm:$0xff]
      %v4040 = vld [vmem:[#allocation19 + $0x48] sm:$0xff]
      %v4041 = vld [vmem:[#allocation19 + $0x50] sm:$0xff]
      %v4042 = vld [vmem:[#allocation19 + $0x58] sm:$0xff]
      %v4043 = vld [vmem:[#allocation19 + $0x60] sm:$0xff]
      %v4044 = vld [vmem:[#allocation19 + $0x68] sm:$0xff]
      %v4045 = vld [vmem:[#allocation19 + $0x70] sm:$0xff]
      %v4046 = vld [vmem:[#allocation19 + $0x78] sm:$0xff]
      %v4047 = vld [vmem:[#allocation19 + $0x80] sm:$0xff]
      %v4048 = vld [vmem:[#allocation19 + $0x88] sm:$0xff]
      %v4049 = vld [vmem:[#allocation19 + $0x90] sm:$0xff]
      %v4050 = vld [vmem:[#allocation19 + $0x98] sm:$0xff]
      %v4051 = vld [vmem:[#allocation19 + $0xa0] sm:$0xff]
      %v4052 = vld [vmem:[#allocation19 + $0xa8] sm:$0xff]
      %v4053 = vld [vmem:[#allocation19 + $0xb0] sm:$0xff]
      %v4054 = vld [vmem:[#allocation19 + $0xb8] sm:$0xff]
      %v4055 = vld [vmem:[#allocation19 + $0xc0] sm:$0xff]
      %v4056 = vld [vmem:[#allocation19 + $0xc8] sm:$0xff]
      %v4057 = vld [vmem:[#allocation19 + $0xd0] sm:$0xff]
      %v4058 = vld [vmem:[#allocation19 + $0xd8] sm:$0xff]
      %v4059 = vld [vmem:[#allocation19 + $0xe0] sm:$0xff]
      %v4060 = vld [vmem:[#allocation19 + $0xe8] sm:$0xff]
      %v4061 = vld [vmem:[#allocation19 + $0xf0] sm:$0xff]
      %v4062 = vld [vmem:[#allocation19 + $0xf8] sm:$0xff]
      %v4063 = vpack.c.bf16 %v4029, %v4029
      %v4064 = vpack.c.bf16 %v4030, %v4030
      %v4065 = vld [vmem:[%s15] sm:$0x3]
      %v4067 = vlaneseq
      %v4068 = vshrl.u32 %v4067, 7
      %v4069 = vsub.s32 0, %v4068
      %v4070 = vrot.slane %v4065, %v4069
      %v4071 = vlaneseq
      %v4072 = vshrl.u32 %v4071, 7
      %v4073 = vsub.s32 1, %v4072
      %v4074 = vrot.slane %v4065, %v4073
      %v4109 = vunpack.c.l.b16 %v4031
      %v4110 = vunpack.c.h.b16 %v4031
      %v4111 = vunpack.c.l.b16 %v4032
      %v4112 = vunpack.c.h.b16 %v4032
      %v4113 = vunpack.c.l.b16 %v4033
      %v4114 = vunpack.c.h.b16 %v4033
      %v4115 = vunpack.c.l.b16 %v4034
      %v4116 = vunpack.c.h.b16 %v4034
      %v4117 = vunpack.c.l.b16 %v4035
      %v4118 = vunpack.c.h.b16 %v4035
      %v4119 = vunpack.c.l.b16 %v4036
      %v4120 = vunpack.c.h.b16 %v4036
      %v4121 = vunpack.c.l.b16 %v4037
      %v4122 = vunpack.c.h.b16 %v4037
      %v4123 = vunpack.c.l.b16 %v4038
      %v4124 = vunpack.c.h.b16 %v4038
      %v4125 = vunpack.c.l.b16 %v4039
      %v4126 = vunpack.c.h.b16 %v4039
      %v4127 = vunpack.c.l.b16 %v4040
      %v4128 = vunpack.c.h.b16 %v4040
      %v4129 = vunpack.c.l.b16 %v4041
      %v4130 = vunpack.c.h.b16 %v4041
      %v4131 = vunpack.c.l.b16 %v4042
      %v4132 = vunpack.c.h.b16 %v4042
      %v4133 = vunpack.c.l.b16 %v4043
      %v4134 = vunpack.c.h.b16 %v4043
      %v4135 = vunpack.c.l.b16 %v4044
      %v4136 = vunpack.c.h.b16 %v4044
      %v4137 = vunpack.c.l.b16 %v4045
      %v4138 = vunpack.c.h.b16 %v4045
      %v4139 = vunpack.c.l.b16 %v4046
      %v4140 = vunpack.c.h.b16 %v4046
      %v4141 = vunpack.c.l.b16 %v4047
      %v4142 = vunpack.c.h.b16 %v4047
      %v4143 = vunpack.c.l.b16 %v4048
      %v4144 = vunpack.c.h.b16 %v4048
      %v4145 = vunpack.c.l.b16 %v4049
      %v4146 = vunpack.c.h.b16 %v4049
      %v4147 = vunpack.c.l.b16 %v4050
      %v4148 = vunpack.c.h.b16 %v4050
      %v4149 = vunpack.c.l.b16 %v4051
      %v4150 = vunpack.c.h.b16 %v4051
      %v4151 = vunpack.c.l.b16 %v4052
      %v4152 = vunpack.c.h.b16 %v4052
      %v4153 = vunpack.c.l.b16 %v4053
      %v4154 = vunpack.c.h.b16 %v4053
      %v4155 = vunpack.c.l.b16 %v4054
      %v4156 = vunpack.c.h.b16 %v4054
      %v4157 = vunpack.c.l.b16 %v4055
      %v4158 = vunpack.c.h.b16 %v4055
      %v4159 = vunpack.c.l.b16 %v4056
      %v4160 = vunpack.c.h.b16 %v4056
      %v4161 = vunpack.c.l.b16 %v4057
      %v4162 = vunpack.c.h.b16 %v4057
      %v4163 = vunpack.c.l.b16 %v4058
      %v4164 = vunpack.c.h.b16 %v4058
      %v4165 = vunpack.c.l.b16 %v4059
      %v4166 = vunpack.c.h.b16 %v4059
      %v4167 = vunpack.c.l.b16 %v4060
      %v4168 = vunpack.c.h.b16 %v4060
      %v4169 = vunpack.c.l.b16 %v4061
      %v4170 = vunpack.c.h.b16 %v4061
      %v4171 = vunpack.c.l.b16 %v4062
      %v4172 = vunpack.c.h.b16 %v4062
      %v4173 = vpack.c.b16 %v4111, %v4109
      %v4174 = vpack.c.b16 %v4112, %v4110
      %v4175 = vpack.c.b16 %v4115, %v4113
      %v4176 = vpack.c.b16 %v4116, %v4114
      %v4177 = vpack.c.b16 %v4119, %v4117
      %v4178 = vpack.c.b16 %v4120, %v4118
      %v4179 = vpack.c.b16 %v4123, %v4121
      %v4180 = vpack.c.b16 %v4124, %v4122
      %v4181 = vpack.c.b16 %v4127, %v4125
      %v4182 = vpack.c.b16 %v4128, %v4126
      %v4183 = vpack.c.b16 %v4131, %v4129
      %v4184 = vpack.c.b16 %v4132, %v4130
      %v4185 = vpack.c.b16 %v4135, %v4133
      %v4186 = vpack.c.b16 %v4136, %v4134
      %v4187 = vpack.c.b16 %v4139, %v4137
      %v4188 = vpack.c.b16 %v4140, %v4138
      %v4189 = vpack.c.b16 %v4143, %v4141
      %v4190 = vpack.c.b16 %v4144, %v4142
      %v4191 = vpack.c.b16 %v4147, %v4145
      %v4192 = vpack.c.b16 %v4148, %v4146
      %v4193 = vpack.c.b16 %v4151, %v4149
      %v4194 = vpack.c.b16 %v4152, %v4150
      %v4195 = vpack.c.b16 %v4155, %v4153
      %v4196 = vpack.c.b16 %v4156, %v4154
      %v4197 = vpack.c.b16 %v4159, %v4157
      %v4198 = vpack.c.b16 %v4160, %v4158
      %v4199 = vpack.c.b16 %v4163, %v4161
      %v4200 = vpack.c.b16 %v4164, %v4162
      %v4201 = vpack.c.b16 %v4167, %v4165
      %v4202 = vpack.c.b16 %v4168, %v4166
      %v4203 = vpack.c.b16 %v4171, %v4169
      %v4204 = vpack.c.b16 %v4172, %v4170
      %4237 = vmatprep.subr.bf16.mxu0 %v4174
      %4238 = vmatpush1.bf16.msra.mxu0 %v4173
      %4239 = vmatprep.subr.bf16.mxu0 %v4176
      %4240 = vmatpush1.bf16.msra.mxu0 %v4175
      %4241 = vmatprep.subr.bf16.mxu0 %v4178
      %4242 = vmatpush1.bf16.msra.mxu0 %v4177
      %4243 = vmatprep.subr.bf16.mxu0 %v4180
      %4244 = vmatpush1.bf16.msra.mxu0 %v4179
      %4245 = vmatprep.subr.bf16.mxu0 %v4182
      %4246 = vmatpush1.bf16.msra.mxu0 %v4181
      %4247 = vmatprep.subr.bf16.mxu0 %v4184
      %4248 = vmatpush1.bf16.msra.mxu0 %v4183
      %4249 = vmatprep.subr.bf16.mxu0 %v4186
      %4250 = vmatpush1.bf16.msra.mxu0 %v4185
      %4251 = vmatprep.subr.bf16.mxu0 %v4188
      %4252 = vmatpush1.bf16.msra.mxu0 %v4187
      %4253 = vmatprep.subr.bf16.mxu0 %v4190
      %4254 = vmatpush1.bf16.msra.mxu0 %v4189
      %4255 = vmatprep.subr.bf16.mxu0 %v4192
      %4256 = vmatpush1.bf16.msra.mxu0 %v4191
      %4257 = vmatprep.subr.bf16.mxu0 %v4194
      %4258 = vmatpush1.bf16.msra.mxu0 %v4193
      %4259 = vmatprep.subr.bf16.mxu0 %v4196
      %4260 = vmatpush1.bf16.msra.mxu0 %v4195
      %4261 = vmatprep.subr.bf16.mxu0 %v4198
      %4262 = vmatpush1.bf16.msra.mxu0 %v4197
      %4263 = vmatprep.subr.bf16.mxu0 %v4200
      %4264 = vmatpush1.bf16.msra.mxu0 %v4199
      %4265 = vmatprep.subr.bf16.mxu0 %v4202
      %4266 = vmatpush1.bf16.msra.mxu0 %v4201
      %4267 = vmatprep.subr.bf16.mxu0 %v4204
      %4268 = vmatpush1.bf16.msra.mxu0 %v4203
      %4269 = vmatprep.mubr.bf16.mxu0 %v4064
      %4270 = vmatmul.mubr.bf16.gmra.mrb[0].mxu0 %v4063
      %v4271 = vpop.f32.mrb[0].mxu0
      %v4272 = vadd.f32 %v4070, %v4271
      %v4273 = vpop.f32.mrb[0].mxu0
      %v4274 = vadd.f32 %v4074, %v4273
      %v4275 = vpop.f32.mrb[0].mxu0
      %v4276 = vpop.f32.mrb[0].mxu0
      %4277 = vdwg.mxu0
      %v4278 = vadd.f32 %v4272, %v3775
      %v4279 = vadd.f32 %v4274, %v3776
      %vm4280 = vcmp.gt.f32.partialorder %v4278, 0.0
      %vm4281 = vcmp.gt.f32.partialorder %v4279, 0.0
      %v4282 = vmul.f32 %v4026, %v4278
      %v4283 = vmul.f32 %v4026, %v4279
      %v4284 = vsel %vm4280, %v4278, %v4282
      %v4285 = vsel %vm4281, %v4279, %v4283
      %v4286 = vld [vmem:[#allocation21] sm:$0xff]
      %v4287 = vld [vmem:[#allocation21 + $0x8] sm:$0xff]
      %v4288 = vld [vmem:[#allocation21 + $0x10] sm:$0xff]
      %v4289 = vld [vmem:[#allocation21 + $0x18] sm:$0xff]
      %v4290 = vld [vmem:[#allocation21 + $0x20] sm:$0xff]
      %v4291 = vld [vmem:[#allocation21 + $0x28] sm:$0xff]
      %v4292 = vld [vmem:[#allocation21 + $0x30] sm:$0xff]
      %v4293 = vld [vmem:[#allocation21 + $0x38] sm:$0xff]
      %v4294 = vld [vmem:[#allocation21 + $0x40] sm:$0xff]
      %v4295 = vld [vmem:[#allocation21 + $0x48] sm:$0xff]
      %v4296 = vld [vmem:[#allocation21 + $0x50] sm:$0xff]
      %v4297 = vld [vmem:[#allocation21 + $0x58] sm:$0xff]
      %v4298 = vld [vmem:[#allocation21 + $0x60] sm:$0xff]
      %v4299 = vld [vmem:[#allocation21 + $0x68] sm:$0xff]
      %v4300 = vld [vmem:[#allocation21 + $0x70] sm:$0xff]
      %v4301 = vld [vmem:[#allocation21 + $0x78] sm:$0xff]
      %v4302 = vld [vmem:[#allocation21 + $0x80] sm:$0xff]
      %v4303 = vld [vmem:[#allocation21 + $0x88] sm:$0xff]
      %v4304 = vld [vmem:[#allocation21 + $0x90] sm:$0xff]
      %v4305 = vld [vmem:[#allocation21 + $0x98] sm:$0xff]
      %v4306 = vld [vmem:[#allocation21 + $0xa0] sm:$0xff]
      %v4307 = vld [vmem:[#allocation21 + $0xa8] sm:$0xff]
      %v4308 = vld [vmem:[#allocation21 + $0xb0] sm:$0xff]
      %v4309 = vld [vmem:[#allocation21 + $0xb8] sm:$0xff]
      %v4310 = vld [vmem:[#allocation21 + $0xc0] sm:$0xff]
      %v4311 = vld [vmem:[#allocation21 + $0xc8] sm:$0xff]
      %v4312 = vld [vmem:[#allocation21 + $0xd0] sm:$0xff]
      %v4313 = vld [vmem:[#allocation21 + $0xd8] sm:$0xff]
      %v4314 = vld [vmem:[#allocation21 + $0xe0] sm:$0xff]
      %v4315 = vld [vmem:[#allocation21 + $0xe8] sm:$0xff]
      %v4316 = vld [vmem:[#allocation21 + $0xf0] sm:$0xff]
      %v4317 = vld [vmem:[#allocation21 + $0xf8] sm:$0xff]
      %v4318 = vld [vmem:[#allocation21 + $0x100] sm:$0xff]
      %v4319 = vld [vmem:[#allocation21 + $0x108] sm:$0xff]
      %v4320 = vld [vmem:[#allocation21 + $0x110] sm:$0xff]
      %v4321 = vld [vmem:[#allocation21 + $0x118] sm:$0xff]
      %v4322 = vld [vmem:[#allocation21 + $0x120] sm:$0xff]
      %v4323 = vld [vmem:[#allocation21 + $0x128] sm:$0xff]
      %v4324 = vld [vmem:[#allocation21 + $0x130] sm:$0xff]
      %v4325 = vld [vmem:[#allocation21 + $0x138] sm:$0xff]
      %v4326 = vld [vmem:[#allocation21 + $0x140] sm:$0xff]
      %v4327 = vld [vmem:[#allocation21 + $0x148] sm:$0xff]
      %v4328 = vld [vmem:[#allocation21 + $0x150] sm:$0xff]
      %v4329 = vld [vmem:[#allocation21 + $0x158] sm:$0xff]
      %v4330 = vld [vmem:[#allocation21 + $0x160] sm:$0xff]
      %v4331 = vld [vmem:[#allocation21 + $0x168] sm:$0xff]
      %v4332 = vld [vmem:[#allocation21 + $0x170] sm:$0xff]
      %v4333 = vld [vmem:[#allocation21 + $0x178] sm:$0xff]
      %v4334 = vld [vmem:[#allocation21 + $0x180] sm:$0xff]
      %v4335 = vld [vmem:[#allocation21 + $0x188] sm:$0xff]
      %v4336 = vld [vmem:[#allocation21 + $0x190] sm:$0xff]
      %v4337 = vld [vmem:[#allocation21 + $0x198] sm:$0xff]
      %v4338 = vld [vmem:[#allocation21 + $0x1a0] sm:$0xff]
      %v4339 = vld [vmem:[#allocation21 + $0x1a8] sm:$0xff]
      %v4340 = vld [vmem:[#allocation21 + $0x1b0] sm:$0xff]
      %v4341 = vld [vmem:[#allocation21 + $0x1b8] sm:$0xff]
      %v4342 = vld [vmem:[#allocation21 + $0x1c0] sm:$0xff]
      %v4343 = vld [vmem:[#allocation21 + $0x1c8] sm:$0xff]
      %v4344 = vld [vmem:[#allocation21 + $0x1d0] sm:$0xff]
      %v4345 = vld [vmem:[#allocation21 + $0x1d8] sm:$0xff]
      %v4346 = vld [vmem:[#allocation21 + $0x1e0] sm:$0xff]
      %v4347 = vld [vmem:[#allocation21 + $0x1e8] sm:$0xff]
      %v4348 = vld [vmem:[#allocation21 + $0x1f0] sm:$0xff]
      %v4349 = vld [vmem:[#allocation21 + $0x1f8] sm:$0xff]
      %v4350 = vld [vmem:[#allocation21 + $0x200] sm:$0xff]
      %v4351 = vld [vmem:[#allocation21 + $0x208] sm:$0xff]
      %v4352 = vld [vmem:[#allocation21 + $0x210] sm:$0xff]
      %v4353 = vld [vmem:[#allocation21 + $0x218] sm:$0xff]
      %v4354 = vld [vmem:[#allocation21 + $0x220] sm:$0xff]
      %v4355 = vld [vmem:[#allocation21 + $0x228] sm:$0xff]
      %v4356 = vld [vmem:[#allocation21 + $0x230] sm:$0xff]
      %v4357 = vld [vmem:[#allocation21 + $0x238] sm:$0xff]
      %v4358 = vld [vmem:[#allocation21 + $0x240] sm:$0xff]
      %v4359 = vld [vmem:[#allocation21 + $0x248] sm:$0xff]
      %v4360 = vld [vmem:[#allocation21 + $0x250] sm:$0xff]
      %v4361 = vld [vmem:[#allocation21 + $0x258] sm:$0xff]
      %v4362 = vld [vmem:[#allocation21 + $0x260] sm:$0xff]
      %v4363 = vld [vmem:[#allocation21 + $0x268] sm:$0xff]
      %v4364 = vld [vmem:[#allocation21 + $0x270] sm:$0xff]
      %v4365 = vld [vmem:[#allocation21 + $0x278] sm:$0xff]
      %v4366 = vld [vmem:[#allocation21 + $0x280] sm:$0xff]
      %v4367 = vld [vmem:[#allocation21 + $0x288] sm:$0xff]
      %v4368 = vld [vmem:[#allocation21 + $0x290] sm:$0xff]
      %v4369 = vld [vmem:[#allocation21 + $0x298] sm:$0xff]
      %v4370 = vld [vmem:[#allocation21 + $0x2a0] sm:$0xff]
      %v4371 = vld [vmem:[#allocation21 + $0x2a8] sm:$0xff]
      %v4372 = vld [vmem:[#allocation21 + $0x2b0] sm:$0xff]
      %v4373 = vld [vmem:[#allocation21 + $0x2b8] sm:$0xff]
      %v4374 = vld [vmem:[#allocation21 + $0x2c0] sm:$0xff]
      %v4375 = vld [vmem:[#allocation21 + $0x2c8] sm:$0xff]
      %v4376 = vld [vmem:[#allocation21 + $0x2d0] sm:$0xff]
      %v4377 = vld [vmem:[#allocation21 + $0x2d8] sm:$0xff]
      %v4378 = vld [vmem:[#allocation21 + $0x2e0] sm:$0xff]
      %v4379 = vld [vmem:[#allocation21 + $0x2e8] sm:$0xff]
      %v4380 = vld [vmem:[#allocation21 + $0x2f0] sm:$0xff]
      %v4381 = vld [vmem:[#allocation21 + $0x2f8] sm:$0xff]
      %v4382 = vpack.c.bf16 %v4284, %v4284
      %v4383 = vpack.c.bf16 %v4285, %v4285
      %v4384 = vld [vmem:[#allocation22] sm:$0x3f]
      %v4386 = vlaneseq
      %v4387 = vshrl.u32 %v4386, 7
      %v4388 = vsub.s32 0, %v4387
      %v4389 = vrot.slane %v4384, %v4388
      %v4390 = vlaneseq
      %v4391 = vshrl.u32 %v4390, 7
      %v4392 = vsub.s32 1, %v4391
      %v4393 = vrot.slane %v4384, %v4392
      %v4394 = vlaneseq
      %v4395 = vshrl.u32 %v4394, 7
      %v4396 = vsub.s32 2, %v4395
      %v4397 = vrot.slane %v4384, %v4396
      %v4398 = vlaneseq
      %v4399 = vshrl.u32 %v4398, 7
      %v4400 = vsub.s32 3, %v4399
      %v4401 = vrot.slane %v4384, %v4400
      %v4402 = vlaneseq
      %v4403 = vshrl.u32 %v4402, 7
      %v4404 = vsub.s32 4, %v4403
      %v4405 = vrot.slane %v4384, %v4404
      %v4406 = vlaneseq
      %v4407 = vshrl.u32 %v4406, 7
      %v4408 = vsub.s32 5, %v4407
      %v4409 = vrot.slane %v4384, %v4408
      %v4512 = vunpack.c.l.b16 %v4286
      %v4513 = vunpack.c.h.b16 %v4286
      %v4514 = vunpack.c.l.b16 %v4287
      %v4515 = vunpack.c.h.b16 %v4287
      %v4516 = vunpack.c.l.b16 %v4288
      %v4517 = vunpack.c.h.b16 %v4288
      %v4518 = vunpack.c.l.b16 %v4289
      %v4519 = vunpack.c.h.b16 %v4289
      %v4520 = vunpack.c.l.b16 %v4290
      %v4521 = vunpack.c.h.b16 %v4290
      %v4522 = vunpack.c.l.b16 %v4291
      %v4523 = vunpack.c.h.b16 %v4291
      %v4524 = vunpack.c.l.b16 %v4292
      %v4525 = vunpack.c.h.b16 %v4292
      %v4526 = vunpack.c.l.b16 %v4293
      %v4527 = vunpack.c.h.b16 %v4293
      %v4528 = vunpack.c.l.b16 %v4294
      %v4529 = vunpack.c.h.b16 %v4294
      %v4530 = vunpack.c.l.b16 %v4295
      %v4531 = vunpack.c.h.b16 %v4295
      %v4532 = vunpack.c.l.b16 %v4296
      %v4533 = vunpack.c.h.b16 %v4296
      %v4534 = vunpack.c.l.b16 %v4297
      %v4535 = vunpack.c.h.b16 %v4297
      %v4536 = vunpack.c.l.b16 %v4298
      %v4537 = vunpack.c.h.b16 %v4298
      %v4538 = vunpack.c.l.b16 %v4299
      %v4539 = vunpack.c.h.b16 %v4299
      %v4540 = vunpack.c.l.b16 %v4300
      %v4541 = vunpack.c.h.b16 %v4300
      %v4542 = vunpack.c.l.b16 %v4301
      %v4543 = vunpack.c.h.b16 %v4301
      %v4544 = vunpack.c.l.b16 %v4302
      %v4545 = vunpack.c.h.b16 %v4302
      %v4546 = vunpack.c.l.b16 %v4303
      %v4547 = vunpack.c.h.b16 %v4303
      %v4548 = vunpack.c.l.b16 %v4304
      %v4549 = vunpack.c.h.b16 %v4304
      %v4550 = vunpack.c.l.b16 %v4305
      %v4551 = vunpack.c.h.b16 %v4305
      %v4552 = vunpack.c.l.b16 %v4306
      %v4553 = vunpack.c.h.b16 %v4306
      %v4554 = vunpack.c.l.b16 %v4307
      %v4555 = vunpack.c.h.b16 %v4307
      %v4556 = vunpack.c.l.b16 %v4308
      %v4557 = vunpack.c.h.b16 %v4308
      %v4558 = vunpack.c.l.b16 %v4309
      %v4559 = vunpack.c.h.b16 %v4309
      %v4560 = vunpack.c.l.b16 %v4310
      %v4561 = vunpack.c.h.b16 %v4310
      %v4562 = vunpack.c.l.b16 %v4311
      %v4563 = vunpack.c.h.b16 %v4311
      %v4564 = vunpack.c.l.b16 %v4312
      %v4565 = vunpack.c.h.b16 %v4312
      %v4566 = vunpack.c.l.b16 %v4313
      %v4567 = vunpack.c.h.b16 %v4313
      %v4568 = vunpack.c.l.b16 %v4314
      %v4569 = vunpack.c.h.b16 %v4314
      %v4570 = vunpack.c.l.b16 %v4315
      %v4571 = vunpack.c.h.b16 %v4315
      %v4572 = vunpack.c.l.b16 %v4316
      %v4573 = vunpack.c.h.b16 %v4316
      %v4574 = vunpack.c.l.b16 %v4317
      %v4575 = vunpack.c.h.b16 %v4317
      %v4576 = vunpack.c.l.b16 %v4318
      %v4577 = vunpack.c.h.b16 %v4318
      %v4578 = vunpack.c.l.b16 %v4319
      %v4579 = vunpack.c.h.b16 %v4319
      %v4580 = vunpack.c.l.b16 %v4320
      %v4581 = vunpack.c.h.b16 %v4320
      %v4582 = vunpack.c.l.b16 %v4321
      %v4583 = vunpack.c.h.b16 %v4321
      %v4584 = vunpack.c.l.b16 %v4322
      %v4585 = vunpack.c.h.b16 %v4322
      %v4586 = vunpack.c.l.b16 %v4323
      %v4587 = vunpack.c.h.b16 %v4323
      %v4588 = vunpack.c.l.b16 %v4324
      %v4589 = vunpack.c.h.b16 %v4324
      %v4590 = vunpack.c.l.b16 %v4325
      %v4591 = vunpack.c.h.b16 %v4325
      %v4592 = vunpack.c.l.b16 %v4326
      %v4593 = vunpack.c.h.b16 %v4326
      %v4594 = vunpack.c.l.b16 %v4327
      %v4595 = vunpack.c.h.b16 %v4327
      %v4596 = vunpack.c.l.b16 %v4328
      %v4597 = vunpack.c.h.b16 %v4328
      %v4598 = vunpack.c.l.b16 %v4329
      %v4599 = vunpack.c.h.b16 %v4329
      %v4600 = vunpack.c.l.b16 %v4330
      %v4601 = vunpack.c.h.b16 %v4330
      %v4602 = vunpack.c.l.b16 %v4331
      %v4603 = vunpack.c.h.b16 %v4331
      %v4604 = vunpack.c.l.b16 %v4332
      %v4605 = vunpack.c.h.b16 %v4332
      %v4606 = vunpack.c.l.b16 %v4333
      %v4607 = vunpack.c.h.b16 %v4333
      %v4608 = vunpack.c.l.b16 %v4334
      %v4609 = vunpack.c.h.b16 %v4334
      %v4610 = vunpack.c.l.b16 %v4335
      %v4611 = vunpack.c.h.b16 %v4335
      %v4612 = vunpack.c.l.b16 %v4336
      %v4613 = vunpack.c.h.b16 %v4336
      %v4614 = vunpack.c.l.b16 %v4337
      %v4615 = vunpack.c.h.b16 %v4337
      %v4616 = vunpack.c.l.b16 %v4338
      %v4617 = vunpack.c.h.b16 %v4338
      %v4618 = vunpack.c.l.b16 %v4339
      %v4619 = vunpack.c.h.b16 %v4339
      %v4620 = vunpack.c.l.b16 %v4340
      %v4621 = vunpack.c.h.b16 %v4340
      %v4622 = vunpack.c.l.b16 %v4341
      %v4623 = vunpack.c.h.b16 %v4341
      %v4624 = vunpack.c.l.b16 %v4342
      %v4625 = vunpack.c.h.b16 %v4342
      %v4626 = vunpack.c.l.b16 %v4343
      %v4627 = vunpack.c.h.b16 %v4343
      %v4628 = vunpack.c.l.b16 %v4344
      %v4629 = vunpack.c.h.b16 %v4344
      %v4630 = vunpack.c.l.b16 %v4345
      %v4631 = vunpack.c.h.b16 %v4345
      %v4632 = vunpack.c.l.b16 %v4346
      %v4633 = vunpack.c.h.b16 %v4346
      %v4634 = vunpack.c.l.b16 %v4347
      %v4635 = vunpack.c.h.b16 %v4347
      %v4636 = vunpack.c.l.b16 %v4348
      %v4637 = vunpack.c.h.b16 %v4348
      %v4638 = vunpack.c.l.b16 %v4349
      %v4639 = vunpack.c.h.b16 %v4349
      %v4640 = vunpack.c.l.b16 %v4350
      %v4641 = vunpack.c.h.b16 %v4350
      %v4642 = vunpack.c.l.b16 %v4351
      %v4643 = vunpack.c.h.b16 %v4351
      %v4644 = vunpack.c.l.b16 %v4352
      %v4645 = vunpack.c.h.b16 %v4352
      %v4646 = vunpack.c.l.b16 %v4353
      %v4647 = vunpack.c.h.b16 %v4353
      %v4648 = vunpack.c.l.b16 %v4354
      %v4649 = vunpack.c.h.b16 %v4354
      %v4650 = vunpack.c.l.b16 %v4355
      %v4651 = vunpack.c.h.b16 %v4355
      %v4652 = vunpack.c.l.b16 %v4356
      %v4653 = vunpack.c.h.b16 %v4356
      %v4654 = vunpack.c.l.b16 %v4357
      %v4655 = vunpack.c.h.b16 %v4357
      %v4656 = vunpack.c.l.b16 %v4358
      %v4657 = vunpack.c.h.b16 %v4358
      %v4658 = vunpack.c.l.b16 %v4359
      %v4659 = vunpack.c.h.b16 %v4359
      %v4660 = vunpack.c.l.b16 %v4360
      %v4661 = vunpack.c.h.b16 %v4360
      %v4662 = vunpack.c.l.b16 %v4361
      %v4663 = vunpack.c.h.b16 %v4361
      %v4664 = vunpack.c.l.b16 %v4362
      %v4665 = vunpack.c.h.b16 %v4362
      %v4666 = vunpack.c.l.b16 %v4363
      %v4667 = vunpack.c.h.b16 %v4363
      %v4668 = vunpack.c.l.b16 %v4364
      %v4669 = vunpack.c.h.b16 %v4364
      %v4670 = vunpack.c.l.b16 %v4365
      %v4671 = vunpack.c.h.b16 %v4365
      %v4672 = vunpack.c.l.b16 %v4366
      %v4673 = vunpack.c.h.b16 %v4366
      %v4674 = vunpack.c.l.b16 %v4367
      %v4675 = vunpack.c.h.b16 %v4367
      %v4676 = vunpack.c.l.b16 %v4368
      %v4677 = vunpack.c.h.b16 %v4368
      %v4678 = vunpack.c.l.b16 %v4369
      %v4679 = vunpack.c.h.b16 %v4369
      %v4680 = vunpack.c.l.b16 %v4370
      %v4681 = vunpack.c.h.b16 %v4370
      %v4682 = vunpack.c.l.b16 %v4371
      %v4683 = vunpack.c.h.b16 %v4371
      %v4684 = vunpack.c.l.b16 %v4372
      %v4685 = vunpack.c.h.b16 %v4372
      %v4686 = vunpack.c.l.b16 %v4373
      %v4687 = vunpack.c.h.b16 %v4373
      %v4688 = vunpack.c.l.b16 %v4374
      %v4689 = vunpack.c.h.b16 %v4374
      %v4690 = vunpack.c.l.b16 %v4375
      %v4691 = vunpack.c.h.b16 %v4375
      %v4692 = vunpack.c.l.b16 %v4376
      %v4693 = vunpack.c.h.b16 %v4376
      %v4694 = vunpack.c.l.b16 %v4377
      %v4695 = vunpack.c.h.b16 %v4377
      %v4696 = vunpack.c.l.b16 %v4378
      %v4697 = vunpack.c.h.b16 %v4378
      %v4698 = vunpack.c.l.b16 %v4379
      %v4699 = vunpack.c.h.b16 %v4379
      %v4700 = vunpack.c.l.b16 %v4380
      %v4701 = vunpack.c.h.b16 %v4380
      %v4702 = vunpack.c.l.b16 %v4381
      %v4703 = vunpack.c.h.b16 %v4381
      %v4704 = vpack.c.b16 %v4518, %v4512
      %v4705 = vpack.c.b16 %v4519, %v4513
      %v4706 = vpack.c.b16 %v4520, %v4514
      %v4707 = vpack.c.b16 %v4521, %v4515
      %v4708 = vpack.c.b16 %v4522, %v4516
      %v4709 = vpack.c.b16 %v4523, %v4517
      %v4710 = vpack.c.b16 %v4530, %v4524
      %v4711 = vpack.c.b16 %v4531, %v4525
      %v4712 = vpack.c.b16 %v4532, %v4526
      %v4713 = vpack.c.b16 %v4533, %v4527
      %v4714 = vpack.c.b16 %v4534, %v4528
      %v4715 = vpack.c.b16 %v4535, %v4529
      %v4716 = vpack.c.b16 %v4542, %v4536
      %v4717 = vpack.c.b16 %v4543, %v4537
      %v4718 = vpack.c.b16 %v4544, %v4538
      %v4719 = vpack.c.b16 %v4545, %v4539
      %v4720 = vpack.c.b16 %v4546, %v4540
      %v4721 = vpack.c.b16 %v4547, %v4541
      %v4722 = vpack.c.b16 %v4554, %v4548
      %v4723 = vpack.c.b16 %v4555, %v4549
      %v4724 = vpack.c.b16 %v4556, %v4550
      %v4725 = vpack.c.b16 %v4557, %v4551
      %v4726 = vpack.c.b16 %v4558, %v4552
      %v4727 = vpack.c.b16 %v4559, %v4553
      %v4728 = vpack.c.b16 %v4566, %v4560
      %v4729 = vpack.c.b16 %v4567, %v4561
      %v4730 = vpack.c.b16 %v4568, %v4562
      %v4731 = vpack.c.b16 %v4569, %v4563
      %v4732 = vpack.c.b16 %v4570, %v4564
      %v4733 = vpack.c.b16 %v4571, %v4565
      %v4734 = vpack.c.b16 %v4578, %v4572
      %v4735 = vpack.c.b16 %v4579, %v4573
      %v4736 = vpack.c.b16 %v4580, %v4574
      %v4737 = vpack.c.b16 %v4581, %v4575
      %v4738 = vpack.c.b16 %v4582, %v4576
      %v4739 = vpack.c.b16 %v4583, %v4577
      %v4740 = vpack.c.b16 %v4590, %v4584
      %v4741 = vpack.c.b16 %v4591, %v4585
      %v4742 = vpack.c.b16 %v4592, %v4586
      %v4743 = vpack.c.b16 %v4593, %v4587
      %v4744 = vpack.c.b16 %v4594, %v4588
      %v4745 = vpack.c.b16 %v4595, %v4589
      %v4746 = vpack.c.b16 %v4602, %v4596
      %v4747 = vpack.c.b16 %v4603, %v4597
      %v4748 = vpack.c.b16 %v4604, %v4598
      %v4749 = vpack.c.b16 %v4605, %v4599
      %v4750 = vpack.c.b16 %v4606, %v4600
      %v4751 = vpack.c.b16 %v4607, %v4601
      %v4752 = vpack.c.b16 %v4614, %v4608
      %v4753 = vpack.c.b16 %v4615, %v4609
      %v4754 = vpack.c.b16 %v4616, %v4610
      %v4755 = vpack.c.b16 %v4617, %v4611
      %v4756 = vpack.c.b16 %v4618, %v4612
      %v4757 = vpack.c.b16 %v4619, %v4613
      %v4758 = vpack.c.b16 %v4626, %v4620
      %v4759 = vpack.c.b16 %v4627, %v4621
      %v4760 = vpack.c.b16 %v4628, %v4622
      %v4761 = vpack.c.b16 %v4629, %v4623
      %v4762 = vpack.c.b16 %v4630, %v4624
      %v4763 = vpack.c.b16 %v4631, %v4625
      %v4764 = vpack.c.b16 %v4638, %v4632
      %v4765 = vpack.c.b16 %v4639, %v4633
      %v4766 = vpack.c.b16 %v4640, %v4634
      %v4767 = vpack.c.b16 %v4641, %v4635
      %v4768 = vpack.c.b16 %v4642, %v4636
      %v4769 = vpack.c.b16 %v4643, %v4637
      %v4770 = vpack.c.b16 %v4650, %v4644
      %v4771 = vpack.c.b16 %v4651, %v4645
      %v4772 = vpack.c.b16 %v4652, %v4646
      %v4773 = vpack.c.b16 %v4653, %v4647
      %v4774 = vpack.c.b16 %v4654, %v4648
      %v4775 = vpack.c.b16 %v4655, %v4649
      %v4776 = vpack.c.b16 %v4662, %v4656
      %v4777 = vpack.c.b16 %v4663, %v4657
      %v4778 = vpack.c.b16 %v4664, %v4658
      %v4779 = vpack.c.b16 %v4665, %v4659
      %v4780 = vpack.c.b16 %v4666, %v4660
      %v4781 = vpack.c.b16 %v4667, %v4661
      %v4782 = vpack.c.b16 %v4674, %v4668
      %v4783 = vpack.c.b16 %v4675, %v4669
      %v4784 = vpack.c.b16 %v4676, %v4670
      %v4785 = vpack.c.b16 %v4677, %v4671
      %v4786 = vpack.c.b16 %v4678, %v4672
      %v4787 = vpack.c.b16 %v4679, %v4673
      %v4788 = vpack.c.b16 %v4686, %v4680
      %v4789 = vpack.c.b16 %v4687, %v4681
      %v4790 = vpack.c.b16 %v4688, %v4682
      %v4791 = vpack.c.b16 %v4689, %v4683
      %v4792 = vpack.c.b16 %v4690, %v4684
      %v4793 = vpack.c.b16 %v4691, %v4685
      %v4794 = vpack.c.b16 %v4698, %v4692
      %v4795 = vpack.c.b16 %v4699, %v4693
      %v4796 = vpack.c.b16 %v4700, %v4694
      %v4797 = vpack.c.b16 %v4701, %v4695
      %v4798 = vpack.c.b16 %v4702, %v4696
      %v4799 = vpack.c.b16 %v4703, %v4697
      %4896 = vmatprep.subr.bf16.mxu0 %v4705
      %4897 = vmatpush1.bf16.msra.mxu0 %v4704
      %4898 = vmatprep.subr.bf16.mxu0 %v4711
      %4899 = vmatpush1.bf16.msra.mxu0 %v4710
      %4900 = vmatprep.subr.bf16.mxu0 %v4717
      %4901 = vmatpush1.bf16.msra.mxu0 %v4716
      %4902 = vmatprep.subr.bf16.mxu0 %v4723
      %4903 = vmatpush1.bf16.msra.mxu0 %v4722
      %4904 = vmatprep.subr.bf16.mxu0 %v4729
      %4905 = vmatpush1.bf16.msra.mxu0 %v4728
      %4906 = vmatprep.subr.bf16.mxu0 %v4735
      %4907 = vmatpush1.bf16.msra.mxu0 %v4734
      %4908 = vmatprep.subr.bf16.mxu0 %v4741
      %4909 = vmatpush1.bf16.msra.mxu0 %v4740
      %4910 = vmatprep.subr.bf16.mxu0 %v4747
      %4911 = vmatpush1.bf16.msra.mxu0 %v4746
      %4912 = vmatprep.subr.bf16.mxu0 %v4753
      %4913 = vmatpush1.bf16.msra.mxu0 %v4752
      %4914 = vmatprep.subr.bf16.mxu0 %v4759
      %4915 = vmatpush1.bf16.msra.mxu0 %v4758
      %4916 = vmatprep.subr.bf16.mxu0 %v4765
      %4917 = vmatpush1.bf16.msra.mxu0 %v4764
      %4918 = vmatprep.subr.bf16.mxu0 %v4771
      %4919 = vmatpush1.bf16.msra.mxu0 %v4770
      %4920 = vmatprep.subr.bf16.mxu0 %v4777
      %4921 = vmatpush1.bf16.msra.mxu0 %v4776
      %4922 = vmatprep.subr.bf16.mxu0 %v4783
      %4923 = vmatpush1.bf16.msra.mxu0 %v4782
      %4924 = vmatprep.subr.bf16.mxu0 %v4789
      %4925 = vmatpush1.bf16.msra.mxu0 %v4788
      %4926 = vmatprep.subr.bf16.mxu0 %v4795
      %4927 = vmatpush1.bf16.msra.mxu0 %v4794
      %4928 = vmatprep.mubr.bf16.mxu0 %v4383
      %4929 = vmatmul.mubr.bf16.gmra.mrb[0].mxu0 %v4382
      %v4930 = vpop.f32.mrb[0].mxu0
      %v4931 = vadd.f32 %v4389, %v4930
      %v4932 = vpop.f32.mrb[0].mxu0
      %v4933 = vadd.f32 %v4393, %v4932
      %v4934 = vpop.f32.mrb[0].mxu0
      %v4935 = vpop.f32.mrb[0].mxu0
      %4936 = vdwg.mxu0
      %4937 = vmatprep.subr.bf16.mxu0 %v4707
      %4938 = vmatpush1.bf16.msra.mxu0 %v4706
      %4939 = vmatprep.subr.bf16.mxu0 %v4713
      %4940 = vmatpush1.bf16.msra.mxu0 %v4712
      %4941 = vmatprep.subr.bf16.mxu0 %v4719
      %4942 = vmatpush1.bf16.msra.mxu0 %v4718
      %4943 = vmatprep.subr.bf16.mxu0 %v4725
      %4944 = vmatpush1.bf16.msra.mxu0 %v4724
      %4945 = vmatprep.subr.bf16.mxu0 %v4731
      %4946 = vmatpush1.bf16.msra.mxu0 %v4730
      %4947 = vmatprep.subr.bf16.mxu0 %v4737
      %4948 = vmatpush1.bf16.msra.mxu0 %v4736
      %4949 = vmatprep.subr.bf16.mxu0 %v4743
      %4950 = vmatpush1.bf16.msra.mxu0 %v4742
      %4951 = vmatprep.subr.bf16.mxu0 %v4749
      %4952 = vmatpush1.bf16.msra.mxu0 %v4748
      %4953 = vmatprep.subr.bf16.mxu0 %v4755
      %4954 = vmatpush1.bf16.msra.mxu0 %v4754
      %4955 = vmatprep.subr.bf16.mxu0 %v4761
      %4956 = vmatpush1.bf16.msra.mxu0 %v4760
      %4957 = vmatprep.subr.bf16.mxu0 %v4767
      %4958 = vmatpush1.bf16.msra.mxu0 %v4766
      %4959 = vmatprep.subr.bf16.mxu0 %v4773
      %4960 = vmatpush1.bf16.msra.mxu0 %v4772
      %4961 = vmatprep.subr.bf16.mxu0 %v4779
      %4962 = vmatpush1.bf16.msra.mxu0 %v4778
      %4963 = vmatprep.subr.bf16.mxu0 %v4785
      %4964 = vmatpush1.bf16.msra.mxu0 %v4784
      %4965 = vmatprep.subr.bf16.mxu0 %v4791
      %4966 = vmatpush1.bf16.msra.mxu0 %v4790
      %4967 = vmatprep.subr.bf16.mxu0 %v4797
      %4968 = vmatpush1.bf16.msra.mxu0 %v4796
      %4969 = vmatprep.mubr.bf16.mxu0 %v4383
      %4970 = vmatmul.mubr.bf16.gmra.mrb[0].mxu0 %v4382
      %v4971 = vpop.f32.mrb[0].mxu0
      %v4972 = vadd.f32 %v4397, %v4971
      %v4973 = vpop.f32.mrb[0].mxu0
      %v4974 = vadd.f32 %v4401, %v4973
      %v4975 = vpop.f32.mrb[0].mxu0
      %v4976 = vpop.f32.mrb[0].mxu0
      %4977 = vdwg.mxu0
      %4978 = vmatprep.subr.bf16.mxu0 %v4709
      %4979 = vmatpush1.bf16.msra.mxu0 %v4708
      %4980 = vmatprep.subr.bf16.mxu0 %v4715
      %4981 = vmatpush1.bf16.msra.mxu0 %v4714
      %4982 = vmatprep.subr.bf16.mxu0 %v4721
      %4983 = vmatpush1.bf16.msra.mxu0 %v4720
      %4984 = vmatprep.subr.bf16.mxu0 %v4727
      %4985 = vmatpush1.bf16.msra.mxu0 %v4726
      %4986 = vmatprep.subr.bf16.mxu0 %v4733
      %4987 = vmatpush1.bf16.msra.mxu0 %v4732
      %4988 = vmatprep.subr.bf16.mxu0 %v4739
      %4989 = vmatpush1.bf16.msra.mxu0 %v4738
      %4990 = vmatprep.subr.bf16.mxu0 %v4745
      %4991 = vmatpush1.bf16.msra.mxu0 %v4744
      %4992 = vmatprep.subr.bf16.mxu0 %v4751
      %4993 = vmatpush1.bf16.msra.mxu0 %v4750
      %4994 = vmatprep.subr.bf16.mxu0 %v4757
      %4995 = vmatpush1.bf16.msra.mxu0 %v4756
      %4996 = vmatprep.subr.bf16.mxu0 %v4763
      %4997 = vmatpush1.bf16.msra.mxu0 %v4762
      %4998 = vmatprep.subr.bf16.mxu0 %v4769
      %4999 = vmatpush1.bf16.msra.mxu0 %v4768
      %5000 = vmatprep.subr.bf16.mxu0 %v4775
      %5001 = vmatpush1.bf16.msra.mxu0 %v4774
      %5002 = vmatprep.subr.bf16.mxu0 %v4781
      %5003 = vmatpush1.bf16.msra.mxu0 %v4780
      %5004 = vmatprep.subr.bf16.mxu0 %v4787
      %5005 = vmatpush1.bf16.msra.mxu0 %v4786
      %5006 = vmatprep.subr.bf16.mxu0 %v4793
      %5007 = vmatpush1.bf16.msra.mxu0 %v4792
      %5008 = vmatprep.subr.bf16.mxu0 %v4799
      %5009 = vmatpush1.bf16.msra.mxu0 %v4798
      %5010 = vmatprep.mubr.bf16.mxu0 %v4383
      %5011 = vmatmul.mubr.bf16.gmra.mrb[0].mxu0 %v4382
      %v5012 = vpop.f32.mrb[0].mxu0
      %v5013 = vadd.f32 %v4405, %v5012
      %v5014 = vpop.f32.mrb[0].mxu0
      %v5015 = vadd.f32 %v4409, %v5014
      %v5016 = vpop.f32.mrb[0].mxu0
      %v5017 = vpop.f32.mrb[0].mxu0
      %5018 = vdwg.mxu0
      %v5019 = vmul.f32 %v4931, %v4972
      %v5020 = vmul.f32 %v4933, %v4974
      %v5021 = vmul.f32 %v5019, 0.0625
      %v5022 = vmul.f32 %v5020, 0.0625
      %v5023 = vmax.f32 %v5021, %v5022
      %5024 = vmax.xlane.f32.xlu0 %v5023
      %v5025 = vpop.xlane.xlu0 %5024
      %v5026 = vsub.f32 %v5021, %v5025
      %v5027 = vsub.f32 %v5022, %v5025
      %v5028 = vmul.f32 %v5026, 1.442695
      %v5029 = vpow.pop %v5028
      %v5030 = vmul.f32 %v5027, 1.442695
      %v5031 = vpow.pop %v5030
      %v5032 = vadd.f32 %v5029, %v5031
      %5033 = vadd.xlane.f32.xlu0 %v5032
      %v5034 = vpop.xlane.xlu0 %5033
      %v5035 = vrcp.pop %v5034
      %v5036 = vmul.f32 %v5029, %v5035
      %v5037 = vmul.f32 %v5031, %v5035
      %v5038 = vmul.f32 %v5036, %v5013
      %v5039 = vmul.f32 %v5037, %v5015
      %v5040 = vstv %s250
      %v5041 = vmul.f32 %v5040, %v5038
      %v5042 = vmul.f32 %v5040, %v5039
      %v5043 = vadd.f32 %v4284, %v5041
      %v5044 = vadd.f32 %v4285, %v5042
      %5045 = vst [vmem:[#allocation2] sm:$0xff] %v5043
      %5046 = vst [vmem:[#allocation2 + $0x8] sm:$0xff] %v5044
    $region141: #{decoder_forward.1} parent=1 // pred_fallthru
      _
    %v5047 = vld [vmem:[#allocation2] sm:$0xff]
    %v5048 = vld [vmem:[#allocation2 + $0x8] sm:$0xff]
    %v5049 = vld [vmem:[%s18] sm:$0xf]
    %v5050 = vld [vmem:[%s18 + $0x4] sm:$0xf]
    %v5051 = vld [vmem:[%s18 + $0x8] sm:$0xf]
    %v5052 = vld [vmem:[%s18 + $0xc] sm:$0xf]
    %v5053 = vld [vmem:[%s18 + $0x10] sm:$0xf]
    %v5054 = vld [vmem:[%s18 + $0x14] sm:$0xf]
    %v5055 = vld [vmem:[%s18 + $0x18] sm:$0xf]
    %v5056 = vld [vmem:[%s18 + $0x1c] sm:$0xf]
    %v5057 = vld [vmem:[%s18 + $0x20] sm:$0xf]
    %v5058 = vld [vmem:[%s18 + $0x24] sm:$0xf]
    %v5059 = vld [vmem:[%s18 + $0x28] sm:$0xf]
    %v5060 = vld [vmem:[%s18 + $0x2c] sm:$0xf]
    %v5061 = vld [vmem:[%s18 + $0x30] sm:$0xf]
    %v5062 = vld [vmem:[%s18 + $0x34] sm:$0xf]
    %v5063 = vld [vmem:[%s18 + $0x38] sm:$0xf]
    %v5064 = vld [vmem:[%s18 + $0x3c] sm:$0xf]
    %v5065 = vld [vmem:[%s18 + $0x40] sm:$0xf]
    %v5066 = vld [vmem:[%s18 + $0x44] sm:$0xf]
    %v5067 = vld [vmem:[%s18 + $0x48] sm:$0xf]
    %v5068 = vld [vmem:[%s18 + $0x4c] sm:$0xf]
    %v5069 = vld [vmem:[%s18 + $0x50] sm:$0xf]
    %v5070 = vld [vmem:[%s18 + $0x54] sm:$0xf]
    %v5071 = vld [vmem:[%s18 + $0x58] sm:$0xf]
    %v5072 = vld [vmem:[%s18 + $0x5c] sm:$0xf]
    %v5073 = vld [vmem:[%s18 + $0x60] sm:$0xf]
    %v5074 = vld [vmem:[%s18 + $0x64] sm:$0xf]
    %v5075 = vld [vmem:[%s18 + $0x68] sm:$0xf]
    %v5076 = vld [vmem:[%s18 + $0x6c] sm:$0xf]
    %v5077 = vld [vmem:[%s18 + $0x70] sm:$0xf]
    %v5078 = vld [vmem:[%s18 + $0x74] sm:$0xf]
    %v5079 = vld [vmem:[%s18 + $0x78] sm:$0xf]
    %v5080 = vld [vmem:[%s18 + $0x7c] sm:$0xf]
    %v5081 = vpack.c.bf16 %v5047, %v5047
    %v5082 = vpack.c.bf16 %v5048, %v5048
    %v5083 = vld [vmem:[#allocation24] sm:$0x1]
    %v5085 = vlaneseq
    %v5086 = vshrl.u32 %v5085, 7
    %v5087 = vsub.s32 0, %v5086
    %v5088 = vrot.slane %v5083, %v5087
    %v5122 = vunpack.c.l.b16 %v5049
    %v5123 = vunpack.c.l.b16 %v5050
    %v5124 = vunpack.c.l.b16 %v5051
    %v5125 = vunpack.c.l.b16 %v5052
    %v5126 = vunpack.c.l.b16 %v5053
    %v5127 = vunpack.c.l.b16 %v5054
    %v5128 = vunpack.c.l.b16 %v5055
    %v5129 = vunpack.c.l.b16 %v5056
    %v5130 = vunpack.c.l.b16 %v5057
    %v5131 = vunpack.c.l.b16 %v5058
    %v5132 = vunpack.c.l.b16 %v5059
    %v5133 = vunpack.c.l.b16 %v5060
    %v5134 = vunpack.c.l.b16 %v5061
    %v5135 = vunpack.c.l.b16 %v5062
    %v5136 = vunpack.c.l.b16 %v5063
    %v5137 = vunpack.c.l.b16 %v5064
    %v5138 = vunpack.c.l.b16 %v5065
    %v5139 = vunpack.c.l.b16 %v5066
    %v5140 = vunpack.c.l.b16 %v5067
    %v5141 = vunpack.c.l.b16 %v5068
    %v5142 = vunpack.c.l.b16 %v5069
    %v5143 = vunpack.c.l.b16 %v5070
    %v5144 = vunpack.c.l.b16 %v5071
    %v5145 = vunpack.c.l.b16 %v5072
    %v5146 = vunpack.c.l.b16 %v5073
    %v5147 = vunpack.c.l.b16 %v5074
    %v5148 = vunpack.c.l.b16 %v5075
    %v5149 = vunpack.c.l.b16 %v5076
    %v5150 = vunpack.c.l.b16 %v5077
    %v5151 = vunpack.c.l.b16 %v5078
    %v5152 = vunpack.c.l.b16 %v5079
    %v5153 = vunpack.c.l.b16 %v5080
    %v5154 = vpack.c.b16 %v5123, %v5122
    %v5155 = vpack.c.b16 %v5125, %v5124
    %v5156 = vpack.c.b16 %v5127, %v5126
    %v5157 = vpack.c.b16 %v5129, %v5128
    %v5158 = vpack.c.b16 %v5131, %v5130
    %v5159 = vpack.c.b16 %v5133, %v5132
    %v5160 = vpack.c.b16 %v5135, %v5134
    %v5161 = vpack.c.b16 %v5137, %v5136
    %v5162 = vpack.c.b16 %v5139, %v5138
    %v5163 = vpack.c.b16 %v5141, %v5140
    %v5164 = vpack.c.b16 %v5143, %v5142
    %v5165 = vpack.c.b16 %v5145, %v5144
    %v5166 = vpack.c.b16 %v5147, %v5146
    %v5167 = vpack.c.b16 %v5149, %v5148
    %v5168 = vpack.c.b16 %v5151, %v5150
    %v5169 = vpack.c.b16 %v5153, %v5152
    %5186 = vmatprep.subr.bf16.mxu0 0
    %5187 = vmatpush1.bf16.msra.mxu0 %v5154
    %5188 = vmatprep.subr.bf16.mxu0 0
    %5189 = vmatpush1.bf16.msra.mxu0 %v5155
    %5190 = vmatprep.subr.bf16.mxu0 0
    %5191 = vmatpush1.bf16.msra.mxu0 %v5156
    %5192 = vmatprep.subr.bf16.mxu0 0
    %5193 = vmatpush1.bf16.msra.mxu0 %v5157
    %5194 = vmatprep.subr.bf16.mxu0 0
    %5195 = vmatpush1.bf16.msra.mxu0 %v5158
    %5196 = vmatprep.subr.bf16.mxu0 0
    %5197 = vmatpush1.bf16.msra.mxu0 %v5159
    %5198 = vmatprep.subr.bf16.mxu0 0
    %5199 = vmatpush1.bf16.msra.mxu0 %v5160
    %5200 = vmatprep.subr.bf16.mxu0 0
    %5201 = vmatpush1.bf16.msra.mxu0 %v5161
    %5202 = vmatprep.subr.bf16.mxu0 0
    %5203 = vmatpush1.bf16.msra.mxu0 %v5162
    %5204 = vmatprep.subr.bf16.mxu0 0
    %5205 = vmatpush1.bf16.msra.mxu0 %v5163
    %5206 = vmatprep.subr.bf16.mxu0 0
    %5207 = vmatpush1.bf16.msra.mxu0 %v5164
    %5208 = vmatprep.subr.bf16.mxu0 0
    %5209 = vmatpush1.bf16.msra.mxu0 %v5165
    %5210 = vmatprep.subr.bf16.mxu0 0
    %5211 = vmatpush1.bf16.msra.mxu0 %v5166
    %5212 = vmatprep.subr.bf16.mxu0 0
    %5213 = vmatpush1.bf16.msra.mxu0 %v5167
    %5214 = vmatprep.subr.bf16.mxu0 0
    %5215 = vmatpush1.bf16.msra.mxu0 %v5168
    %5216 = vmatprep.subr.bf16.mxu0 0
    %5217 = vmatpush1.bf16.msra.mxu0 %v5169
    %5218 = vmatprep.mubr.bf16.mxu0 %v5082
    %5219 = vmatmul.mubr.bf16.gmra.mrb[0].mxu0 %v5081
    %v5220 = vpop.f32.mrb[0].mxu0
    %v5221 = vadd.f32 %v5088, %v5220
    %v5222 = vpop.f32.mrb[0].mxu0
    %v5223 = vpop.f32.mrb[0].mxu0
    %v5224 = vpop.f32.mrb[0].mxu0
    %5225 = vdwg.mxu0
    %v5226 = vtanh.pop %v5221
    %5227 = vst [vmem:[%s20] sm:$0xff] %v5226
    // Predicated region
    $region142: #{decoder_forward.1} parent=1 // pred_check
      _
    $region143: #{decoder_forward.1} parent=1 // pred_check_branch
      %5229 = sbr.rel (0) target = $region145
    $region144: #{decoder_forward.1} parent=1 // pred_region
      _
    $region145: #{decoder_forward.1} parent=1 // pred_fallthru
      _
    // Predicated region
    $region146: #{decoder_forward.1} parent=1 // pred_check
      _
    $region147: #{decoder_forward.1} parent=1 // pred_check_branch
      %5231 = sbr.rel (0) target = $region149
    $region148: #{decoder_forward.1} parent=1 // pred_region
      _
    $region149: #{decoder_forward.1} parent=1 // pred_fallthru
      _
    %5232 = vsyncpa [#allocation4], 1
    %5233 = vsyncpa [#allocation8], 1
    %5234 = vsyncpa [#allocation11], 1
    %5235 = vsyncpa [#allocation14], 1
    %5236 = vsyncpa [#allocation17], 1
    %5237 = vsyncpa [#allocation20], 1
    %5238 = vsyncpa [#allocation23], 1
    %5239 = vsyncpa [#allocation5], 1

</llo_original>
